<compile_context>
chip_gen: v7x
topology: tpu7x:2x2x1
jax: 0.10.0
libtpu: 0.0.40
codegen_flags: <defaults>
</compile_context>

<pallas_src>
import functools
import math

import jax
import jax.numpy as jnp
from jax import lax
from jax.experimental import pallas as pl
from jax.experimental.pallas import tpu as pltpu


def _round_up(x: int, m: int) -> int:
    return ((x + m - 1) // m) * m


@functools.lru_cache(maxsize=None)
def _default_vmem_limit() -> int:
    """Generation-aware VMEM limit: ~75% of per-core VMEM (48 MiB v7x, 96 MiB v5e/v6e)."""
    try:
        cap = int(pltpu.get_tpu_info().vmem_capacity_bytes)
    except Exception:
        cap = 64 * 1024 * 1024
    return max(32 * 1024 * 1024, min(100 * 1024 * 1024, (cap * 3) // 4))


def _choose_tn(n_pad, cap_tn, tm, K, x_it, w_it, o_it, budget):
    """Largest 128-multiple tile dividing n_pad, <= cap_tn, fitting the VMEM budget
    (double-buffered x / weight / bias / output tiles, conservatively)."""
    cap_tn = max(128, (min(cap_tn, n_pad) // 128) * 128)
    best = 128
    for t in range(128, cap_tn + 1, 128):
        if n_pad % t:
            continue
        need = 2 * (tm * K * x_it) + 2 * (t * K * w_it) + 2 * (tm * t * o_it) + 2 * t * 4
        if need <= budget:
            best = t
    return best


# ----------------------------------------------------------------------------
# Fused (optional LayerNorm) + Linear (+ optional GELU) kernel.
# y = act( LN(x) @ W.T + b ), W kept in PyTorch (N, K) layout, bf16 storage,
# f32 MXU accumulation.
# ----------------------------------------------------------------------------
def _linear_kernel(x_ref, w_ref, *rest, activation, has_bias, has_ln, ln_eps):
    o_ref = rest[-1]
    pos = 0
    b_ref = g_ref = be_ref = None
    if has_bias:
        b_ref = rest[pos]
        pos += 1
    if has_ln:
        g_ref, be_ref = rest[pos], rest[pos + 1]
        pos += 2

    x = x_ref[...]
    if has_ln:
        # Pre-LN fused into the matmul: recomputed per N-tile (cheap VPU work on
        # the resident activation block; O(M*K) vs. the O(M*K*tn) MXU work).
        xf = x.astype(jnp.float32)
        mu = jnp.mean(xf, axis=-1, keepdims=True)
        xc = xf - mu
        var = jnp.mean(xc * xc, axis=-1, keepdims=True)
        xf = xc * lax.rsqrt(var + ln_eps)
        x = xf * g_ref[...].astype(jnp.float32) + be_ref[...].astype(jnp.float32)
    # bf16 x bf16 on the MXU, f32 accumulate.
    x = x.astype(w_ref.dtype)
    acc = lax.dot_general(x, w_ref[...],
                          dimension_numbers=(((1,), (1,)), ((), ())),
                          preferred_element_type=jnp.float32)
    if has_bias:
        acc = acc + b_ref[...].astype(jnp.float32)
    if activation == "gelu":
        acc = jax.nn.gelu(acc, approximate=True)      # GPT-2 "gelu_new" (tanh)
    o_ref[...] = acc.astype(o_ref.dtype)


def pallas_linear(x2d, weight, bias=None, *, ln_gamma=None, ln_beta=None,
                  ln_eps=1e-5, activation=None, block_m=512, block_n=4096,
                  out_dtype=None, vmem_limit_bytes=None):
    """y = act(LN(x2d) @ weight.T + bias), weight in (N, K) layout (bf16 storage).

    2-D grid: N (outer, weight tiles streamed once) x M (inner).  The N-tile is
    the largest 128-multiple divisor of N that fits the VMEM budget, so lane-dense
    weights (as produced by init_params) never hit the pad fallback.
    """
    M, K = x2d.shape
    N, K2 = weight.shape
    assert K == K2, (x2d.shape, weight.shape)
    out_dtype = out_dtype or x2d.dtype
    vmem_limit = vmem_limit_bytes or _default_vmem_limit()
    budget = int(vmem_limit * 0.8)

    # M tiling (single block when M is small).
    if M <= block_m:
        tm, m_pad = M, M
    else:
        tm = block_m
        m_pad = _round_up(M, tm)
    x_in = jnp.pad(x2d, ((0, m_pad - M), (0, 0))) if m_pad != M else x2d

    # N tiling. Weights are lane-dense at init, so this pad is a safety net only.
    n_pad = _round_up(N, 128)
    w_in = jnp.pad(weight, ((0, n_pad - N), (0, 0))) if n_pad != N else weight

    x_it = jnp.dtype(x2d.dtype).itemsize
    w_it = jnp.dtype(weight.dtype).itemsize
    o_it = jnp.dtype(out_dtype).itemsize
    tn = _choose_tn(n_pad, block_n, tm, K, x_it, w_it, o_it, budget)

    has_bias = bias is not None
    has_ln = ln_gamma is not None

    # Grid: N outer (weight streamed exactly once), M inner (smaller operand
    # re-streamed if M is tiled). NOTE: the constant-index operands (x when
    # m-tiles==1, gamma/beta) could be single-buffered (pl.Buffered(1)) to free
    # VMEM; left at the default since the budget-fit tile already accounts for it.
    in_specs = [
        pl.BlockSpec((tm, K), lambda j, i: (i, 0)),   # activations (resident for small M)
        pl.BlockSpec((tn, K), lambda j, i: (j, 0)),   # weight N-tiles streamed
    ]
    args = [x_in, w_in]
    if has_bias:
        b_in = (jnp.pad(bias, (0, n_pad - N)) if n_pad != N else bias).reshape(1, n_pad)
        in_specs.append(pl.BlockSpec((1, tn), lambda j, i: (0, j)))
        args.append(b_in)
    if has_ln:
        in_specs.append(pl.BlockSpec((1, K), lambda j, i: (0, 0)))
        in_specs.append(pl.BlockSpec((1, K), lambda j, i: (0, 0)))
        args.append(ln_gamma.reshape(1, K))
        args.append(ln_beta.reshape(1, K))

    cost = pl.CostEstimate(
        flops=2 * m_pad * K * n_pad,
        transcendentals=(m_pad * n_pad if activation == "gelu" else 0),
        bytes_accessed=m_pad * K * x_it + n_pad * K * w_it + m_pad * n_pad * o_it,
    )

    out = pl.pallas_call(
        functools.partial(_linear_kernel, activation=activation,
                          has_bias=has_bias, has_ln=has_ln, ln_eps=ln_eps),
        out_shape=jax.ShapeDtypeStruct((m_pad, n_pad), out_dtype),
        grid=(n_pad // tn, m_pad // tm),
        in_specs=in_specs,
        out_specs=pl.BlockSpec((tm, tn), lambda j, i: (i, j)),
        compiler_params=pltpu.CompilerParams(
            dimension_semantics=("parallel", "arbitrary"),
            vmem_limit_bytes=vmem_limit,
        ),
        cost_estimate=cost,
    )(*args)

    if m_pad != M or n_pad != N:
        out = out[:M, :N]
    return out


# ----------------------------------------------------------------------------
# Self-attention kernel: one batch element per grid step, packed-QKV input
# (T, 3D), in-kernel mask from caption_lengths (SMEM scalar prefetch), output
# written lane-dense in (T, D) with heads concatenated on the lane axis.
# ----------------------------------------------------------------------------
def _attention_kernel(len_ref, qkv_ref, o_ref, *, n_head):
    T = qkv_ref.shape[1]
    D = qkv_ref.shape[2] // 3
    hd = D // n_head
    scale = 1.0 / math.sqrt(hd)

    b = pl.program_id(0)
    length = len_ref[b]
    col = lax.broadcasted_iota(jnp.int32, (T, T), 1)
    row = lax.broadcasted_iota(jnp.int32, (T, T), 0)
    neg = jnp.float32(-1e9)
    # Literal module semantics (HF attention_mask, nonzero == attend):
    # key position j attends iff length < j+1  <=>  j >= length.  Additively
    # combined with GPT-2's causal mask, exactly as HF does.
    key_bias = jnp.where(col >= length, jnp.float32(0.0), neg)
    causal_bias = jnp.where(col <= row, jnp.float32(0.0), neg)
    bias = key_bias + causal_bias                    # (T, T) f32

    qkv = qkv_ref[0]                                 # (T, 3D) bf16
    outs = []
    for h in range(n_head):                          # per-head: only one (T,T) tile live
        qh = qkv[:, h * hd:(h + 1) * hd]
        kh = qkv[:, D + h * hd:D + (h + 1) * hd]
        vh = qkv[:, 2 * D + h * hd:2 * D + (h + 1) * hd]
        s = lax.dot_general(qh, kh, (((1,), (1,)), ((), ())),
                            preferred_element_type=jnp.float32) * scale + bias
        s = s - jnp.max(s, axis=-1, keepdims=True)
        p = jnp.exp(s)
        p = p * pl.reciprocal(jnp.sum(p, axis=-1, keepdims=True), approx=True)
        outs.append(jnp.dot(p.astype(vh.dtype), vh,
                            preferred_element_type=jnp.float32))
    o_ref[0] = jnp.concatenate(outs, axis=-1).astype(o_ref.dtype)


def pallas_attention(qkv_b3d, caption_lengths, *, n_head):
    B, T, threeD = qkv_b3d.shape
    D = threeD // 3
    grid_spec = pltpu.PrefetchScalarGridSpec(
        num_scalar_prefetch=1,
        grid=(B,),
        in_specs=[pl.BlockSpec((1, T, threeD), lambda b, lens: (b, 0, 0))],
        out_specs=pl.BlockSpec((1, T, D), lambda b, lens: (b, 0, 0)),
    )
    return pl.pallas_call(
        functools.partial(_attention_kernel, n_head=n_head),
        out_shape=jax.ShapeDtypeStruct((B, T, D), qkv_b3d.dtype),
        grid_spec=grid_spec,
        compiler_params=pltpu.CompilerParams(dimension_semantics=("parallel",)),
    )(caption_lengths.astype(jnp.int32), qkv_b3d)


# ----------------------------------------------------------------------------
# Model glue (plain JAX only for cheap gathers/reshapes/residual adds; all
# matmul / LN / attention compute runs in the Pallas kernels above).
# ----------------------------------------------------------------------------
def visual_projection(params, cfg, visual_features):
    B, C, Hh, Ww = visual_features.shape
    S = Hh * Ww
    x = visual_features.reshape(B, C, S).transpose(0, 2, 1).reshape(B * S, C)
    out = pallas_linear(x, params["w_vp"], params["b_vp"], out_dtype=jnp.float32)
    return out.reshape(B, S, cfg["hidden"])


def gpt2_textual_head_forward(params, visual_features, caption_tokens,
                              caption_lengths, cache=None, *, cfg):
    D = cfg["hidden"]
    V = cfg["vocab_size"]
    nH = cfg["n_head"]

    # 1) visual projection (computed as in the module; not consumed by the blocks
    #    because the stock GPT-2 config has add_cross_attention=False).
    _projected_visual_features = visual_projection(params, cfg, visual_features)

    B, T = caption_tokens.shape

    # 2) token + position embeddings (gather left to XLA); f32 residual stream.
    h = params["wte"][caption_tokens].astype(jnp.float32) \
        + params["wpe"][:T][None, :, :].astype(jnp.float32)
    h = h.reshape(B * T, D)

    # 3) pre-LN GPT-2 blocks.  LN fused into the following linear; QKV kept
    #    packed (no head-major transposes between kernels).
    for layer in params["layers"]:
        qkv = pallas_linear(h, layer["w_attn"], layer["b_attn"],
                            ln_gamma=layer["ln1_g"], ln_beta=layer["ln1_b"],
                            out_dtype=jnp.bfloat16)
        attn = pallas_attention(qkv.reshape(B, T, 3 * D), caption_lengths,
                                n_head=nH)                       # (B, T, D) bf16
        h = h + pallas_linear(attn.reshape(B * T, D), layer["w_proj"],
                              layer["b_proj"], out_dtype=jnp.float32)
        m = pallas_linear(h, layer["w_fc"], layer["b_fc"],
                          ln_gamma=layer["ln2_g"], ln_beta=layer["ln2_b"],
                          activation="gelu", out_dtype=jnp.bfloat16)
        h = h + pallas_linear(m, layer["w_fc2"], layer["b_fc2"],
                              out_dtype=jnp.float32)

    # 4) final LN fused into the tied vocab head (no bias, weight == wte).  wte
    #    was padded once at init, so vocab tiles stream lane-dense with no
    #    per-call pad/transpose/up-cast; padded logit columns are sliced off.
    logits = pallas_linear(h, params["wte"], bias=None,
                           ln_gamma=params["lnf_g"], ln_beta=params["lnf_b"],
                           block_n=cfg["head_block_n"], out_dtype=jnp.float32)
    logits = logits[:, :V].reshape(B, T, V)
    return logits, cache


# ----------------------------------------------------------------------------
# Deterministic parameter init (GPT-2-style scales; small config).  Weights bf16,
# biases / LN params f32, tied wte padded once to a multiple of head_block_n.
# ----------------------------------------------------------------------------
def init_params(key, cfg):
    V, D, C = cfg["vocab_size"], cfg["hidden"], cfg["visual_channels"]
    n_layer, n_pos = cfg["n_layer"], cfg["n_positions"]
    V_pad = _round_up(V, cfg["head_block_n"])

    keys = iter(jax.random.split(key, 64))

    def nrm(shape, std=0.02, dtype=jnp.bfloat16):
        return (std * jax.random.normal(next(keys), shape, jnp.float32)).astype(dtype)

    wte = nrm((V, D))
    params = {
        "wte": jnp.pad(wte, ((0, V_pad - V), (0, 0))),   # padded ONCE, bf16
        "wpe": nrm((n_pos, D)),
        "w_vp": nrm((D, C)),
        "b_vp": nrm((D,), dtype=jnp.float32),
        "lnf_g": 1.0 + nrm((D,), dtype=jnp.float32),
        "lnf_b": nrm((D,), dtype=jnp.float32),
        "layers": [],
    }
    for _ in range(n_layer):
        params["layers"].append({
            "ln1_g": 1.0 + nrm((D,), dtype=jnp.float32),
            "ln1_b": nrm((D,), dtype=jnp.float32),
            "w_attn": nrm((3 * D, D)), "b_attn": nrm((3 * D,), dtype=jnp.float32),
            "w_proj": nrm((D, D)),     "b_proj": nrm((D,), dtype=jnp.float32),
            "ln2_g": 1.0 + nrm((D,), dtype=jnp.float32),
            "ln2_b": nrm((D,), dtype=jnp.float32),
            "w_fc": nrm((4 * D, D)),   "b_fc": nrm((4 * D,), dtype=jnp.float32),
            "w_fc2": nrm((D, 4 * D)),  "b_fc2": nrm((D,), dtype=jnp.float32),
        })
    return params


# ----------------------------------------------------------------------------
# Plain-JAX reference of the same math (mirrors the kernel's bf16 quantization
# points) for an internal consistency check.
# ----------------------------------------------------------------------------
def _ref_linear(x, w, b=None):
    xq = x.astype(jnp.bfloat16).astype(jnp.float32)       # kernel casts x to bf16
    y = jnp.einsum("mk,nk->mn", xq, w.astype(jnp.float32),
                   precision=lax.Precision.HIGHEST)
    return y if b is None else y + b.astype(jnp.float32)[None, :]


def _ref_layer_norm(x, g, b, eps=1e-5):
    mu = jnp.mean(x, axis=-1, keepdims=True)
    xc = x - mu
    var = jnp.mean(xc * xc, axis=-1, keepdims=True)
    return xc * lax.rsqrt(var + eps) * g[None, :] + b[None, :]


def _attention_bias(caption_lengths, T):
    """Additive HF-style bias: module's literal caption mask (attend where True)
    plus the GPT-2 causal mask."""
    pos = jnp.arange(T, dtype=jnp.int32)
    attend_key = caption_lengths[:, None] < (pos[None, :] + 1)        # literal module mask
    neg = jnp.float32(-1e9)
    key_bias = jnp.where(attend_key, jnp.float32(0.0), neg)[:, None, None, :]
    causal = jnp.tril(jnp.ones((T, T), dtype=jnp.bool_))
    causal_bias = jnp.where(causal, jnp.float32(0.0), neg)[None, None, :, :]
    return key_bias + causal_bias                                     # (B,1,T,T)


def reference_forward(params, cfg, visual_features, caption_tokens, caption_lengths):
    D, V, nH = cfg["hidden"], cfg["vocab_size"], cfg["n_head"]
    hd = D // nH
    B, T = caption_tokens.shape
    bias = _attention_bias(caption_lengths, T)

    wte = params["wte"][:V]
    h = wte[caption_tokens].astype(jnp.float32) \
        + params["wpe"][:T][None, :, :].astype(jnp.float32)
    h = h.reshape(B * T, D)
    for layer in params["layers"]:
        a_in = _ref_layer_norm(h, layer["ln1_g"], layer["ln1_b"])
        qkv = _ref_linear(a_in, layer["w_attn"], layer["b_attn"])
        qkv = qkv.astype(jnp.bfloat16).astype(jnp.float32)            # kernel stores qkv bf16
        qkv = qkv.reshape(B, T, 3, nH, hd)
        q = qkv[:, :, 0].transpose(0, 2, 1, 3)
        k = qkv[:, :, 1].transpose(0, 2, 1, 3)
        v = qkv[:, :, 2].transpose(0, 2, 1, 3)
        s = jnp.einsum("bhqd,bhkd->bhqk", q, k,
                       precision=lax.Precision.HIGHEST) / math.sqrt(hd)
        p = jax.nn.softmax(s + bias, axis=-1)
        a = jnp.einsum("bhqk,bhkd->bhqd", p, v, precision=lax.Precision.HIGHEST)
        a = a.transpose(0, 2, 1, 3).reshape(B * T, D)
        h = h + _ref_linear(a, layer["w_proj"], layer["b_proj"])
        m_in = _ref_layer_norm(h, layer["ln2_g"], layer["ln2_b"])
        m = jax.nn.gelu(_ref_linear(m_in, layer["w_fc"], layer["b_fc"]),
                        approximate=True)
        h = h + _ref_linear(m, layer["w_fc2"], layer["b_fc2"])
    h = _ref_layer_norm(h, params["lnf_g"], params["lnf_b"])
    return _ref_linear(h, wte).reshape(B, T, V)


if __name__ == "__main__":
    cfg = dict(
        vocab_size=50257,        # real GPT-2 vocab -> the head kernel genuinely tiles V
        hidden=128,              # small stand-in for 768 (lane-dense)
        n_head=4,
        n_layer=2,
        n_positions=32,
        visual_channels=4,
        head_block_n=2048,       # vocab tile cap; shrunk automatically if VMEM-tight
    )
    B, C, Hh, Ww, T = 2, cfg["visual_channels"], 4, 4, 8

    key = jax.random.PRNGKey(0)
    k_param, k_vis, k_tok = jax.random.split(key, 3)
    params = init_params(k_param, cfg)
    visual_features = jax.random.normal(k_vis, (B, C, Hh, Ww), dtype=jnp.float32)
    caption_tokens = jax.random.randint(k_tok, (B, T), 0, cfg["vocab_size"],
                                        dtype=jnp.int32)
    caption_lengths = jnp.array([3, 6], dtype=jnp.int32)

    fwd = jax.jit(functools.partial(gpt2_textual_head_forward, cfg=cfg))
    logits, cache = fwd(params, visual_features, caption_tokens, caption_lengths)
    logits = jax.block_until_ready(logits)

    # Internal consistency check vs. a plain-JAX reference of the same math.
    ref_logits = reference_forward(params, cfg, visual_features, caption_tokens,
                                   caption_lengths)
    assert logits.shape == (B, T, cfg["vocab_size"])
    assert cache is None
    assert bool(jnp.all(jnp.isfinite(logits)))
    assert float(jnp.max(jnp.abs(logits - ref_logits))) < 3e-2

    # Exercise + check the visual-projection kernel explicitly (its output is not
    # consumed inside the forward because the stock GPT-2 config ignores
    # encoder_hidden_states, so jit dead-code-eliminates it there).
    proj = jax.block_until_ready(visual_projection(params, cfg, visual_features))
    S = Hh * Ww
    vis2d = visual_features.reshape(B, C, S).transpose(0, 2, 1).reshape(B * S, C)
    ref_proj = _ref_linear(vis2d, params["w_vp"], params["b_vp"]).reshape(
        B, S, cfg["hidden"])
    assert float(jnp.max(jnp.abs(proj - ref_proj))) < 3e-2

    print("KERNEL_OK")
</pallas_src>

<mosaic_0001>
module attributes {stable_mosaic.version = 11 : i64} {
  func.func @_linear_kernel(%arg0: i32, %arg1: i32, %arg2: memref<16x128xf32, #tpu.memory_space<vmem>>, %arg3: memref<384x128xbf16, #tpu.memory_space<vmem>>, %arg4: memref<1x384xf32, #tpu.memory_space<vmem>>, %arg5: memref<1x128xf32, #tpu.memory_space<vmem>>, %arg6: memref<1x128xf32, #tpu.memory_space<vmem>>, %arg7: memref<16x384xbf16, #tpu.memory_space<vmem>>) attributes {dimension_semantics = [#tpu.dimension_semantics<parallel>, #tpu.dimension_semantics<arbitrary>], iteration_bounds = array<i64: 1, 1>, scalar_prefetch = 0 : i64, scratch_operands = 0 : i64, tpu.core_type = #tpu.core_type<tc>, window_params = [{transform_indices = @transform_0, window_bounds = array<i64: 16, 128>}, {transform_indices = @transform_1, window_bounds = array<i64: 384, 128>}, {transform_indices = @transform_2, window_bounds = array<i64: 1, 384>}, {pipeline_mode = #tpu.pipeline_mode<synchronous>, transform_indices = @transform_3, window_bounds = array<i64: 1, 128>}, {pipeline_mode = #tpu.pipeline_mode<synchronous>, transform_indices = @transform_4, window_bounds = array<i64: 1, 128>}, {transform_indices = @transform_5, window_bounds = array<i64: 16, 384>}]} {
    %c0 = arith.constant 0 : index
    %c0_0 = arith.constant 0 : index
    %0 = vector.load %arg2[%c0, %c0_0] : memref<16x128xf32, #tpu.memory_space<vmem>>, vector<16x128xf32>
    %cst = arith.constant dense<0.000000e+00> : vector<16xf32>
    %1 = vector.multi_reduction <add>, %0, %cst [1] : vector<16x128xf32> to vector<16xf32>
    %2 = vector.shape_cast %1 : vector<16xf32> to vector<16x1xf32>
    %cst_1 = arith.constant 1.280000e+02 : f32
    %3 = vector.broadcast %cst_1 : f32 to vector<16x1xf32>
    %4 = arith.divf %2, %3 : vector<16x1xf32>
    %5 = vector.broadcast %4 : vector<16x1xf32> to vector<16x128xf32>
    %6 = arith.subf %0, %5 : vector<16x128xf32>
    %7 = arith.mulf %6, %6 : vector<16x128xf32>
    %cst_2 = arith.constant dense<0.000000e+00> : vector<16xf32>
    %8 = vector.multi_reduction <add>, %7, %cst_2 [1] : vector<16x128xf32> to vector<16xf32>
    %9 = vector.shape_cast %8 : vector<16xf32> to vector<16x1xf32>
    %cst_3 = arith.constant 1.280000e+02 : f32
    %10 = vector.broadcast %cst_3 : f32 to vector<16x1xf32>
    %11 = arith.divf %9, %10 : vector<16x1xf32>
    %cst_4 = arith.constant 9.99999974E-6 : f32
    %12 = vector.broadcast %cst_4 : f32 to vector<16x1xf32>
    %13 = arith.addf %11, %12 : vector<16x1xf32>
    %14 = math.rsqrt %13 : vector<16x1xf32>
    %15 = vector.broadcast %14 : vector<16x1xf32> to vector<16x128xf32>
    %16 = arith.mulf %6, %15 : vector<16x128xf32>
    %c0_5 = arith.constant 0 : index
    %c0_6 = arith.constant 0 : index
    %17 = vector.load %arg5[%c0_5, %c0_6] : memref<1x128xf32, #tpu.memory_space<vmem>>, vector<1x128xf32>
    %18 = vector.broadcast %17 : vector<1x128xf32> to vector<16x128xf32>
    %19 = arith.mulf %16, %18 : vector<16x128xf32>
    %c0_7 = arith.constant 0 : index
    %c0_8 = arith.constant 0 : index
    %20 = vector.load %arg6[%c0_7, %c0_8] : memref<1x128xf32, #tpu.memory_space<vmem>>, vector<1x128xf32>
    %21 = vector.broadcast %20 : vector<1x128xf32> to vector<16x128xf32>
    %22 = arith.addf %19, %21 : vector<16x128xf32>
    %23 = arith.truncf %22 : vector<16x128xf32> to vector<16x128xbf16>
    %c0_9 = arith.constant 0 : index
    %c0_10 = arith.constant 0 : index
    %24 = vector.load %arg3[%c0_9, %c0_10] : memref<384x128xbf16, #tpu.memory_space<vmem>>, vector<384x128xbf16>
    %cst_11 = arith.constant dense<0.000000e+00> : vector<16x384xf32>
    %25 = tpu.matmul %23, %24, %cst_11 {dimension_numbers = #tpu.dot_dimension_numbers<[1], [1], [0], [0], [0, 0, 1, 0], [], []>} : vector<16x128xbf16>, vector<384x128xbf16>, vector<16x384xf32> -> vector<16x384xf32>
    %c0_12 = arith.constant 0 : index
    %c0_13 = arith.constant 0 : index
    %26 = vector.load %arg4[%c0_12, %c0_13] : memref<1x384xf32, #tpu.memory_space<vmem>>, vector<1x384xf32>
    %27 = vector.broadcast %26 : vector<1x384xf32> to vector<16x384xf32>
    %28 = arith.addf %25, %27 : vector<16x384xf32>
    %29 = arith.truncf %28 : vector<16x384xf32> to vector<16x384xbf16>
    %c0_14 = arith.constant 0 : index
    %c0_15 = arith.constant 0 : index
    %30 = vector.load %arg7[%c0_14, %c0_15] : memref<16x384xbf16, #tpu.memory_space<vmem>>, vector<16x384xbf16>
    tpu.vector_store %arg7[%c0_14, %c0_15], %29 {strides = array<i32>} : memref<16x384xbf16, #tpu.memory_space<vmem>>, vector<16x384xbf16>,
    return
  }
  func.func @transform_0(%arg0: i32, %arg1: i32) -> (i32, i32) {
    %c0_i32 = arith.constant 0 : i32
    %c0_i32_0 = arith.constant 0 : i32
    return %arg1, %c0_i32 : i32, i32
  }
  func.func @transform_1(%arg0: i32, %arg1: i32) -> (i32, i32) {
    %c0_i32 = arith.constant 0 : i32
    %c0_i32_0 = arith.constant 0 : i32
    return %arg0, %c0_i32 : i32, i32
  }
  func.func @transform_2(%arg0: i32, %arg1: i32) -> (i32, i32) {
    %c0_i32 = arith.constant 0 : i32
    %c0_i32_0 = arith.constant 0 : i32
    return %c0_i32, %arg0 : i32, i32
  }
  func.func @transform_3(%arg0: i32, %arg1: i32) -> (i32, i32) {
    %c0_i32 = arith.constant 0 : i32
    %c0_i32_0 = arith.constant 0 : i32
    %c0_i32_1 = arith.constant 0 : i32
    return %c0_i32, %c0_i32_0 : i32, i32
  }
  func.func @transform_4(%arg0: i32, %arg1: i32) -> (i32, i32) {
    %c0_i32 = arith.constant 0 : i32
    %c0_i32_0 = arith.constant 0 : i32
    %c0_i32_1 = arith.constant 0 : i32
    return %c0_i32, %c0_i32_0 : i32, i32
  }
  func.func @transform_5(%arg0: i32, %arg1: i32) -> (i32, i32) {
    %c0_i32 = arith.constant 0 : i32
    return %arg1, %arg0 : i32, i32
  }
}

module attributes {stable_mosaic.version = 11 : i64} {
  func.func @_attention_kernel(%arg0: i32, %arg1: memref<2xi32, #tpu.memory_space<smem>>, %arg2: memref<1x8x384xbf16, #tpu.memory_space<vmem>>, %arg3: memref<1x8x128xbf16, #tpu.memory_space<vmem>>) attributes {dimension_semantics = [#tpu.dimension_semantics<parallel>], iteration_bounds = array<i64: 2>, scalar_prefetch = 1 : i64, scratch_operands = 0 : i64, tpu.core_type = #tpu.core_type<tc>, window_params = [{transform_indices = @transform_0, window_bounds = array<i64: 1, 8, 384>}, {transform_indices = @transform_1, window_bounds = array<i64: 1, 8, 128>}]} {
    %0 = arith.index_cast %arg0 : i32 to index
    %1 = memref.load %arg1[%0] : memref<2xi32, #tpu.memory_space<smem>>
    %2 = tpu.iota {dimensions = array<i32: 1>} : vector<8x8xi32>
    %3 = tpu.iota {dimensions = array<i32: 0>} : vector<8x8xi32>
    %4 = vector.broadcast %1 : i32 to vector<8x8xi32>
    %5 = arith.cmpi sge, %2, %4 : vector<8x8xi32>
    %cst = arith.constant 0.000000e+00 : f32
    %cst_0 = arith.constant -1.000000e+09 : f32
    %6 = vector.broadcast %cst : f32 to vector<8x8xf32>
    %7 = vector.broadcast %cst_0 : f32 to vector<8x8xf32>
    %8 = arith.select %5, %6, %7 : vector<8x8xi1>, vector<8x8xf32>
    %9 = arith.cmpi sle, %2, %3 : vector<8x8xi32>
    %cst_1 = arith.constant 0.000000e+00 : f32
    %cst_2 = arith.constant -1.000000e+09 : f32
    %10 = vector.broadcast %cst_1 : f32 to vector<8x8xf32>
    %11 = vector.broadcast %cst_2 : f32 to vector<8x8xf32>
    %12 = arith.select %9, %10, %11 : vector<8x8xi1>, vector<8x8xf32>
    %13 = arith.addf %8, %12 : vector<8x8xf32>
    %c0 = arith.constant 0 : index
    %c0_3 = arith.constant 0 : index
    %c0_4 = arith.constant 0 : index
    %14 = vector.load %arg2[%c0, %c0_3, %c0_4] : memref<1x8x384xbf16, #tpu.memory_space<vmem>>, vector<1x8x384xbf16>
    %15 = vector.shape_cast %14 : vector<1x8x384xbf16> to vector<8x384xbf16>
    %16 = vector.extract_strided_slice %15 {offsets = [0, 0], sizes = [8, 32], strides = [1, 1]} : vector<8x384xbf16> to vector<8x32xbf16>
    %17 = vector.extract_strided_slice %15 {offsets = [0, 128], sizes = [8, 32], strides = [1, 1]} : vector<8x384xbf16> to vector<8x32xbf16>
    %18 = vector.extract_strided_slice %15 {offsets = [0, 256], sizes = [8, 32], strides = [1, 1]} : vector<8x384xbf16> to vector<8x32xbf16>
    %cst_5 = arith.constant dense<0.000000e+00> : vector<8x8xf32>
    %19 = tpu.matmul %16, %17, %cst_5 {dimension_numbers = #tpu.dot_dimension_numbers<[1], [1], [0], [0], [0, 0, 1, 0], [], []>} : vector<8x32xbf16>, vector<8x32xbf16>, vector<8x8xf32> -> vector<8x8xf32>
    %cst_6 = arith.constant 0.176776692 : f32
    %20 = vector.broadcast %cst_6 : f32 to vector<8x8xf32>
    %21 = arith.mulf %19, %20 : vector<8x8xf32>
    %22 = arith.addf %21, %13 : vector<8x8xf32>
    %cst_7 = arith.constant dense<0xFF800000> : vector<8xf32>
    %23 = vector.multi_reduction <maximumf>, %22, %cst_7 [1] : vector<8x8xf32> to vector<8xf32>
    %24 = vector.shape_cast %23 : vector<8xf32> to vector<8x1xf32>
    %25 = vector.broadcast %24 : vector<8x1xf32> to vector<8x8xf32>
    %26 = arith.subf %22, %25 : vector<8x8xf32>
    %27 = math.exp %26 : vector<8x8xf32>
    %cst_8 = arith.constant dense<0.000000e+00> : vector<8xf32>
    %28 = vector.multi_reduction <add>, %27, %cst_8 [1] : vector<8x8xf32> to vector<8xf32>
    %29 = vector.shape_cast %28 : vector<8xf32> to vector<8x1xf32>
    %30 = tpu.reciprocal %29 {approx = true} : vector<8x1xf32> -> vector<8x1xf32>
    %31 = vector.broadcast %30 : vector<8x1xf32> to vector<8x8xf32>
    %32 = arith.mulf %27, %31 : vector<8x8xf32>
    %33 = arith.truncf %32 : vector<8x8xf32> to vector<8x8xbf16>
    %cst_9 = arith.constant dense<0.000000e+00> : vector<8x32xf32>
    %34 = tpu.matmul %33, %18, %cst_9 {dimension_numbers = #tpu.dot_dimension_numbers<[1], [0], [0], [1], [0, 0, 1, 1], [], []>} : vector<8x8xbf16>, vector<8x32xbf16>, vector<8x32xf32> -> vector<8x32xf32>
    %35 = vector.extract_strided_slice %15 {offsets = [0, 32], sizes = [8, 32], strides = [1, 1]} : vector<8x384xbf16> to vector<8x32xbf16>
    %36 = vector.extract_strided_slice %15 {offsets = [0, 160], sizes = [8, 32], strides = [1, 1]} : vector<8x384xbf16> to vector<8x32xbf16>
    %37 = vector.extract_strided_slice %15 {offsets = [0, 288], sizes = [8, 32], strides = [1, 1]} : vector<8x384xbf16> to vector<8x32xbf16>
    %cst_10 = arith.constant dense<0.000000e+00> : vector<8x8xf32>
    %38 = tpu.matmul %35, %36, %cst_10 {dimension_numbers = #tpu.dot_dimension_numbers<[1], [1], [0], [0], [0, 0, 1, 0], [], []>} : vector<8x32xbf16>, vector<8x32xbf16>, vector<8x8xf32> -> vector<8x8xf32>
    %cst_11 = arith.constant 0.176776692 : f32
    %39 = vector.broadcast %cst_11 : f32 to vector<8x8xf32>
    %40 = arith.mulf %38, %39 : vector<8x8xf32>
    %41 = arith.addf %40, %13 : vector<8x8xf32>
    %cst_12 = arith.constant dense<0xFF800000> : vector<8xf32>
    %42 = vector.multi_reduction <maximumf>, %41, %cst_12 [1] : vector<8x8xf32> to vector<8xf32>
    %43 = vector.shape_cast %42 : vector<8xf32> to vector<8x1xf32>
    %44 = vector.broadcast %43 : vector<8x1xf32> to vector<8x8xf32>
    %45 = arith.subf %41, %44 : vector<8x8xf32>
    %46 = math.exp %45 : vector<8x8xf32>
    %cst_13 = arith.constant dense<0.000000e+00> : vector<8xf32>
    %47 = vector.multi_reduction <add>, %46, %cst_13 [1] : vector<8x8xf32> to vector<8xf32>
    %48 = vector.shape_cast %47 : vector<8xf32> to vector<8x1xf32>
    %49 = tpu.reciprocal %48 {approx = true} : vector<8x1xf32> -> vector<8x1xf32>
    %50 = vector.broadcast %49 : vector<8x1xf32> to vector<8x8xf32>
    %51 = arith.mulf %46, %50 : vector<8x8xf32>
    %52 = arith.truncf %51 : vector<8x8xf32> to vector<8x8xbf16>
    %cst_14 = arith.constant dense<0.000000e+00> : vector<8x32xf32>
    %53 = tpu.matmul %52, %37, %cst_14 {dimension_numbers = #tpu.dot_dimension_numbers<[1], [0], [0], [1], [0, 0, 1, 1], [], []>} : vector<8x8xbf16>, vector<8x32xbf16>, vector<8x32xf32> -> vector<8x32xf32>
    %54 = vector.extract_strided_slice %15 {offsets = [0, 64], sizes = [8, 32], strides = [1, 1]} : vector<8x384xbf16> to vector<8x32xbf16>
    %55 = vector.extract_strided_slice %15 {offsets = [0, 192], sizes = [8, 32], strides = [1, 1]} : vector<8x384xbf16> to vector<8x32xbf16>
    %56 = vector.extract_strided_slice %15 {offsets = [0, 320], sizes = [8, 32], strides = [1, 1]} : vector<8x384xbf16> to vector<8x32xbf16>
    %cst_15 = arith.constant dense<0.000000e+00> : vector<8x8xf32>
    %57 = tpu.matmul %54, %55, %cst_15 {dimension_numbers = #tpu.dot_dimension_numbers<[1], [1], [0], [0], [0, 0, 1, 0], [], []>} : vector<8x32xbf16>, vector<8x32xbf16>, vector<8x8xf32> -> vector<8x8xf32>
    %cst_16 = arith.constant 0.176776692 : f32
    %58 = vector.broadcast %cst_16 : f32 to vector<8x8xf32>
    %59 = arith.mulf %57, %58 : vector<8x8xf32>
    %60 = arith.addf %59, %13 : vector<8x8xf32>
    %cst_17 = arith.constant dense<0xFF800000> : vector<8xf32>
    %61 = vector.multi_reduction <maximumf>, %60, %cst_17 [1] : vector<8x8xf32> to vector<8xf32>
    %62 = vector.shape_cast %61 : vector<8xf32> to vector<8x1xf32>
    %63 = vector.broadcast %62 : vector<8x1xf32> to vector<8x8xf32>
    %64 = arith.subf %60, %63 : vector<8x8xf32>
    %65 = math.exp %64 : vector<8x8xf32>
    %cst_18 = arith.constant dense<0.000000e+00> : vector<8xf32>
    %66 = vector.multi_reduction <add>, %65, %cst_18 [1] : vector<8x8xf32> to vector<8xf32>
    %67 = vector.shape_cast %66 : vector<8xf32> to vector<8x1xf32>
    %68 = tpu.reciprocal %67 {approx = true} : vector<8x1xf32> -> vector<8x1xf32>
    %69 = vector.broadcast %68 : vector<8x1xf32> to vector<8x8xf32>
    %70 = arith.mulf %65, %69 : vector<8x8xf32>
    %71 = arith.truncf %70 : vector<8x8xf32> to vector<8x8xbf16>
    %cst_19 = arith.constant dense<0.000000e+00> : vector<8x32xf32>
    %72 = tpu.matmul %71, %56, %cst_19 {dimension_numbers = #tpu.dot_dimension_numbers<[1], [0], [0], [1], [0, 0, 1, 1], [], []>} : vector<8x8xbf16>, vector<8x32xbf16>, vector<8x32xf32> -> vector<8x32xf32>
    %73 = vector.extract_strided_slice %15 {offsets = [0, 96], sizes = [8, 32], strides = [1, 1]} : vector<8x384xbf16> to vector<8x32xbf16>
    %74 = vector.extract_strided_slice %15 {offsets = [0, 224], sizes = [8, 32], strides = [1, 1]} : vector<8x384xbf16> to vector<8x32xbf16>
    %75 = vector.extract_strided_slice %15 {offsets = [0, 352], sizes = [8, 32], strides = [1, 1]} : vector<8x384xbf16> to vector<8x32xbf16>
    %cst_20 = arith.constant dense<0.000000e+00> : vector<8x8xf32>
    %76 = tpu.matmul %73, %74, %cst_20 {dimension_numbers = #tpu.dot_dimension_numbers<[1], [1], [0], [0], [0, 0, 1, 0], [], []>} : vector<8x32xbf16>, vector<8x32xbf16>, vector<8x8xf32> -> vector<8x8xf32>
    %cst_21 = arith.constant 0.176776692 : f32
    %77 = vector.broadcast %cst_21 : f32 to vector<8x8xf32>
    %78 = arith.mulf %76, %77 : vector<8x8xf32>
    %79 = arith.addf %78, %13 : vector<8x8xf32>
    %cst_22 = arith.constant dense<0xFF800000> : vector<8xf32>
    %80 = vector.multi_reduction <maximumf>, %79, %cst_22 [1] : vector<8x8xf32> to vector<8xf32>
    %81 = vector.shape_cast %80 : vector<8xf32> to vector<8x1xf32>
    %82 = vector.broadcast %81 : vector<8x1xf32> to vector<8x8xf32>
    %83 = arith.subf %79, %82 : vector<8x8xf32>
    %84 = math.exp %83 : vector<8x8xf32>
    %cst_23 = arith.constant dense<0.000000e+00> : vector<8xf32>
    %85 = vector.multi_reduction <add>, %84, %cst_23 [1] : vector<8x8xf32> to vector<8xf32>
    %86 = vector.shape_cast %85 : vector<8xf32> to vector<8x1xf32>
    %87 = tpu.reciprocal %86 {approx = true} : vector<8x1xf32> -> vector<8x1xf32>
    %88 = vector.broadcast %87 : vector<8x1xf32> to vector<8x8xf32>
    %89 = arith.mulf %84, %88 : vector<8x8xf32>
    %90 = arith.truncf %89 : vector<8x8xf32> to vector<8x8xbf16>
    %cst_24 = arith.constant dense<0.000000e+00> : vector<8x32xf32>
    %91 = tpu.matmul %90, %75, %cst_24 {dimension_numbers = #tpu.dot_dimension_numbers<[1], [0], [0], [1], [0, 0, 1, 1], [], []>} : vector<8x8xbf16>, vector<8x32xbf16>, vector<8x32xf32> -> vector<8x32xf32>
    %92 = tpu.concatenate %34, %53, %72, %91 in 1 : vector<8x32xf32>, vector<8x32xf32>, vector<8x32xf32>, vector<8x32xf32> -> vector<8x128xf32>
    %93 = arith.truncf %92 : vector<8x128xf32> to vector<8x128xbf16>
    %c0_25 = arith.constant 0 : index
    %c0_26 = arith.constant 0 : index
    %c0_27 = arith.constant 0 : index
    %94 = vector.load %arg3[%c0_25, %c0_26, %c0_27] : memref<1x8x128xbf16, #tpu.memory_space<vmem>>, vector<1x8x128xbf16>
    %95 = vector.shape_cast %94 : vector<1x8x128xbf16> to vector<8x128xbf16>
    %96 = vector.shape_cast %93 : vector<8x128xbf16> to vector<1x8x128xbf16>
    tpu.vector_store %arg3[%c0_25, %c0_26, %c0_27], %96 {strides = array<i32>} : memref<1x8x128xbf16, #tpu.memory_space<vmem>>, vector<1x8x128xbf16>,
    return
  }
  func.func @transform_0(%arg0: i32, %arg1: memref<2xi32, #tpu.memory_space<smem>>) -> (i32, i32, i32) {
    %c0_i32 = arith.constant 0 : i32
    %c0_i32_0 = arith.constant 0 : i32
    %c0_i32_1 = arith.constant 0 : i32
    return %arg0, %c0_i32, %c0_i32_0 : i32, i32, i32
  }
  func.func @transform_1(%arg0: i32, %arg1: memref<2xi32, #tpu.memory_space<smem>>) -> (i32, i32, i32) {
    %c0_i32 = arith.constant 0 : i32
    %c0_i32_0 = arith.constant 0 : i32
    %c0_i32_1 = arith.constant 0 : i32
    return %arg0, %c0_i32, %c0_i32_0 : i32, i32, i32
  }
}

module attributes {stable_mosaic.version = 11 : i64} {
  func.func @_linear_kernel(%arg0: i32, %arg1: i32, %arg2: memref<16x128xbf16, #tpu.memory_space<vmem>>, %arg3: memref<128x128xbf16, #tpu.memory_space<vmem>>, %arg4: memref<1x128xf32, #tpu.memory_space<vmem>>, %arg5: memref<16x128xf32, #tpu.memory_space<vmem>>) attributes {dimension_semantics = [#tpu.dimension_semantics<parallel>, #tpu.dimension_semantics<arbitrary>], iteration_bounds = array<i64: 1, 1>, scalar_prefetch = 0 : i64, scratch_operands = 0 : i64, tpu.core_type = #tpu.core_type<tc>, window_params = [{transform_indices = @transform_0, window_bounds = array<i64: 16, 128>}, {transform_indices = @transform_1, window_bounds = array<i64: 128, 128>}, {transform_indices = @transform_2, window_bounds = array<i64: 1, 128>}, {transform_indices = @transform_3, window_bounds = array<i64: 16, 128>}]} {
    %c0 = arith.constant 0 : index
    %c0_0 = arith.constant 0 : index
    %0 = vector.load %arg2[%c0, %c0_0] : memref<16x128xbf16, #tpu.memory_space<vmem>>, vector<16x128xbf16>
    %c0_1 = arith.constant 0 : index
    %c0_2 = arith.constant 0 : index
    %1 = vector.load %arg3[%c0_1, %c0_2] : memref<128x128xbf16, #tpu.memory_space<vmem>>, vector<128x128xbf16>
    %cst = arith.constant dense<0.000000e+00> : vector<16x128xf32>
    %2 = tpu.matmul %0, %1, %cst {dimension_numbers = #tpu.dot_dimension_numbers<[1], [1], [0], [0], [0, 0, 1, 0], [], []>} : vector<16x128xbf16>, vector<128x128xbf16>, vector<16x128xf32> -> vector<16x128xf32>
    %c0_3 = arith.constant 0 : index
    %c0_4 = arith.constant 0 : index
    %3 = vector.load %arg4[%c0_3, %c0_4] : memref<1x128xf32, #tpu.memory_space<vmem>>, vector<1x128xf32>
    %4 = vector.broadcast %3 : vector<1x128xf32> to vector<16x128xf32>
    %5 = arith.addf %2, %4 : vector<16x128xf32>
    %c0_5 = arith.constant 0 : index
    %c0_6 = arith.constant 0 : index
    %6 = vector.load %arg5[%c0_5, %c0_6] : memref<16x128xf32, #tpu.memory_space<vmem>>, vector<16x128xf32>
    tpu.vector_store %arg5[%c0_5, %c0_6], %5 {strides = array<i32>} : memref<16x128xf32, #tpu.memory_space<vmem>>, vector<16x128xf32>,
    return
  }
  func.func @transform_0(%arg0: i32, %arg1: i32) -> (i32, i32) {
    %c0_i32 = arith.constant 0 : i32
    %c0_i32_0 = arith.constant 0 : i32
    return %arg1, %c0_i32 : i32, i32
  }
  func.func @transform_1(%arg0: i32, %arg1: i32) -> (i32, i32) {
    %c0_i32 = arith.constant 0 : i32
    %c0_i32_0 = arith.constant 0 : i32
    return %arg0, %c0_i32 : i32, i32
  }
  func.func @transform_2(%arg0: i32, %arg1: i32) -> (i32, i32) {
    %c0_i32 = arith.constant 0 : i32
    %c0_i32_0 = arith.constant 0 : i32
    return %c0_i32, %arg0 : i32, i32
  }
  func.func @transform_3(%arg0: i32, %arg1: i32) -> (i32, i32) {
    %c0_i32 = arith.constant 0 : i32
    return %arg1, %arg0 : i32, i32
  }
}

module attributes {stable_mosaic.version = 11 : i64} {
  func.func @_linear_kernel(%arg0: i32, %arg1: i32, %arg2: memref<16x128xf32, #tpu.memory_space<vmem>>, %arg3: memref<512x128xbf16, #tpu.memory_space<vmem>>, %arg4: memref<1x512xf32, #tpu.memory_space<vmem>>, %arg5: memref<1x128xf32, #tpu.memory_space<vmem>>, %arg6: memref<1x128xf32, #tpu.memory_space<vmem>>, %arg7: memref<16x512xbf16, #tpu.memory_space<vmem>>) attributes {dimension_semantics = [#tpu.dimension_semantics<parallel>, #tpu.dimension_semantics<arbitrary>], iteration_bounds = array<i64: 1, 1>, scalar_prefetch = 0 : i64, scratch_operands = 0 : i64, tpu.core_type = #tpu.core_type<tc>, window_params = [{transform_indices = @transform_0, window_bounds = array<i64: 16, 128>}, {transform_indices = @transform_1, window_bounds = array<i64: 512, 128>}, {transform_indices = @transform_2, window_bounds = array<i64: 1, 512>}, {pipeline_mode = #tpu.pipeline_mode<synchronous>, transform_indices = @transform_3, window_bounds = array<i64: 1, 128>}, {pipeline_mode = #tpu.pipeline_mode<synchronous>, transform_indices = @transform_4, window_bounds = array<i64: 1, 128>}, {transform_indices = @transform_5, window_bounds = array<i64: 16, 512>}]} {
    %c0 = arith.constant 0 : index
    %c0_0 = arith.constant 0 : index
    %0 = vector.load %arg2[%c0, %c0_0] : memref<16x128xf32, #tpu.memory_space<vmem>>, vector<16x128xf32>
    %cst = arith.constant dense<0.000000e+00> : vector<16xf32>
    %1 = vector.multi_reduction <add>, %0, %cst [1] : vector<16x128xf32> to vector<16xf32>
    %2 = vector.shape_cast %1 : vector<16xf32> to vector<16x1xf32>
    %cst_1 = arith.constant 1.280000e+02 : f32
    %3 = vector.broadcast %cst_1 : f32 to vector<16x1xf32>
    %4 = arith.divf %2, %3 : vector<16x1xf32>
    %5 = vector.broadcast %4 : vector<16x1xf32> to vector<16x128xf32>
    %6 = arith.subf %0, %5 : vector<16x128xf32>
    %7 = arith.mulf %6, %6 : vector<16x128xf32>
    %cst_2 = arith.constant dense<0.000000e+00> : vector<16xf32>
    %8 = vector.multi_reduction <add>, %7, %cst_2 [1] : vector<16x128xf32> to vector<16xf32>
    %9 = vector.shape_cast %8 : vector<16xf32> to vector<16x1xf32>
    %cst_3 = arith.constant 1.280000e+02 : f32
    %10 = vector.broadcast %cst_3 : f32 to vector<16x1xf32>
    %11 = arith.divf %9, %10 : vector<16x1xf32>
    %cst_4 = arith.constant 9.99999974E-6 : f32
    %12 = vector.broadcast %cst_4 : f32 to vector<16x1xf32>
    %13 = arith.addf %11, %12 : vector<16x1xf32>
    %14 = math.rsqrt %13 : vector<16x1xf32>
    %15 = vector.broadcast %14 : vector<16x1xf32> to vector<16x128xf32>
    %16 = arith.mulf %6, %15 : vector<16x128xf32>
    %c0_5 = arith.constant 0 : index
    %c0_6 = arith.constant 0 : index
    %17 = vector.load %arg5[%c0_5, %c0_6] : memref<1x128xf32, #tpu.memory_space<vmem>>, vector<1x128xf32>
    %18 = vector.broadcast %17 : vector<1x128xf32> to vector<16x128xf32>
    %19 = arith.mulf %16, %18 : vector<16x128xf32>
    %c0_7 = arith.constant 0 : index
    %c0_8 = arith.constant 0 : index
    %20 = vector.load %arg6[%c0_7, %c0_8] : memref<1x128xf32, #tpu.memory_space<vmem>>, vector<1x128xf32>
    %21 = vector.broadcast %20 : vector<1x128xf32> to vector<16x128xf32>
    %22 = arith.addf %19, %21 : vector<16x128xf32>
    %23 = arith.truncf %22 : vector<16x128xf32> to vector<16x128xbf16>
    %c0_9 = arith.constant 0 : index
    %c0_10 = arith.constant 0 : index
    %24 = vector.load %arg3[%c0_9, %c0_10] : memref<512x128xbf16, #tpu.memory_space<vmem>>, vector<512x128xbf16>
    %cst_11 = arith.constant dense<0.000000e+00> : vector<16x512xf32>
    %25 = tpu.matmul %23, %24, %cst_11 {dimension_numbers = #tpu.dot_dimension_numbers<[1], [1], [0], [0], [0, 0, 1, 0], [], []>} : vector<16x128xbf16>, vector<512x128xbf16>, vector<16x512xf32> -> vector<16x512xf32>
    %c0_12 = arith.constant 0 : index
    %c0_13 = arith.constant 0 : index
    %26 = vector.load %arg4[%c0_12, %c0_13] : memref<1x512xf32, #tpu.memory_space<vmem>>, vector<1x512xf32>
    %27 = vector.broadcast %26 : vector<1x512xf32> to vector<16x512xf32>
    %28 = arith.addf %25, %27 : vector<16x512xf32>
    %29 = arith.mulf %28, %28 : vector<16x512xf32>
    %30 = arith.mulf %28, %29 : vector<16x512xf32>
    %cst_14 = arith.constant 4.471500e-02 : f32
    %31 = vector.broadcast %cst_14 : f32 to vector<16x512xf32>
    %32 = arith.mulf %31, %30 : vector<16x512xf32>
    %33 = arith.addf %28, %32 : vector<16x512xf32>
    %cst_15 = arith.constant 0.797884583 : f32
    %34 = vector.broadcast %cst_15 : f32 to vector<16x512xf32>
    %35 = arith.mulf %34, %33 : vector<16x512xf32>
    %36 = math.tanh %35 : vector<16x512xf32>
    %cst_16 = arith.constant 1.000000e+00 : f32
    %37 = vector.broadcast %cst_16 : f32 to vector<16x512xf32>
    %38 = arith.addf %37, %36 : vector<16x512xf32>
    %cst_17 = arith.constant 5.000000e-01 : f32
    %39 = vector.broadcast %cst_17 : f32 to vector<16x512xf32>
    %40 = arith.mulf %39, %38 : vector<16x512xf32>
    %41 = arith.mulf %28, %40 : vector<16x512xf32>
    %42 = arith.truncf %41 : vector<16x512xf32> to vector<16x512xbf16>
    %c0_18 = arith.constant 0 : index
    %c0_19 = arith.constant 0 : index
    %43 = vector.load %arg7[%c0_18, %c0_19] : memref<16x512xbf16, #tpu.memory_space<vmem>>, vector<16x512xbf16>
    tpu.vector_store %arg7[%c0_18, %c0_19], %42 {strides = array<i32>} : memref<16x512xbf16, #tpu.memory_space<vmem>>, vector<16x512xbf16>,
    return
  }
  func.func @transform_0(%arg0: i32, %arg1: i32) -> (i32, i32) {
    %c0_i32 = arith.constant 0 : i32
    %c0_i32_0 = arith.constant 0 : i32
    return %arg1, %c0_i32 : i32, i32
  }
  func.func @transform_1(%arg0: i32, %arg1: i32) -> (i32, i32) {
    %c0_i32 = arith.constant 0 : i32
    %c0_i32_0 = arith.constant 0 : i32
    return %arg0, %c0_i32 : i32, i32
  }
  func.func @transform_2(%arg0: i32, %arg1: i32) -> (i32, i32) {
    %c0_i32 = arith.constant 0 : i32
    %c0_i32_0 = arith.constant 0 : i32
    return %c0_i32, %arg0 : i32, i32
  }
  func.func @transform_3(%arg0: i32, %arg1: i32) -> (i32, i32) {
    %c0_i32 = arith.constant 0 : i32
    %c0_i32_0 = arith.constant 0 : i32
    %c0_i32_1 = arith.constant 0 : i32
    return %c0_i32, %c0_i32_0 : i32, i32
  }
  func.func @transform_4(%arg0: i32, %arg1: i32) -> (i32, i32) {
    %c0_i32 = arith.constant 0 : i32
    %c0_i32_0 = arith.constant 0 : i32
    %c0_i32_1 = arith.constant 0 : i32
    return %c0_i32, %c0_i32_0 : i32, i32
  }
  func.func @transform_5(%arg0: i32, %arg1: i32) -> (i32, i32) {
    %c0_i32 = arith.constant 0 : i32
    return %arg1, %arg0 : i32, i32
  }
}

module attributes {stable_mosaic.version = 11 : i64} {
  func.func @_linear_kernel(%arg0: i32, %arg1: i32, %arg2: memref<16x512xbf16, #tpu.memory_space<vmem>>, %arg3: memref<128x512xbf16, #tpu.memory_space<vmem>>, %arg4: memref<1x128xf32, #tpu.memory_space<vmem>>, %arg5: memref<16x128xf32, #tpu.memory_space<vmem>>) attributes {dimension_semantics = [#tpu.dimension_semantics<parallel>, #tpu.dimension_semantics<arbitrary>], iteration_bounds = array<i64: 1, 1>, scalar_prefetch = 0 : i64, scratch_operands = 0 : i64, tpu.core_type = #tpu.core_type<tc>, window_params = [{transform_indices = @transform_0, window_bounds = array<i64: 16, 512>}, {transform_indices = @transform_1, window_bounds = array<i64: 128, 512>}, {transform_indices = @transform_2, window_bounds = array<i64: 1, 128>}, {transform_indices = @transform_3, window_bounds = array<i64: 16, 128>}]} {
    %c0 = arith.constant 0 : index
    %c0_0 = arith.constant 0 : index
    %0 = vector.load %arg2[%c0, %c0_0] : memref<16x512xbf16, #tpu.memory_space<vmem>>, vector<16x512xbf16>
    %c0_1 = arith.constant 0 : index
    %c0_2 = arith.constant 0 : index
    %1 = vector.load %arg3[%c0_1, %c0_2] : memref<128x512xbf16, #tpu.memory_space<vmem>>, vector<128x512xbf16>
    %cst = arith.constant dense<0.000000e+00> : vector<16x128xf32>
    %2 = tpu.matmul %0, %1, %cst {dimension_numbers = #tpu.dot_dimension_numbers<[1], [1], [0], [0], [0, 0, 1, 0], [], []>} : vector<16x512xbf16>, vector<128x512xbf16>, vector<16x128xf32> -> vector<16x128xf32>
    %c0_3 = arith.constant 0 : index
    %c0_4 = arith.constant 0 : index
    %3 = vector.load %arg4[%c0_3, %c0_4] : memref<1x128xf32, #tpu.memory_space<vmem>>, vector<1x128xf32>
    %4 = vector.broadcast %3 : vector<1x128xf32> to vector<16x128xf32>
    %5 = arith.addf %2, %4 : vector<16x128xf32>
    %c0_5 = arith.constant 0 : index
    %c0_6 = arith.constant 0 : index
    %6 = vector.load %arg5[%c0_5, %c0_6] : memref<16x128xf32, #tpu.memory_space<vmem>>, vector<16x128xf32>
    tpu.vector_store %arg5[%c0_5, %c0_6], %5 {strides = array<i32>} : memref<16x128xf32, #tpu.memory_space<vmem>>, vector<16x128xf32>,
    return
  }
  func.func @transform_0(%arg0: i32, %arg1: i32) -> (i32, i32) {
    %c0_i32 = arith.constant 0 : i32
    %c0_i32_0 = arith.constant 0 : i32
    return %arg1, %c0_i32 : i32, i32
  }
  func.func @transform_1(%arg0: i32, %arg1: i32) -> (i32, i32) {
    %c0_i32 = arith.constant 0 : i32
    %c0_i32_0 = arith.constant 0 : i32
    return %arg0, %c0_i32 : i32, i32
  }
  func.func @transform_2(%arg0: i32, %arg1: i32) -> (i32, i32) {
    %c0_i32 = arith.constant 0 : i32
    %c0_i32_0 = arith.constant 0 : i32
    return %c0_i32, %arg0 : i32, i32
  }
  func.func @transform_3(%arg0: i32, %arg1: i32) -> (i32, i32) {
    %c0_i32 = arith.constant 0 : i32
    return %arg1, %arg0 : i32, i32
  }
}

module attributes {stable_mosaic.version = 11 : i64} {
  func.func @_linear_kernel(%arg0: i32, %arg1: i32, %arg2: memref<16x128xf32, #tpu.memory_space<vmem>>, %arg3: memref<2048x128xbf16, #tpu.memory_space<vmem>>, %arg4: memref<1x128xf32, #tpu.memory_space<vmem>>, %arg5: memref<1x128xf32, #tpu.memory_space<vmem>>, %arg6: memref<16x2048xf32, #tpu.memory_space<vmem>>) attributes {dimension_semantics = [#tpu.dimension_semantics<parallel>, #tpu.dimension_semantics<arbitrary>], iteration_bounds = array<i64: 25, 1>, scalar_prefetch = 0 : i64, scratch_operands = 0 : i64, tpu.core_type = #tpu.core_type<tc>, window_params = [{transform_indices = @transform_0, window_bounds = array<i64: 16, 128>}, {transform_indices = @transform_1, window_bounds = array<i64: 2048, 128>}, {pipeline_mode = #tpu.pipeline_mode<synchronous>, transform_indices = @transform_2, window_bounds = array<i64: 1, 128>}, {pipeline_mode = #tpu.pipeline_mode<synchronous>, transform_indices = @transform_3, window_bounds = array<i64: 1, 128>}, {transform_indices = @transform_4, window_bounds = array<i64: 16, 2048>}]} {
    %c0 = arith.constant 0 : index
    %c0_0 = arith.constant 0 : index
    %0 = vector.load %arg2[%c0, %c0_0] : memref<16x128xf32, #tpu.memory_space<vmem>>, vector<16x128xf32>
    %cst = arith.constant dense<0.000000e+00> : vector<16xf32>
    %1 = vector.multi_reduction <add>, %0, %cst [1] : vector<16x128xf32> to vector<16xf32>
    %2 = vector.shape_cast %1 : vector<16xf32> to vector<16x1xf32>
    %cst_1 = arith.constant 1.280000e+02 : f32
    %3 = vector.broadcast %cst_1 : f32 to vector<16x1xf32>
    %4 = arith.divf %2, %3 : vector<16x1xf32>
    %5 = vector.broadcast %4 : vector<16x1xf32> to vector<16x128xf32>
    %6 = arith.subf %0, %5 : vector<16x128xf32>
    %7 = arith.mulf %6, %6 : vector<16x128xf32>
    %cst_2 = arith.constant dense<0.000000e+00> : vector<16xf32>
    %8 = vector.multi_reduction <add>, %7, %cst_2 [1] : vector<16x128xf32> to vector<16xf32>
    %9 = vector.shape_cast %8 : vector<16xf32> to vector<16x1xf32>
    %cst_3 = arith.constant 1.280000e+02 : f32
    %10 = vector.broadcast %cst_3 : f32 to vector<16x1xf32>
    %11 = arith.divf %9, %10 : vector<16x1xf32>
    %cst_4 = arith.constant 9.99999974E-6 : f32
    %12 = vector.broadcast %cst_4 : f32 to vector<16x1xf32>
    %13 = arith.addf %11, %12 : vector<16x1xf32>
    %14 = math.rsqrt %13 : vector<16x1xf32>
    %15 = vector.broadcast %14 : vector<16x1xf32> to vector<16x128xf32>
    %16 = arith.mulf %6, %15 : vector<16x128xf32>
    %c0_5 = arith.constant 0 : index
    %c0_6 = arith.constant 0 : index
    %17 = vector.load %arg4[%c0_5, %c0_6] : memref<1x128xf32, #tpu.memory_space<vmem>>, vector<1x128xf32>
    %18 = vector.broadcast %17 : vector<1x128xf32> to vector<16x128xf32>
    %19 = arith.mulf %16, %18 : vector<16x128xf32>
    %c0_7 = arith.constant 0 : index
    %c0_8 = arith.constant 0 : index
    %20 = vector.load %arg5[%c0_7, %c0_8] : memref<1x128xf32, #tpu.memory_space<vmem>>, vector<1x128xf32>
    %21 = vector.broadcast %20 : vector<1x128xf32> to vector<16x128xf32>
    %22 = arith.addf %19, %21 : vector<16x128xf32>
    %23 = arith.truncf %22 : vector<16x128xf32> to vector<16x128xbf16>
    %c0_9 = arith.constant 0 : index
    %c0_10 = arith.constant 0 : index
    %24 = vector.load %arg3[%c0_9, %c0_10] : memref<2048x128xbf16, #tpu.memory_space<vmem>>, vector<2048x128xbf16>
    %cst_11 = arith.constant dense<0.000000e+00> : vector<16x2048xf32>
    %25 = tpu.matmul %23, %24, %cst_11 {dimension_numbers = #tpu.dot_dimension_numbers<[1], [1], [0], [0], [0, 0, 1, 0], [], []>} : vector<16x128xbf16>, vector<2048x128xbf16>, vector<16x2048xf32> -> vector<16x2048xf32>
    %c0_12 = arith.constant 0 : index
    %c0_13 = arith.constant 0 : index
    %26 = vector.load %arg6[%c0_12, %c0_13] : memref<16x2048xf32, #tpu.memory_space<vmem>>, vector<16x2048xf32>
    tpu.vector_store %arg6[%c0_12, %c0_13], %25 {strides = array<i32>} : memref<16x2048xf32, #tpu.memory_space<vmem>>, vector<16x2048xf32>,
    return
  }
  func.func @transform_0(%arg0: i32, %arg1: i32) -> (i32, i32) {
    %c0_i32 = arith.constant 0 : i32
    %c0_i32_0 = arith.constant 0 : i32
    return %arg1, %c0_i32 : i32, i32
  }
  func.func @transform_1(%arg0: i32, %arg1: i32) -> (i32, i32) {
    %c0_i32 = arith.constant 0 : i32
    %c0_i32_0 = arith.constant 0 : i32
    return %arg0, %c0_i32 : i32, i32
  }
  func.func @transform_2(%arg0: i32, %arg1: i32) -> (i32, i32) {
    %c0_i32 = arith.constant 0 : i32
    %c0_i32_0 = arith.constant 0 : i32
    %c0_i32_1 = arith.constant 0 : i32
    return %c0_i32, %c0_i32_0 : i32, i32
  }
  func.func @transform_3(%arg0: i32, %arg1: i32) -> (i32, i32) {
    %c0_i32 = arith.constant 0 : i32
    %c0_i32_0 = arith.constant 0 : i32
    %c0_i32_1 = arith.constant 0 : i32
    return %c0_i32, %c0_i32_0 : i32, i32
  }
  func.func @transform_4(%arg0: i32, %arg1: i32) -> (i32, i32) {
    %c0_i32 = arith.constant 0 : i32
    return %arg1, %arg0 : i32, i32
  }
}

</mosaic_0001>

<llo_original>
// kernel: gpt2_textual_head_forward.13
$region0: #{gpt2_textual_head_forward.13}
  #allocation0 [shape = 'u32[]', space=smem, size = 0x4, offset = 0x4, fixed_abs, tag = 'smem constant byte address 0x4 - core index']
  #allocation1 [shape = 'u32[144,128]{1,0:T(1,128)}', space=vmem, size = 0x12000, scoped, tag = 'internal scratch']
  %s0 = inlined_call_operand.vmem [shape: bf16[16,128], index: 0, kind: input, shape index: {}]
  %s1 = inlined_call_operand.hbm [shape: bf16[128,128], index: 1, kind: input, shape index: {}]
  %s2 = inlined_call_operand.hbm [shape: f32[1,128], index: 2, kind: input, shape index: {}]
  %s3 = inlined_call_operand.vmem [shape: f32[16,128], index: 3, kind: output, shape index: {}]
  %s4 = sld [smem:[#allocation0]]
  $region30: #{gpt2_textual_head_forward.13} parent=0
    _
  %s6 = ssub.s32 1, %s4
  %s7 = scalar_select 0, %s6, %s4
  $region1: #{gpt2_textual_head_forward.13} parent=0
    #allocation2 [shape = 'u8[32768]{0}', space=vmem, size = 0x8000, scoped, tag = 'input window, operand 1, single buffered']
    #allocation3 [shape = 's32[1]{0}', space=sflag, size = 0x4, scoped, tag = 'scoped memory for gpt2_textual_head_forward.13']
    #allocation4 [shape = 'u8[512]{0}', space=vmem, size = 0x400, scoped, tag = 'input window, operand 2, single buffered']
    #allocation5 [shape = 's32[1]{0}', space=sflag, size = 0x4, scoped, tag = 'scoped memory for gpt2_textual_head_forward.13']
    %8 = vsyncpa [#allocation3], 0
    %9 = vsyncpa [#allocation5], 0
    // Predicated region
    $region2: #{gpt2_textual_head_forward.13} parent=1 // pred_check
      _
    $region3: #{gpt2_textual_head_forward.13} parent=1 // pred_check_branch
      %11 = sbr.rel (0) target = $region5
    $region4: #{gpt2_textual_head_forward.13} parent=1 // pred_region
      _
    $region5: #{gpt2_textual_head_forward.13} parent=1 // pred_fallthru
      _
    // Predicated region
    $region6: #{gpt2_textual_head_forward.13} parent=1 // pred_check
      _
    $region7: #{gpt2_textual_head_forward.13} parent=1 // pred_check_branch
      %13 = sbr.rel (0) target = $region9
    $region8: #{gpt2_textual_head_forward.13} parent=1 // pred_region
      %s15 = ssub.s32 1024, 1024
      %16 = vsyncadd [#allocation3], %s15
      %s17 = sshll.u32 [#allocation2], 4
      %s18 = int_to_ptr.vmem [resolvable:$true] %s17
      %23 = dma.hbm_to_vmem [thread:$0]  %s1, 1024, %s18, [#allocation3], 64, 64, 4
    $region9: #{gpt2_textual_head_forward.13} parent=1 // pred_fallthru
      _
    // Predicated region
    $region10: #{gpt2_textual_head_forward.13} parent=1 // pred_check
      _
    $region11: #{gpt2_textual_head_forward.13} parent=1 // pred_check_branch
      %25 = sbr.rel (0) target = $region13
    $region12: #{gpt2_textual_head_forward.13} parent=1 // pred_region
      %s27 = ssub.s32 16, 16
      %28 = vsyncadd [#allocation5], %s27
      %s30 = sshll.u32 [#allocation4], 4
      %s31 = int_to_ptr.vmem [resolvable:$true] %s30
      %33 = dma.hbm_to_vmem [thread:$0]  %s2, 16, %s31, [#allocation5]
    $region13: #{gpt2_textual_head_forward.13} parent=1 // pred_fallthru
      _
    // Predicated region
    $region14: #{gpt2_textual_head_forward.13} parent=1 // pred_check
      _
    $region15: #{gpt2_textual_head_forward.13} parent=1 // pred_check_branch
      %35 = sbr.rel (0) target = $region17
    $region16: #{gpt2_textual_head_forward.13} parent=1 // pred_region
      %36 = dma.done [#allocation3], 1024
    $region17: #{gpt2_textual_head_forward.13} parent=1 // pred_fallthru
      _
    // Predicated region
    $region18: #{gpt2_textual_head_forward.13} parent=1 // pred_check
      _
    $region19: #{gpt2_textual_head_forward.13} parent=1 // pred_check_branch
      %38 = sbr.rel (0) target = $region21
    $region20: #{gpt2_textual_head_forward.13} parent=1 // pred_region
      %39 = dma.done [#allocation5], 16
    $region21: #{gpt2_textual_head_forward.13} parent=1 // pred_fallthru
      _
    %v41 = vld [vmem:[%s0] sm:$0xf]
    %v42 = vld [vmem:[%s0 + $0x4] sm:$0xf]
    %v43 = vld [vmem:[#allocation2] sm:$0xf]
    %v44 = vld [vmem:[#allocation2 + $0x4] sm:$0xf]
    %v45 = vld [vmem:[#allocation2 + $0x8] sm:$0xf]
    %v46 = vld [vmem:[#allocation2 + $0xc] sm:$0xf]
    %v47 = vld [vmem:[#allocation2 + $0x10] sm:$0xf]
    %v48 = vld [vmem:[#allocation2 + $0x14] sm:$0xf]
    %v49 = vld [vmem:[#allocation2 + $0x18] sm:$0xf]
    %v50 = vld [vmem:[#allocation2 + $0x1c] sm:$0xf]
    %v51 = vld [vmem:[#allocation2 + $0x20] sm:$0xf]
    %v52 = vld [vmem:[#allocation2 + $0x24] sm:$0xf]
    %v53 = vld [vmem:[#allocation2 + $0x28] sm:$0xf]
    %v54 = vld [vmem:[#allocation2 + $0x2c] sm:$0xf]
    %v55 = vld [vmem:[#allocation2 + $0x30] sm:$0xf]
    %v56 = vld [vmem:[#allocation2 + $0x34] sm:$0xf]
    %v57 = vld [vmem:[#allocation2 + $0x38] sm:$0xf]
    %v58 = vld [vmem:[#allocation2 + $0x3c] sm:$0xf]
    %v59 = vld [vmem:[#allocation4] sm:$0x1]
    %v61 = vlaneseq
    %v62 = vshrl.u32 %v61, 7
    %v63 = vsub.s32 0, %v62
    %v64 = vrot.slane %v59, %v63
    %v68 = vunpack.c.l.b16 %v41
    %v69 = vunpack.c.l.b16 %v42
    %v70 = vpack.c.b16 %v69, %v68
    %v88 = vunpack.c.l.b16 %v43
    %v89 = vunpack.c.l.b16 %v44
    %v90 = vunpack.c.l.b16 %v45
    %v91 = vunpack.c.l.b16 %v46
    %v92 = vunpack.c.l.b16 %v47
    %v93 = vunpack.c.l.b16 %v48
    %v94 = vunpack.c.l.b16 %v49
    %v95 = vunpack.c.l.b16 %v50
    %v96 = vunpack.c.l.b16 %v51
    %v97 = vunpack.c.l.b16 %v52
    %v98 = vunpack.c.l.b16 %v53
    %v99 = vunpack.c.l.b16 %v54
    %v100 = vunpack.c.l.b16 %v55
    %v101 = vunpack.c.l.b16 %v56
    %v102 = vunpack.c.l.b16 %v57
    %v103 = vunpack.c.l.b16 %v58
    %v104 = vpack.c.b16 %v89, %v88
    %v105 = vpack.c.b16 %v91, %v90
    %v106 = vpack.c.b16 %v93, %v92
    %v107 = vpack.c.b16 %v95, %v94
    %v108 = vpack.c.b16 %v97, %v96
    %v109 = vpack.c.b16 %v99, %v98
    %v110 = vpack.c.b16 %v101, %v100
    %v111 = vpack.c.b16 %v103, %v102
    %120 = vmatprep.subr.bf16.mxu0 0
    %121 = vmatpush1.bf16.xpose.msra.mxu0 %v104
    %122 = vmatprep.subr.bf16.mxu0 0
    %123 = vmatpush1.bf16.xpose.msra.mxu0 %v105
    %124 = vmatprep.subr.bf16.mxu0 0
    %125 = vmatpush1.bf16.xpose.msra.mxu0 %v106
    %126 = vmatprep.subr.bf16.mxu0 0
    %127 = vmatpush1.bf16.xpose.msra.mxu0 %v107
    %128 = vmatprep.subr.bf16.mxu0 0
    %129 = vmatpush1.bf16.xpose.msra.mxu0 %v108
    %130 = vmatprep.subr.bf16.mxu0 0
    %131 = vmatpush1.bf16.xpose.msra.mxu0 %v109
    %132 = vmatprep.subr.bf16.mxu0 0
    %133 = vmatpush1.bf16.xpose.msra.mxu0 %v110
    %134 = vmatprep.subr.bf16.mxu0 0
    %135 = vmatpush1.bf16.xpose.msra.mxu0 %v111
    %136 = vmatprep.subr.bf16.mxu0 0
    %137 = vmatpush1.bf16.xpose.msra.mxu0 0
    %138 = vmatprep.subr.bf16.mxu0 0
    %139 = vmatpush1.bf16.xpose.msra.mxu0 0
    %140 = vmatprep.subr.bf16.mxu0 0
    %141 = vmatpush1.bf16.xpose.msra.mxu0 0
    %142 = vmatprep.subr.bf16.mxu0 0
    %143 = vmatpush1.bf16.xpose.msra.mxu0 0
    %144 = vmatprep.subr.bf16.mxu0 0
    %145 = vmatpush1.bf16.xpose.msra.mxu0 0
    %146 = vmatprep.subr.bf16.mxu0 0
    %147 = vmatpush1.bf16.xpose.msra.mxu0 0
    %148 = vmatprep.subr.bf16.mxu0 0
    %149 = vmatpush1.bf16.xpose.msra.mxu0 0
    %150 = vmatprep.subr.bf16.mxu0 0
    %151 = vmatpush1.bf16.xpose.msra.mxu0 0
    %152 = vmatprep.mubr.bf16.mxu0 0
    %153 = vmatmul.mubr.bf16.gmra.mrb[0].mxu0 %v70
    %v154 = vpop.f32.mrb[0].mxu0
    %v155 = vadd.f32 %v64, %v154
    %v156 = vpop.f32.mrb[0].mxu0
    %v157 = vpop.f32.mrb[0].mxu0
    %v158 = vadd.f32 %v64, %v157
    %v159 = vpop.f32.mrb[0].mxu0
    %160 = vdwg.mxu0
    %161 = vst [vmem:[%s3] sm:$0xff] %v155
    %162 = vst [vmem:[%s3 + $0x8] sm:$0xff] %v158
    // Predicated region
    $region22: #{gpt2_textual_head_forward.13} parent=1 // pred_check
      _
    $region23: #{gpt2_textual_head_forward.13} parent=1 // pred_check_branch
      %164 = sbr.rel (0) target = $region25
    $region24: #{gpt2_textual_head_forward.13} parent=1 // pred_region
      _
    $region25: #{gpt2_textual_head_forward.13} parent=1 // pred_fallthru
      _
    // Predicated region
    $region26: #{gpt2_textual_head_forward.13} parent=1 // pred_check
      _
    $region27: #{gpt2_textual_head_forward.13} parent=1 // pred_check_branch
      %166 = sbr.rel (0) target = $region29
    $region28: #{gpt2_textual_head_forward.13} parent=1 // pred_region
      _
    $region29: #{gpt2_textual_head_forward.13} parent=1 // pred_fallthru
      _
    %167 = vsyncpa [#allocation3], 1
    %168 = vsyncpa [#allocation5], 1

// kernel: gpt2_textual_head_forward.11
$region0: #{gpt2_textual_head_forward.11}
  #allocation0 [shape = 'u32[]', space=smem, size = 0x4, offset = 0x4, fixed_abs, tag = 'smem constant byte address 0x4 - core index']
  #allocation1 [shape = 'u32[144,128]{1,0:T(1,128)}', space=vmem, size = 0x12000, scoped, tag = 'internal scratch']
  %s0 = inlined_call_operand.vmem [shape: f32[16,128], index: 0, kind: input, shape index: {}]
  %s1 = inlined_call_operand.hbm [shape: bf16[384,128], index: 1, kind: input, shape index: {}]
  %s2 = inlined_call_operand.vmem [shape: f32[1,384], index: 2, kind: input, shape index: {}]
  %s3 = inlined_call_operand.hbm [shape: f32[1,128], index: 3, kind: input, shape index: {}]
  %s4 = inlined_call_operand.hbm [shape: f32[1,128], index: 4, kind: input, shape index: {}]
  %s5 = inlined_call_operand.vmem [shape: bf16[16,384], index: 5, kind: output, shape index: {}]
  %s6 = sld [smem:[#allocation0]]
  $region42: #{gpt2_textual_head_forward.11} parent=0
    _
  %s8 = ssub.s32 1, %s6
  %s9 = scalar_select 0, %s8, %s6
  $region1: #{gpt2_textual_head_forward.11} parent=0
    #allocation2 [shape = 'u8[98304]{0}', space=vmem, size = 0x18000, scoped, tag = 'input window, operand 1, single buffered']
    #allocation3 [shape = 's32[1]{0}', space=sflag, size = 0x4, scoped, tag = 'scoped memory for gpt2_textual_head_forward.11']
    #allocation4 [shape = 'u8[512]{0}', space=vmem, size = 0x400, scoped, tag = 'input window, operand 3, single buffered']
    #allocation5 [shape = 's32[1]{0}', space=sflag, size = 0x4, scoped, tag = 'scoped memory for gpt2_textual_head_forward.11']
    #allocation6 [shape = 'u8[512]{0}', space=vmem, size = 0x400, scoped, tag = 'input window, operand 4, single buffered']
    %10 = vsyncpa [#allocation3], 0
    %11 = vsyncpa [#allocation5], 0
    // Predicated region
    $region2: #{gpt2_textual_head_forward.11} parent=1 // pred_check
      _
    $region3: #{gpt2_textual_head_forward.11} parent=1 // pred_check_branch
      %13 = sbr.rel (0) target = $region5
    $region4: #{gpt2_textual_head_forward.11} parent=1 // pred_region
      _
    $region5: #{gpt2_textual_head_forward.11} parent=1 // pred_fallthru
      _
    // Predicated region
    $region6: #{gpt2_textual_head_forward.11} parent=1 // pred_check
      _
    $region7: #{gpt2_textual_head_forward.11} parent=1 // pred_check_branch
      %15 = sbr.rel (0) target = $region9
    $region8: #{gpt2_textual_head_forward.11} parent=1 // pred_region
      %s17 = ssub.s32 3072, 3072
      %18 = vsyncadd [#allocation3], %s17
      %s19 = sshll.u32 [#allocation2], 4
      %s20 = int_to_ptr.vmem [resolvable:$true] %s19
      %25 = dma.hbm_to_vmem [thread:$0]  %s1, 3072, %s20, [#allocation3], 64, 64, 4
    $region9: #{gpt2_textual_head_forward.11} parent=1 // pred_fallthru
      _
    // Predicated region
    $region10: #{gpt2_textual_head_forward.11} parent=1 // pred_check
      _
    $region11: #{gpt2_textual_head_forward.11} parent=1 // pred_check_branch
      %27 = sbr.rel (0) target = $region13
    $region12: #{gpt2_textual_head_forward.11} parent=1 // pred_region
      _
    $region13: #{gpt2_textual_head_forward.11} parent=1 // pred_fallthru
      _
    // Predicated region
    $region14: #{gpt2_textual_head_forward.11} parent=1 // pred_check
      _
    $region15: #{gpt2_textual_head_forward.11} parent=1 // pred_check_branch
      %29 = sbr.rel (0) target = $region17
    $region16: #{gpt2_textual_head_forward.11} parent=1 // pred_region
      %s31 = ssub.s32 16, 16
      %32 = vsyncadd [#allocation5], %s31
      %s34 = sshll.u32 [#allocation4], 4
      %s35 = int_to_ptr.vmem [resolvable:$true] %s34
      %37 = dma.hbm_to_vmem [thread:$0]  %s3, 16, %s35, [#allocation5]
    $region17: #{gpt2_textual_head_forward.11} parent=1 // pred_fallthru
      _
    // Predicated region
    $region18: #{gpt2_textual_head_forward.11} parent=1 // pred_check
      _
    $region19: #{gpt2_textual_head_forward.11} parent=1 // pred_check_branch
      %39 = sbr.rel (0) target = $region21
    $region20: #{gpt2_textual_head_forward.11} parent=1 // pred_region
      %s41 = ssub.s32 16, 16
      %42 = vsyncadd [#allocation5], %s41
      %s44 = sshll.u32 [#allocation6], 4
      %s45 = int_to_ptr.vmem [resolvable:$true] %s44
      %47 = dma.hbm_to_vmem [thread:$0]  %s4, 16, %s45, [#allocation5]
    $region21: #{gpt2_textual_head_forward.11} parent=1 // pred_fallthru
      _
    // Predicated region
    $region22: #{gpt2_textual_head_forward.11} parent=1 // pred_check
      _
    $region23: #{gpt2_textual_head_forward.11} parent=1 // pred_check_branch
      %49 = sbr.rel (0) target = $region25
    $region24: #{gpt2_textual_head_forward.11} parent=1 // pred_region
      %50 = dma.done [#allocation3], 3072
    $region25: #{gpt2_textual_head_forward.11} parent=1 // pred_fallthru
      _
    // Predicated region
    $region26: #{gpt2_textual_head_forward.11} parent=1 // pred_check
      _
    $region27: #{gpt2_textual_head_forward.11} parent=1 // pred_check_branch
      %52 = sbr.rel (0) target = $region29
    $region28: #{gpt2_textual_head_forward.11} parent=1 // pred_region
      %53 = dma.done [#allocation5], 16
    $region29: #{gpt2_textual_head_forward.11} parent=1 // pred_fallthru
      _
    // Predicated region
    $region30: #{gpt2_textual_head_forward.11} parent=1 // pred_check
      _
    $region31: #{gpt2_textual_head_forward.11} parent=1 // pred_check_branch
      %55 = sbr.rel (0) target = $region33
    $region32: #{gpt2_textual_head_forward.11} parent=1 // pred_region
      %56 = dma.done [#allocation5], 16
    $region33: #{gpt2_textual_head_forward.11} parent=1 // pred_fallthru
      _
    %v58 = vld [vmem:[%s0] sm:$0xff]
    %v59 = vld [vmem:[%s0 + $0x8] sm:$0xff]
    %60 = vadd.xlane.f32.xlu0 %v58
    %v61 = vpop.xlane.xlu0 %60
    %62 = vadd.xlane.f32.xlu0 %v59
    %v63 = vpop.xlane.xlu0 %62
    %v64 = vrcp.pop 128.0
    %v65 = vmul.f32 %v61, %v64
    %v66 = vmul.f32 %v63, %v64
    %v67 = vsub.f32 %v58, %v65
    %v68 = vsub.f32 %v59, %v66
    %v69 = vmul.f32 %v67, %v67
    %v70 = vmul.f32 %v68, %v68
    %71 = vadd.xlane.f32.xlu0 %v69
    %v72 = vpop.xlane.xlu0 %71
    %73 = vadd.xlane.f32.xlu0 %v70
    %v74 = vpop.xlane.xlu0 %73
    %v75 = vmul.f32 %v72, %v64
    %v76 = vmul.f32 %v74, %v64
    %v77 = vadd.f32 %v75, 1e-05
    %v78 = vadd.f32 %v76, 1e-05
    %v79 = vrsqrt.pop %v77
    %v80 = vrsqrt.pop %v78
    %v81 = vmul.f32 %v67, %v79
    %v82 = vmul.f32 %v68, %v80
    %v83 = vld [vmem:[#allocation4] sm:$0x1]
    %v85 = vlaneseq
    %v86 = vshrl.u32 %v85, 7
    %v87 = vsub.s32 0, %v86
    %v88 = vrot.slane %v83, %v87
    %v90 = vmul.f32 %v81, %v88
    %v91 = vmul.f32 %v82, %v88
    %v92 = vld [vmem:[#allocation6] sm:$0x1]
    %v94 = vlaneseq
    %v95 = vshrl.u32 %v94, 7
    %v96 = vsub.s32 0, %v95
    %v97 = vrot.slane %v92, %v96
    %v99 = vadd.f32 %v90, %v97
    %v100 = vadd.f32 %v91, %v97
    %v101 = vpack.c.bf16 %v100, %v99
    %v102 = vld [vmem:[#allocation2] sm:$0xf]
    %v103 = vld [vmem:[#allocation2 + $0x4] sm:$0xf]
    %v104 = vld [vmem:[#allocation2 + $0x8] sm:$0xf]
    %v105 = vld [vmem:[#allocation2 + $0xc] sm:$0xf]
    %v106 = vld [vmem:[#allocation2 + $0x10] sm:$0xf]
    %v107 = vld [vmem:[#allocation2 + $0x14] sm:$0xf]
    %v108 = vld [vmem:[#allocation2 + $0x18] sm:$0xf]
    %v109 = vld [vmem:[#allocation2 + $0x1c] sm:$0xf]
    %v110 = vld [vmem:[#allocation2 + $0x20] sm:$0xf]
    %v111 = vld [vmem:[#allocation2 + $0x24] sm:$0xf]
    %v112 = vld [vmem:[#allocation2 + $0x28] sm:$0xf]
    %v113 = vld [vmem:[#allocation2 + $0x2c] sm:$0xf]
    %v114 = vld [vmem:[#allocation2 + $0x30] sm:$0xf]
    %v115 = vld [vmem:[#allocation2 + $0x34] sm:$0xf]
    %v116 = vld [vmem:[#allocation2 + $0x38] sm:$0xf]
    %v117 = vld [vmem:[#allocation2 + $0x3c] sm:$0xf]
    %v118 = vld [vmem:[#allocation2 + $0x40] sm:$0xf]
    %v119 = vld [vmem:[#allocation2 + $0x44] sm:$0xf]
    %v120 = vld [vmem:[#allocation2 + $0x48] sm:$0xf]
    %v121 = vld [vmem:[#allocation2 + $0x4c] sm:$0xf]
    %v122 = vld [vmem:[#allocation2 + $0x50] sm:$0xf]
    %v123 = vld [vmem:[#allocation2 + $0x54] sm:$0xf]
    %v124 = vld [vmem:[#allocation2 + $0x58] sm:$0xf]
    %v125 = vld [vmem:[#allocation2 + $0x5c] sm:$0xf]
    %v126 = vld [vmem:[#allocation2 + $0x60] sm:$0xf]
    %v127 = vld [vmem:[#allocation2 + $0x64] sm:$0xf]
    %v128 = vld [vmem:[#allocation2 + $0x68] sm:$0xf]
    %v129 = vld [vmem:[#allocation2 + $0x6c] sm:$0xf]
    %v130 = vld [vmem:[#allocation2 + $0x70] sm:$0xf]
    %v131 = vld [vmem:[#allocation2 + $0x74] sm:$0xf]
    %v132 = vld [vmem:[#allocation2 + $0x78] sm:$0xf]
    %v133 = vld [vmem:[#allocation2 + $0x7c] sm:$0xf]
    %v134 = vld [vmem:[#allocation2 + $0x80] sm:$0xf]
    %v135 = vld [vmem:[#allocation2 + $0x84] sm:$0xf]
    %v136 = vld [vmem:[#allocation2 + $0x88] sm:$0xf]
    %v137 = vld [vmem:[#allocation2 + $0x8c] sm:$0xf]
    %v138 = vld [vmem:[#allocation2 + $0x90] sm:$0xf]
    %v139 = vld [vmem:[#allocation2 + $0x94] sm:$0xf]
    %v140 = vld [vmem:[#allocation2 + $0x98] sm:$0xf]
    %v141 = vld [vmem:[#allocation2 + $0x9c] sm:$0xf]
    %v142 = vld [vmem:[#allocation2 + $0xa0] sm:$0xf]
    %v143 = vld [vmem:[#allocation2 + $0xa4] sm:$0xf]
    %v144 = vld [vmem:[#allocation2 + $0xa8] sm:$0xf]
    %v145 = vld [vmem:[#allocation2 + $0xac] sm:$0xf]
    %v146 = vld [vmem:[#allocation2 + $0xb0] sm:$0xf]
    %v147 = vld [vmem:[#allocation2 + $0xb4] sm:$0xf]
    %v148 = vld [vmem:[#allocation2 + $0xb8] sm:$0xf]
    %v149 = vld [vmem:[#allocation2 + $0xbc] sm:$0xf]
    %v150 = vld [vmem:[%s2] sm:$0x7]
    %v152 = vlaneseq
    %v153 = vshrl.u32 %v152, 7
    %v154 = vsub.s32 0, %v153
    %v155 = vrot.slane %v150, %v154
    %v156 = vlaneseq
    %v157 = vshrl.u32 %v156, 7
    %v158 = vsub.s32 1, %v157
    %v159 = vrot.slane %v150, %v158
    %v160 = vlaneseq
    %v161 = vshrl.u32 %v160, 7
    %v162 = vsub.s32 2, %v161
    %v163 = vrot.slane %v150, %v162
    %v215 = vunpack.c.l.b16 %v102
    %v216 = vunpack.c.l.b16 %v103
    %v217 = vunpack.c.l.b16 %v104
    %v218 = vunpack.c.l.b16 %v105
    %v219 = vunpack.c.l.b16 %v106
    %v220 = vunpack.c.l.b16 %v107
    %v221 = vunpack.c.l.b16 %v108
    %v222 = vunpack.c.l.b16 %v109
    %v223 = vunpack.c.l.b16 %v110
    %v224 = vunpack.c.l.b16 %v111
    %v225 = vunpack.c.l.b16 %v112
    %v226 = vunpack.c.l.b16 %v113
    %v227 = vunpack.c.l.b16 %v114
    %v228 = vunpack.c.l.b16 %v115
    %v229 = vunpack.c.l.b16 %v116
    %v230 = vunpack.c.l.b16 %v117
    %v231 = vunpack.c.l.b16 %v118
    %v232 = vunpack.c.l.b16 %v119
    %v233 = vunpack.c.l.b16 %v120
    %v234 = vunpack.c.l.b16 %v121
    %v235 = vunpack.c.l.b16 %v122
    %v236 = vunpack.c.l.b16 %v123
    %v237 = vunpack.c.l.b16 %v124
    %v238 = vunpack.c.l.b16 %v125
    %v239 = vunpack.c.l.b16 %v126
    %v240 = vunpack.c.l.b16 %v127
    %v241 = vunpack.c.l.b16 %v128
    %v242 = vunpack.c.l.b16 %v129
    %v243 = vunpack.c.l.b16 %v130
    %v244 = vunpack.c.l.b16 %v131
    %v245 = vunpack.c.l.b16 %v132
    %v246 = vunpack.c.l.b16 %v133
    %v247 = vunpack.c.l.b16 %v134
    %v248 = vunpack.c.l.b16 %v135
    %v249 = vunpack.c.l.b16 %v136
    %v250 = vunpack.c.l.b16 %v137
    %v251 = vunpack.c.l.b16 %v138
    %v252 = vunpack.c.l.b16 %v139
    %v253 = vunpack.c.l.b16 %v140
    %v254 = vunpack.c.l.b16 %v141
    %v255 = vunpack.c.l.b16 %v142
    %v256 = vunpack.c.l.b16 %v143
    %v257 = vunpack.c.l.b16 %v144
    %v258 = vunpack.c.l.b16 %v145
    %v259 = vunpack.c.l.b16 %v146
    %v260 = vunpack.c.l.b16 %v147
    %v261 = vunpack.c.l.b16 %v148
    %v262 = vunpack.c.l.b16 %v149
    %v263 = vpack.c.b16 %v216, %v215
    %v264 = vpack.c.b16 %v218, %v217
    %v265 = vpack.c.b16 %v220, %v219
    %v266 = vpack.c.b16 %v222, %v221
    %v267 = vpack.c.b16 %v224, %v223
    %v268 = vpack.c.b16 %v226, %v225
    %v269 = vpack.c.b16 %v228, %v227
    %v270 = vpack.c.b16 %v230, %v229
    %v271 = vpack.c.b16 %v232, %v231
    %v272 = vpack.c.b16 %v234, %v233
    %v273 = vpack.c.b16 %v236, %v235
    %v274 = vpack.c.b16 %v238, %v237
    %v275 = vpack.c.b16 %v240, %v239
    %v276 = vpack.c.b16 %v242, %v241
    %v277 = vpack.c.b16 %v244, %v243
    %v278 = vpack.c.b16 %v246, %v245
    %v279 = vpack.c.b16 %v248, %v247
    %v280 = vpack.c.b16 %v250, %v249
    %v281 = vpack.c.b16 %v252, %v251
    %v282 = vpack.c.b16 %v254, %v253
    %v283 = vpack.c.b16 %v256, %v255
    %v284 = vpack.c.b16 %v258, %v257
    %v285 = vpack.c.b16 %v260, %v259
    %v286 = vpack.c.b16 %v262, %v261
    %311 = vmatprep.subr.bf16.mxu0 0
    %312 = vmatpush1.bf16.xpose.msra.mxu0 %v263
    %313 = vmatprep.subr.bf16.mxu0 0
    %314 = vmatpush1.bf16.xpose.msra.mxu0 %v264
    %315 = vmatprep.subr.bf16.mxu0 0
    %316 = vmatpush1.bf16.xpose.msra.mxu0 %v265
    %317 = vmatprep.subr.bf16.mxu0 0
    %318 = vmatpush1.bf16.xpose.msra.mxu0 %v266
    %319 = vmatprep.subr.bf16.mxu0 0
    %320 = vmatpush1.bf16.xpose.msra.mxu0 %v267
    %321 = vmatprep.subr.bf16.mxu0 0
    %322 = vmatpush1.bf16.xpose.msra.mxu0 %v268
    %323 = vmatprep.subr.bf16.mxu0 0
    %324 = vmatpush1.bf16.xpose.msra.mxu0 %v269
    %325 = vmatprep.subr.bf16.mxu0 0
    %326 = vmatpush1.bf16.xpose.msra.mxu0 %v270
    %327 = vmatprep.subr.bf16.mxu0 0
    %328 = vmatpush1.bf16.xpose.msra.mxu0 %v271
    %329 = vmatprep.subr.bf16.mxu0 0
    %330 = vmatpush1.bf16.xpose.msra.mxu0 %v272
    %331 = vmatprep.subr.bf16.mxu0 0
    %332 = vmatpush1.bf16.xpose.msra.mxu0 %v273
    %333 = vmatprep.subr.bf16.mxu0 0
    %334 = vmatpush1.bf16.xpose.msra.mxu0 %v274
    %335 = vmatprep.subr.bf16.mxu0 0
    %336 = vmatpush1.bf16.xpose.msra.mxu0 %v275
    %337 = vmatprep.subr.bf16.mxu0 0
    %338 = vmatpush1.bf16.xpose.msra.mxu0 %v276
    %339 = vmatprep.subr.bf16.mxu0 0
    %340 = vmatpush1.bf16.xpose.msra.mxu0 %v277
    %341 = vmatprep.subr.bf16.mxu0 0
    %342 = vmatpush1.bf16.xpose.msra.mxu0 %v278
    %343 = vmatprep.mubr.bf16.mxu0 0
    %344 = vmatmul.mubr.bf16.gmra.mrb[0].mxu0 %v101
    %v345 = vpop.f32.mrb[0].mxu0
    %v346 = vadd.f32 %v155, %v345
    %v347 = vpop.f32.mrb[0].mxu0
    %v348 = vadd.f32 %v159, %v347
    %v349 = vpop.f32.mrb[0].mxu0
    %v350 = vadd.f32 %v155, %v349
    %v351 = vpop.f32.mrb[0].mxu0
    %v352 = vadd.f32 %v159, %v351
    %353 = vdwg.mxu0
    %354 = vmatprep.subr.bf16.mxu0 0
    %355 = vmatpush1.bf16.xpose.msra.mxu0 %v279
    %356 = vmatprep.subr.bf16.mxu0 0
    %357 = vmatpush1.bf16.xpose.msra.mxu0 %v280
    %358 = vmatprep.subr.bf16.mxu0 0
    %359 = vmatpush1.bf16.xpose.msra.mxu0 %v281
    %360 = vmatprep.subr.bf16.mxu0 0
    %361 = vmatpush1.bf16.xpose.msra.mxu0 %v282
    %362 = vmatprep.subr.bf16.mxu0 0
    %363 = vmatpush1.bf16.xpose.msra.mxu0 %v283
    %364 = vmatprep.subr.bf16.mxu0 0
    %365 = vmatpush1.bf16.xpose.msra.mxu0 %v284
    %366 = vmatprep.subr.bf16.mxu0 0
    %367 = vmatpush1.bf16.xpose.msra.mxu0 %v285
    %368 = vmatprep.subr.bf16.mxu0 0
    %369 = vmatpush1.bf16.xpose.msra.mxu0 %v286
    %370 = vmatprep.subr.bf16.mxu0 0
    %371 = vmatpush1.bf16.xpose.msra.mxu0 0
    %372 = vmatprep.subr.bf16.mxu0 0
    %373 = vmatpush1.bf16.xpose.msra.mxu0 0
    %374 = vmatprep.subr.bf16.mxu0 0
    %375 = vmatpush1.bf16.xpose.msra.mxu0 0
    %376 = vmatprep.subr.bf16.mxu0 0
    %377 = vmatpush1.bf16.xpose.msra.mxu0 0
    %378 = vmatprep.subr.bf16.mxu0 0
    %379 = vmatpush1.bf16.xpose.msra.mxu0 0
    %380 = vmatprep.subr.bf16.mxu0 0
    %381 = vmatpush1.bf16.xpose.msra.mxu0 0
    %382 = vmatprep.subr.bf16.mxu0 0
    %383 = vmatpush1.bf16.xpose.msra.mxu0 0
    %384 = vmatprep.subr.bf16.mxu0 0
    %385 = vmatpush1.bf16.xpose.msra.mxu0 0
    %386 = vmatprep.mubr.bf16.mxu0 0
    %387 = vmatmul.mubr.bf16.gmra.mrb[0].mxu0 %v101
    %v388 = vpop.f32.mrb[0].mxu0
    %v389 = vadd.f32 %v163, %v388
    %v390 = vpop.f32.mrb[0].mxu0
    %v391 = vpop.f32.mrb[0].mxu0
    %v392 = vadd.f32 %v163, %v391
    %v393 = vpop.f32.mrb[0].mxu0
    %394 = vdwg.mxu0
    %v395 = vpack.c.bf16 %v350, %v346
    %v396 = vpack.c.bf16 %v352, %v348
    %v397 = vpack.c.bf16 %v392, %v389
    %v401 = vunpack.c.l.b16 %v395
    %v402 = vunpack.c.l.b16 %v396
    %v403 = vunpack.c.l.b16 %v397
    %v404 = vunpack.c.h.b16 %v395
    %v405 = vunpack.c.h.b16 %v396
    %v406 = vunpack.c.h.b16 %v397
    %v407 = vpack.c.b16 %v402, %v401
    %v408 = vpack.c.b16 %v403, %v403
    %v409 = vpack.c.b16 %v405, %v404
    %v410 = vpack.c.b16 %v406, %v406
    %415 = vst [vmem:[%s5] sm:$0xff] %v407
    %416 = vst [vmem:[%s5 + $0x8] sm:$0xf] %v408
    %417 = vst [vmem:[%s5 + $0xc] sm:$0xff] %v409
    %418 = vst [vmem:[%s5 + $0x14] sm:$0xf] %v410
    // Predicated region
    $region34: #{gpt2_textual_head_forward.11} parent=1 // pred_check
      _
    $region35: #{gpt2_textual_head_forward.11} parent=1 // pred_check_branch
      %420 = sbr.rel (0) target = $region37
    $region36: #{gpt2_textual_head_forward.11} parent=1 // pred_region
      _
    $region37: #{gpt2_textual_head_forward.11} parent=1 // pred_fallthru
      _
    // Predicated region
    $region38: #{gpt2_textual_head_forward.11} parent=1 // pred_check
      _
    $region39: #{gpt2_textual_head_forward.11} parent=1 // pred_check_branch
      %422 = sbr.rel (0) target = $region41
    $region40: #{gpt2_textual_head_forward.11} parent=1 // pred_region
      _
    $region41: #{gpt2_textual_head_forward.11} parent=1 // pred_fallthru
      _
    %423 = vsyncpa [#allocation3], 1
    %424 = vsyncpa [#allocation5], 1

// kernel: gpt2_textual_head_forward.12
$region0: #{gpt2_textual_head_forward.12}
  #allocation0 [shape = 'u32[]', space=smem, size = 0x4, offset = 0x4, fixed_abs, tag = 'smem constant byte address 0x4 - core index']
  #allocation1 [shape = 'u32[144,128]{1,0:T(1,128)}', space=vmem, size = 0x12000, scoped, tag = 'internal scratch']
  #allocation2 [shape = 's32[1]{0}', space=sflag, size = 0x4, scoped, tag = 'scoped memory for gpt2_textual_head_forward.12']
  #allocation3 [shape = 'u8[512]{0}', space=smem, size = 0x200, scoped, tag = 'prefetched SMEM operand 0']
  %s0 = inlined_call_operand.hbm [shape: s32[2], index: 0, kind: input, shape index: {}]
  %s1 = inlined_call_operand.vmem [shape: bf16[2,8,384], index: 1, kind: input, shape index: {}]
  %s2 = inlined_call_operand.vmem [shape: bf16[2,8,128], index: 2, kind: output, shape index: {}]
  %s3 = sld [smem:[#allocation0]]
  $region37: #{gpt2_textual_head_forward.12} parent=0
    _
  %s5 = ssub.s32 1, %s3
  %s6 = scalar_select 0, %s5, %s3
  %8 = dma.hbm_to_smem %s0, 16, [#allocation3], [#allocation2]
  %9 = dma.done [#allocation2], 16
  %10 = sfence
  loop: start=0, step=1, limit=4
  $region2: #{gpt2_textual_head_forward.12} parent=0 // loop_pre_header
    _
  $region3: #{gpt2_textual_head_forward.12} parent=0 // loop_header
    %s12 = sphi 0, %s16
    %p13 = scmp.ge.s32.totalorder %s12, 4
    %s22 = sphi 0, %s24
    %s25 = sphi 0, %s22
    %s26 = sphi 0, %s25
    %s42 = sphi 0, %s26
    %s48 = sphi 0, %s50
    %s51 = sphi 0, %s48
    %s52 = sphi 0, %s51
    %s68 = sphi 0, %s52
  $region4: #{gpt2_textual_head_forward.12} parent=0 // loop_header_branch
    %15 = sbr.rel (%p13) target = $region8
  $region5: #{gpt2_textual_head_forward.12} parent=0 // loop_body
    %s17 = ssub.s32 %s12, 1
    %s18 = ssub.s32 %s12, 2
    %s19 = sadd.s32 %s12, 1
    %s20 = ssub.s32 %s12, %s19
    %p21 = scmp.eq.s32.totalorder %s20, 0
    %s23 = sadd.s32 %s22, 1
    %s24 = scalar_select %p21, %s22, %s23
    %p27 = pneg %p21
    %p28 = scmp.eq.s32.totalorder %s12, 1
    %p29 = por %p27, %p28
    %p30 = scmp.ne.s32.totalorder %s22, %s25
    %p31 = scmp.eq.s32.totalorder %s12, 0
    %p32 = por %p30, %p31
    %p33 = scmp.ne.s32.totalorder %s22, %s25
    %p34 = scmp.eq.s32.totalorder %s17, 1
    %p35 = por %p33, %p34
    %p36 = scmp.ne.s32.totalorder %s25, %s26
    %p37 = scmp.eq.s32.totalorder %s17, 0
    %p38 = por %p36, %p37
    %p39 = scmp.ne.s32.totalorder %s25, %s26
    %p40 = scmp.eq.s32.totalorder %s18, 1
    %p41 = por %p39, %p40
    %p43 = scmp.ne.s32.totalorder %s26, %s42
    %p44 = scmp.eq.s32.totalorder %s18, 0
    %p45 = por %p43, %p44
    %s46 = ssub.s32 %s12, %s19
    %p47 = scmp.eq.s32.totalorder %s46, 0
    %s49 = sadd.s32 %s48, 1
    %s50 = scalar_select %p47, %s48, %s49
    %p53 = pneg %p47
    %p54 = scmp.eq.s32.totalorder %s12, 1
    %p55 = por %p53, %p54
    %p56 = scmp.ne.s32.totalorder %s48, %s51
    %p57 = scmp.eq.s32.totalorder %s12, 0
    %p58 = por %p56, %p57
    %p59 = scmp.ne.s32.totalorder %s48, %s51
    %p60 = scmp.eq.s32.totalorder %s17, 1
    %p61 = por %p59, %p60
    %p62 = scmp.ne.s32.totalorder %s51, %s52
    %p63 = scmp.eq.s32.totalorder %s17, 0
    %p64 = por %p62, %p63
    %p65 = scmp.ne.s32.totalorder %s51, %s52
    %p66 = scmp.eq.s32.totalorder %s18, 1
    %p67 = por %p65, %p66
    %p69 = scmp.ne.s32.totalorder %s52, %s68
    %p70 = scmp.eq.s32.totalorder %s18, 0
    %p71 = por %p69, %p70
    %p72 = scmp.le.s32.totalorder 1, %s12
    %p73 = scmp.lt.s32.totalorder %s12, 3
    %p74 = pnand %p72, %p73
    %p75 = pneg %p74
    // Predicated region
    $region9: #{gpt2_textual_head_forward.12} parent=5 // pred_check
      _
    $region10: #{gpt2_textual_head_forward.12} parent=5 // pred_check_branch
      %77 = sbr.rel (%p74) target = $region12
    $region11: #{gpt2_textual_head_forward.12} parent=5 // pred_region
      %s78 = ssub.s32 %s12, 1
    $region12: #{gpt2_textual_head_forward.12} parent=5 // pred_fallthru
      _
    %p79 = scmp.lt.s32.totalorder %s12, 2
    // Predicated region
    $region13: #{gpt2_textual_head_forward.12} parent=5 // pred_check
      %p80 = pneg %p79
    $region14: #{gpt2_textual_head_forward.12} parent=5 // pred_check_branch
      %82 = sbr.rel (%p80) target = $region16
    $region15: #{gpt2_textual_head_forward.12} parent=5 // pred_region
      // Predicated region
      $region17: #{gpt2_textual_head_forward.12} parent=15 // pred_check
        %p83 = pneg %p32
      $region18: #{gpt2_textual_head_forward.12} parent=15 // pred_check_branch
        %85 = sbr.rel (%p83) target = $region20
      $region19: #{gpt2_textual_head_forward.12} parent=15 // pred_region
        %p86 = scmp.lt.s32.totalorder %s12, 1
        %s87 = scalar_select %p86, %s12, 1
        %s88 = smul.addr %s87, 3
        %s89 = smul.addr %s88, 4
        %s90 = scalar_lea.vmem %s1, %s89
      $region20: #{gpt2_textual_head_forward.12} parent=15 // pred_fallthru
        _
    $region16: #{gpt2_textual_head_forward.12} parent=5 // pred_fallthru
      _
    %p91 = scmp.le.s32.totalorder 1, %s12
    %p92 = scmp.lt.s32.totalorder %s12, 3
    %p93 = pnand %p91, %p92
    %p94 = pneg %p93
    // Predicated region
    $region21: #{gpt2_textual_head_forward.12} parent=5 // pred_check
      _
    $region22: #{gpt2_textual_head_forward.12} parent=5 // pred_check_branch
      %96 = sbr.rel (%p93) target = $region24
    $region23: #{gpt2_textual_head_forward.12} parent=5 // pred_region
      %s97 = ssub.s32 %s12, 1
      %p98 = scmp.lt.s32.totalorder %s17, 1
      %s99 = scalar_select %p98, %s17, 1
      %s100 = smul.addr %s99, 3
      %s101 = smul.addr %s100, 4
      %s102 = scalar_lea.vmem %s1, %s101
      %p103 = pneg %p38
      %p104 = pneg %p35
      %p105 = pneg %p64
      %p106 = pneg %p61
      %p107 = scmp.lt.s32.totalorder %s17, 1
      %s108 = scalar_select %p107, %s17, 1
      %s109 = smul.addr %s108, 4
      %s110 = scalar_lea.vmem %s2, %s109
      %p111 = scmp.lt.s32.totalorder %s17, 1
      %s112 = scalar_select %p111, %s17, 1
      %s113 = smul.addr %s112, 3
      %s114 = smul.addr %s113, 4
      %s115 = scalar_lea.vmem %s1, %s114
      %p116 = scmp.lt.s32.totalorder %s17, 1
      %s117 = scalar_select %p116, %s17, 1
      %s118 = smul.addr %s117, 4
      %s119 = scalar_lea.vmem %s2, %s118
      %s121 = sld [smem:[#allocation3 + %s17]]
      %v122 = vlaneseq
      %v123 = vand.u32 %v122, 127
      %v124 = vlaneseq
      %v125 = vshrl.u32 %v124, 7
      %v126 = vstv %s121
      %vm127 = vcmp.ge.s32.totalorder %v123, %v126
      %v128 = vsel %vm127, 0.0, -1e+09
      %vm129 = vcmp.le.s32.totalorder %v123, %v125
      %v130 = vsel %vm129, 0.0, -1e+09
      %v131 = vadd.f32 %v128, %v130
      %v132 = vld [vmem:[%s115] sm:$0xff]
      %v133 = vld [vmem:[%s115 + $0x8] sm:$0xf]
      %v135 = vunpack.c.h.b16 %v132
      %v136 = vpack.c.b16 %v135, %v135
      %vm137 = vcmask 261120
      %v139 = vsel %vm137, %v132, 0
      %v142 = vsel %vm137, %v136, 0
      %144 = vmatprep.subr.bf16.mxu0 0
      %145 = vmatpush1.bf16.xpose.msra.mxu0 %v142
      %146 = vmatprep.subr.bf16.mxu0 0
      %147 = vmatpush1.bf16.xpose.msra.mxu0 0
      %148 = vmatprep.subr.bf16.mxu0 0
      %149 = vmatpush1.bf16.xpose.msra.mxu0 0
      %150 = vmatprep.subr.bf16.mxu0 0
      %151 = vmatpush1.bf16.xpose.msra.mxu0 0
      %152 = vmatprep.subr.bf16.mxu0 0
      %153 = vmatpush1.bf16.xpose.msra.mxu0 0
      %154 = vmatprep.subr.bf16.mxu0 0
      %155 = vmatpush1.bf16.xpose.msra.mxu0 0
      %156 = vmatprep.subr.bf16.mxu0 0
      %157 = vmatpush1.bf16.xpose.msra.mxu0 0
      %158 = vmatprep.subr.bf16.mxu0 0
      %159 = vmatpush1.bf16.xpose.msra.mxu0 0
      %160 = vmatprep.subr.bf16.mxu0 0
      %161 = vmatpush1.bf16.xpose.msra.mxu0 0
      %162 = vmatprep.subr.bf16.mxu0 0
      %163 = vmatpush1.bf16.xpose.msra.mxu0 0
      %164 = vmatprep.subr.bf16.mxu0 0
      %165 = vmatpush1.bf16.xpose.msra.mxu0 0
      %166 = vmatprep.subr.bf16.mxu0 0
      %167 = vmatpush1.bf16.xpose.msra.mxu0 0
      %168 = vmatprep.subr.bf16.mxu0 0
      %169 = vmatpush1.bf16.xpose.msra.mxu0 0
      %170 = vmatprep.subr.bf16.mxu0 0
      %171 = vmatpush1.bf16.xpose.msra.mxu0 0
      %172 = vmatprep.subr.bf16.mxu0 0
      %173 = vmatpush1.bf16.xpose.msra.mxu0 0
      %174 = vmatprep.subr.bf16.mxu0 0
      %175 = vmatpush1.bf16.xpose.msra.mxu0 0
      %176 = vmatprep.mubr.bf16.mxu0 0
      %177 = vmatmul.mubr.bf16.gmra.mrb[0].mxu0 %v139
      %v178 = vpop.f32.mrb[0].mxu0
      %v179 = vadd.f32 0.0, %v178
      %v180 = vpop.f32.mrb[0].mxu0
      %v181 = vpop.f32.mrb[0].mxu0
      %v182 = vpop.f32.mrb[0].mxu0
      %183 = vdwg.mxu0
      %v184 = vmul.f32 %v179, 0.17677669
      %v185 = vadd.f32 %v184, %v131
      %vm186 = vcmask 64512
      %v187 = vsel %vm186, %v185, -inf
      %188 = vmax.xlane.f32.xlu0 %v187
      %v189 = vpop.xlane.xlu0 %188
      %v190 = vsub.f32 %v185, %v189
      %v191 = vmul.f32 %v190, 1.442695
      %v192 = vpow.pop %v191
      %v193 = vsel %vm186, %v192, 0.0
      %194 = vadd.xlane.f32.xlu0 %v193
      %v195 = vpop.xlane.xlu0 %194
      %v196 = vrcp.pop %v195
      %v197 = vmul.f32 %v192, %v196
      %v198 = vpack.c.bf16 %v197, %v197
      %v200 = vsel %vm186, %v198, 0
      %vm202 = vcmask 1043456
      %v204 = vsel %vm202, %v133, 0
      %206 = vmatprep.subr.bf16.mxu0 0
      %207 = vmatpush1.bf16.msra.mxu0 %v204
      %208 = vmatprep.subr.bf16.mxu0 0
      %209 = vmatpush1.bf16.msra.mxu0 0
      %210 = vmatprep.subr.bf16.mxu0 0
      %211 = vmatpush1.bf16.msra.mxu0 0
      %212 = vmatprep.subr.bf16.mxu0 0
      %213 = vmatpush1.bf16.msra.mxu0 0
      %214 = vmatprep.subr.bf16.mxu0 0
      %215 = vmatpush1.bf16.msra.mxu0 0
      %216 = vmatprep.subr.bf16.mxu0 0
      %217 = vmatpush1.bf16.msra.mxu0 0
      %218 = vmatprep.subr.bf16.mxu0 0
      %219 = vmatpush1.bf16.msra.mxu0 0
      %220 = vmatprep.subr.bf16.mxu0 0
      %221 = vmatpush1.bf16.msra.mxu0 0
      %222 = vmatprep.subr.bf16.mxu0 0
      %223 = vmatpush1.bf16.msra.mxu0 0
      %224 = vmatprep.subr.bf16.mxu0 0
      %225 = vmatpush1.bf16.msra.mxu0 0
      %226 = vmatprep.subr.bf16.mxu0 0
      %227 = vmatpush1.bf16.msra.mxu0 0
      %228 = vmatprep.subr.bf16.mxu0 0
      %229 = vmatpush1.bf16.msra.mxu0 0
      %230 = vmatprep.subr.bf16.mxu0 0
      %231 = vmatpush1.bf16.msra.mxu0 0
      %232 = vmatprep.subr.bf16.mxu0 0
      %233 = vmatpush1.bf16.msra.mxu0 0
      %234 = vmatprep.subr.bf16.mxu0 0
      %235 = vmatpush1.bf16.msra.mxu0 0
      %236 = vmatprep.subr.bf16.mxu0 0
      %237 = vmatpush1.bf16.msra.mxu0 0
      %238 = vmatprep.mubr.bf16.mxu0 0
      %239 = vmatmul.mubr.bf16.gmra.mrb[0].mxu0 %v200
      %v240 = vpop.f32.mrb[0].mxu0
      %v241 = vadd.f32 0.0, %v240
      %v242 = vpop.f32.mrb[0].mxu0
      %v243 = vpop.f32.mrb[0].mxu0
      %v244 = vpop.f32.mrb[0].mxu0
      %245 = vdwg.mxu0
      %v246 = vunpack.c.l.b16 %v132
      %v247 = vpack.c.b16 %v246, %v246
      %248 = vrot.lane.b32.xlu0 %v247, 96
      %v249 = vpop.permute.xlu0 %248
      %250 = vrot.lane.b32.xlu0 %v136, 96
      %v251 = vpop.permute.xlu0 %250
      %v253 = vsel %vm137, %v249, 0
      %v256 = vsel %vm137, %v251, 0
      %258 = vmatprep.subr.bf16.mxu0 0
      %259 = vmatpush1.bf16.xpose.msra.mxu0 %v256
      %260 = vmatprep.subr.bf16.mxu0 0
      %261 = vmatpush1.bf16.xpose.msra.mxu0 0
      %262 = vmatprep.subr.bf16.mxu0 0
      %263 = vmatpush1.bf16.xpose.msra.mxu0 0
      %264 = vmatprep.subr.bf16.mxu0 0
      %265 = vmatpush1.bf16.xpose.msra.mxu0 0
      %266 = vmatprep.subr.bf16.mxu0 0
      %267 = vmatpush1.bf16.xpose.msra.mxu0 0
      %268 = vmatprep.subr.bf16.mxu0 0
      %269 = vmatpush1.bf16.xpose.msra.mxu0 0
      %270 = vmatprep.subr.bf16.mxu0 0
      %271 = vmatpush1.bf16.xpose.msra.mxu0 0
      %272 = vmatprep.subr.bf16.mxu0 0
      %273 = vmatpush1.bf16.xpose.msra.mxu0 0
      %274 = vmatprep.subr.bf16.mxu0 0
      %275 = vmatpush1.bf16.xpose.msra.mxu0 0
      %276 = vmatprep.subr.bf16.mxu0 0
      %277 = vmatpush1.bf16.xpose.msra.mxu0 0
      %278 = vmatprep.subr.bf16.mxu0 0
      %279 = vmatpush1.bf16.xpose.msra.mxu0 0
      %280 = vmatprep.subr.bf16.mxu0 0
      %281 = vmatpush1.bf16.xpose.msra.mxu0 0
      %282 = vmatprep.subr.bf16.mxu0 0
      %283 = vmatpush1.bf16.xpose.msra.mxu0 0
      %284 = vmatprep.subr.bf16.mxu0 0
      %285 = vmatpush1.bf16.xpose.msra.mxu0 0
      %286 = vmatprep.subr.bf16.mxu0 0
      %287 = vmatpush1.bf16.xpose.msra.mxu0 0
      %288 = vmatprep.subr.bf16.mxu0 0
      %289 = vmatpush1.bf16.xpose.msra.mxu0 0
      %290 = vmatprep.mubr.bf16.mxu0 0
      %291 = vmatmul.mubr.bf16.gmra.mrb[0].mxu0 %v253
      %v292 = vpop.f32.mrb[0].mxu0
      %v293 = vadd.f32 0.0, %v292
      %v294 = vpop.f32.mrb[0].mxu0
      %v295 = vpop.f32.mrb[0].mxu0
      %v296 = vpop.f32.mrb[0].mxu0
      %297 = vdwg.mxu0
      %v298 = vmul.f32 %v293, 0.17677669
      %v299 = vadd.f32 %v298, %v131
      %v300 = vsel %vm186, %v299, -inf
      %301 = vmax.xlane.f32.xlu0 %v300
      %v302 = vpop.xlane.xlu0 %301
      %v303 = vsub.f32 %v299, %v302
      %v304 = vmul.f32 %v303, 1.442695
      %v305 = vpow.pop %v304
      %v306 = vsel %vm186, %v305, 0.0
      %307 = vadd.xlane.f32.xlu0 %v306
      %v308 = vpop.xlane.xlu0 %307
      %v309 = vrcp.pop %v308
      %v310 = vmul.f32 %v305, %v309
      %v311 = vpack.c.bf16 %v310, %v310
      %v313 = vunpack.c.l.b16 %v133
      %v314 = vpack.c.b16 %v313, %v313
      %315 = vrot.lane.b32.xlu0 %v314, 96
      %v316 = vpop.permute.xlu0 %315
      %v318 = vsel %vm186, %v311, 0
      %v321 = vsel %vm202, %v316, 0
      %323 = vmatprep.subr.bf16.mxu0 0
      %324 = vmatpush1.bf16.msra.mxu0 %v321
      %325 = vmatprep.subr.bf16.mxu0 0
      %326 = vmatpush1.bf16.msra.mxu0 0
      %327 = vmatprep.subr.bf16.mxu0 0
      %328 = vmatpush1.bf16.msra.mxu0 0
      %329 = vmatprep.subr.bf16.mxu0 0
      %330 = vmatpush1.bf16.msra.mxu0 0
      %331 = vmatprep.subr.bf16.mxu0 0
      %332 = vmatpush1.bf16.msra.mxu0 0
      %333 = vmatprep.subr.bf16.mxu0 0
      %334 = vmatpush1.bf16.msra.mxu0 0
      %335 = vmatprep.subr.bf16.mxu0 0
      %336 = vmatpush1.bf16.msra.mxu0 0
      %337 = vmatprep.subr.bf16.mxu0 0
      %338 = vmatpush1.bf16.msra.mxu0 0
      %339 = vmatprep.subr.bf16.mxu0 0
      %340 = vmatpush1.bf16.msra.mxu0 0
      %341 = vmatprep.subr.bf16.mxu0 0
      %342 = vmatpush1.bf16.msra.mxu0 0
      %343 = vmatprep.subr.bf16.mxu0 0
      %344 = vmatpush1.bf16.msra.mxu0 0
      %345 = vmatprep.subr.bf16.mxu0 0
      %346 = vmatpush1.bf16.msra.mxu0 0
      %347 = vmatprep.subr.bf16.mxu0 0
      %348 = vmatpush1.bf16.msra.mxu0 0
      %349 = vmatprep.subr.bf16.mxu0 0
      %350 = vmatpush1.bf16.msra.mxu0 0
      %351 = vmatprep.subr.bf16.mxu0 0
      %352 = vmatpush1.bf16.msra.mxu0 0
      %353 = vmatprep.subr.bf16.mxu0 0
      %354 = vmatpush1.bf16.msra.mxu0 0
      %355 = vmatprep.mubr.bf16.mxu0 0
      %356 = vmatmul.mubr.bf16.gmra.mrb[0].mxu0 %v318
      %v357 = vpop.f32.mrb[0].mxu0
      %v358 = vadd.f32 0.0, %v357
      %v359 = vpop.f32.mrb[0].mxu0
      %v360 = vpop.f32.mrb[0].mxu0
      %v361 = vpop.f32.mrb[0].mxu0
      %362 = vdwg.mxu0
      %363 = vrot.lane.b32.xlu0 %v247, 64
      %v364 = vpop.permute.xlu0 %363
      %365 = vrot.lane.b32.xlu0 %v136, 64
      %v366 = vpop.permute.xlu0 %365
      %v368 = vsel %vm137, %v364, 0
      %v371 = vsel %vm137, %v366, 0
      %373 = vmatprep.subr.bf16.mxu0 0
      %374 = vmatpush1.bf16.xpose.msra.mxu0 %v371
      %375 = vmatprep.subr.bf16.mxu0 0
      %376 = vmatpush1.bf16.xpose.msra.mxu0 0
      %377 = vmatprep.subr.bf16.mxu0 0
      %378 = vmatpush1.bf16.xpose.msra.mxu0 0
      %379 = vmatprep.subr.bf16.mxu0 0
      %380 = vmatpush1.bf16.xpose.msra.mxu0 0
      %381 = vmatprep.subr.bf16.mxu0 0
      %382 = vmatpush1.bf16.xpose.msra.mxu0 0
      %383 = vmatprep.subr.bf16.mxu0 0
      %384 = vmatpush1.bf16.xpose.msra.mxu0 0
      %385 = vmatprep.subr.bf16.mxu0 0
      %386 = vmatpush1.bf16.xpose.msra.mxu0 0
      %387 = vmatprep.subr.bf16.mxu0 0
      %388 = vmatpush1.bf16.xpose.msra.mxu0 0
      %389 = vmatprep.subr.bf16.mxu0 0
      %390 = vmatpush1.bf16.xpose.msra.mxu0 0
      %391 = vmatprep.subr.bf16.mxu0 0
      %392 = vmatpush1.bf16.xpose.msra.mxu0 0
      %393 = vmatprep.subr.bf16.mxu0 0
      %394 = vmatpush1.bf16.xpose.msra.mxu0 0
      %395 = vmatprep.subr.bf16.mxu0 0
      %396 = vmatpush1.bf16.xpose.msra.mxu0 0
      %397 = vmatprep.subr.bf16.mxu0 0
      %398 = vmatpush1.bf16.xpose.msra.mxu0 0
      %399 = vmatprep.subr.bf16.mxu0 0
      %400 = vmatpush1.bf16.xpose.msra.mxu0 0
      %401 = vmatprep.subr.bf16.mxu0 0
      %402 = vmatpush1.bf16.xpose.msra.mxu0 0
      %403 = vmatprep.subr.bf16.mxu0 0
      %404 = vmatpush1.bf16.xpose.msra.mxu0 0
      %405 = vmatprep.mubr.bf16.mxu0 0
      %406 = vmatmul.mubr.bf16.gmra.mrb[0].mxu0 %v368
      %v407 = vpop.f32.mrb[0].mxu0
      %v408 = vadd.f32 0.0, %v407
      %v409 = vpop.f32.mrb[0].mxu0
      %v410 = vpop.f32.mrb[0].mxu0
      %v411 = vpop.f32.mrb[0].mxu0
      %412 = vdwg.mxu0
      %v413 = vmul.f32 %v408, 0.17677669
      %v414 = vadd.f32 %v413, %v131
      %v415 = vsel %vm186, %v414, -inf
      %416 = vmax.xlane.f32.xlu0 %v415
      %v417 = vpop.xlane.xlu0 %416
      %v418 = vsub.f32 %v414, %v417
      %v419 = vmul.f32 %v418, 1.442695
      %v420 = vpow.pop %v419
      %v421 = vsel %vm186, %v420, 0.0
      %422 = vadd.xlane.f32.xlu0 %v421
      %v423 = vpop.xlane.xlu0 %422
      %v424 = vrcp.pop %v423
      %v425 = vmul.f32 %v420, %v424
      %v426 = vpack.c.bf16 %v425, %v425
      %427 = vrot.lane.b32.xlu0 %v314, 64
      %v428 = vpop.permute.xlu0 %427
      %v430 = vsel %vm186, %v426, 0
      %v433 = vsel %vm202, %v428, 0
      %435 = vmatprep.subr.bf16.mxu0 0
      %436 = vmatpush1.bf16.msra.mxu0 %v433
      %437 = vmatprep.subr.bf16.mxu0 0
      %438 = vmatpush1.bf16.msra.mxu0 0
      %439 = vmatprep.subr.bf16.mxu0 0
      %440 = vmatpush1.bf16.msra.mxu0 0
      %441 = vmatprep.subr.bf16.mxu0 0
      %442 = vmatpush1.bf16.msra.mxu0 0
      %443 = vmatprep.subr.bf16.mxu0 0
      %444 = vmatpush1.bf16.msra.mxu0 0
      %445 = vmatprep.subr.bf16.mxu0 0
      %446 = vmatpush1.bf16.msra.mxu0 0
      %447 = vmatprep.subr.bf16.mxu0 0
      %448 = vmatpush1.bf16.msra.mxu0 0
      %449 = vmatprep.subr.bf16.mxu0 0
      %450 = vmatpush1.bf16.msra.mxu0 0
      %451 = vmatprep.subr.bf16.mxu0 0
      %452 = vmatpush1.bf16.msra.mxu0 0
      %453 = vmatprep.subr.bf16.mxu0 0
      %454 = vmatpush1.bf16.msra.mxu0 0
      %455 = vmatprep.subr.bf16.mxu0 0
      %456 = vmatpush1.bf16.msra.mxu0 0
      %457 = vmatprep.subr.bf16.mxu0 0
      %458 = vmatpush1.bf16.msra.mxu0 0
      %459 = vmatprep.subr.bf16.mxu0 0
      %460 = vmatpush1.bf16.msra.mxu0 0
      %461 = vmatprep.subr.bf16.mxu0 0
      %462 = vmatpush1.bf16.msra.mxu0 0
      %463 = vmatprep.subr.bf16.mxu0 0
      %464 = vmatpush1.bf16.msra.mxu0 0
      %465 = vmatprep.subr.bf16.mxu0 0
      %466 = vmatpush1.bf16.msra.mxu0 0
      %467 = vmatprep.mubr.bf16.mxu0 0
      %468 = vmatmul.mubr.bf16.gmra.mrb[0].mxu0 %v430
      %v469 = vpop.f32.mrb[0].mxu0
      %v470 = vadd.f32 0.0, %v469
      %v471 = vpop.f32.mrb[0].mxu0
      %v472 = vpop.f32.mrb[0].mxu0
      %v473 = vpop.f32.mrb[0].mxu0
      %474 = vdwg.mxu0
      %475 = vrot.lane.b32.xlu0 %v247, 32
      %v476 = vpop.permute.xlu0 %475
      %477 = vrot.lane.b32.xlu0 %v136, 32
      %v478 = vpop.permute.xlu0 %477
      %v480 = vsel %vm137, %v476, 0
      %v483 = vsel %vm137, %v478, 0
      %485 = vmatprep.subr.bf16.mxu0 0
      %486 = vmatpush1.bf16.xpose.msra.mxu0 %v483
      %487 = vmatprep.subr.bf16.mxu0 0
      %488 = vmatpush1.bf16.xpose.msra.mxu0 0
      %489 = vmatprep.subr.bf16.mxu0 0
      %490 = vmatpush1.bf16.xpose.msra.mxu0 0
      %491 = vmatprep.subr.bf16.mxu0 0
      %492 = vmatpush1.bf16.xpose.msra.mxu0 0
      %493 = vmatprep.subr.bf16.mxu0 0
      %494 = vmatpush1.bf16.xpose.msra.mxu0 0
      %495 = vmatprep.subr.bf16.mxu0 0
      %496 = vmatpush1.bf16.xpose.msra.mxu0 0
      %497 = vmatprep.subr.bf16.mxu0 0
      %498 = vmatpush1.bf16.xpose.msra.mxu0 0
      %499 = vmatprep.subr.bf16.mxu0 0
      %500 = vmatpush1.bf16.xpose.msra.mxu0 0
      %501 = vmatprep.subr.bf16.mxu0 0
      %502 = vmatpush1.bf16.xpose.msra.mxu0 0
      %503 = vmatprep.subr.bf16.mxu0 0
      %504 = vmatpush1.bf16.xpose.msra.mxu0 0
      %505 = vmatprep.subr.bf16.mxu0 0
      %506 = vmatpush1.bf16.xpose.msra.mxu0 0
      %507 = vmatprep.subr.bf16.mxu0 0
      %508 = vmatpush1.bf16.xpose.msra.mxu0 0
      %509 = vmatprep.subr.bf16.mxu0 0
      %510 = vmatpush1.bf16.xpose.msra.mxu0 0
      %511 = vmatprep.subr.bf16.mxu0 0
      %512 = vmatpush1.bf16.xpose.msra.mxu0 0
      %513 = vmatprep.subr.bf16.mxu0 0
      %514 = vmatpush1.bf16.xpose.msra.mxu0 0
      %515 = vmatprep.subr.bf16.mxu0 0
      %516 = vmatpush1.bf16.xpose.msra.mxu0 0
      %517 = vmatprep.mubr.bf16.mxu0 0
      %518 = vmatmul.mubr.bf16.gmra.mrb[0].mxu0 %v480
      %v519 = vpop.f32.mrb[0].mxu0
      %v520 = vadd.f32 0.0, %v519
      %v521 = vpop.f32.mrb[0].mxu0
      %v522 = vpop.f32.mrb[0].mxu0
      %v523 = vpop.f32.mrb[0].mxu0
      %524 = vdwg.mxu0
      %v525 = vmul.f32 %v520, 0.17677669
      %v526 = vadd.f32 %v525, %v131
      %v527 = vsel %vm186, %v526, -inf
      %528 = vmax.xlane.f32.xlu0 %v527
      %v529 = vpop.xlane.xlu0 %528
      %v530 = vsub.f32 %v526, %v529
      %v531 = vmul.f32 %v530, 1.442695
      %v532 = vpow.pop %v531
      %v533 = vsel %vm186, %v532, 0.0
      %534 = vadd.xlane.f32.xlu0 %v533
      %v535 = vpop.xlane.xlu0 %534
      %v536 = vrcp.pop %v535
      %v537 = vmul.f32 %v532, %v536
      %v538 = vpack.c.bf16 %v537, %v537
      %539 = vrot.lane.b32.xlu0 %v314, 32
      %v540 = vpop.permute.xlu0 %539
      %v542 = vsel %vm186, %v538, 0
      %v545 = vsel %vm202, %v540, 0
      %547 = vmatprep.subr.bf16.mxu0 0
      %548 = vmatpush1.bf16.msra.mxu0 %v545
      %549 = vmatprep.subr.bf16.mxu0 0
      %550 = vmatpush1.bf16.msra.mxu0 0
      %551 = vmatprep.subr.bf16.mxu0 0
      %552 = vmatpush1.bf16.msra.mxu0 0
      %553 = vmatprep.subr.bf16.mxu0 0
      %554 = vmatpush1.bf16.msra.mxu0 0
      %555 = vmatprep.subr.bf16.mxu0 0
      %556 = vmatpush1.bf16.msra.mxu0 0
      %557 = vmatprep.subr.bf16.mxu0 0
      %558 = vmatpush1.bf16.msra.mxu0 0
      %559 = vmatprep.subr.bf16.mxu0 0
      %560 = vmatpush1.bf16.msra.mxu0 0
      %561 = vmatprep.subr.bf16.mxu0 0
      %562 = vmatpush1.bf16.msra.mxu0 0
      %563 = vmatprep.subr.bf16.mxu0 0
      %564 = vmatpush1.bf16.msra.mxu0 0
      %565 = vmatprep.subr.bf16.mxu0 0
      %566 = vmatpush1.bf16.msra.mxu0 0
      %567 = vmatprep.subr.bf16.mxu0 0
      %568 = vmatpush1.bf16.msra.mxu0 0
      %569 = vmatprep.subr.bf16.mxu0 0
      %570 = vmatpush1.bf16.msra.mxu0 0
      %571 = vmatprep.subr.bf16.mxu0 0
      %572 = vmatpush1.bf16.msra.mxu0 0
      %573 = vmatprep.subr.bf16.mxu0 0
      %574 = vmatpush1.bf16.msra.mxu0 0
      %575 = vmatprep.subr.bf16.mxu0 0
      %576 = vmatpush1.bf16.msra.mxu0 0
      %577 = vmatprep.subr.bf16.mxu0 0
      %578 = vmatpush1.bf16.msra.mxu0 0
      %579 = vmatprep.mubr.bf16.mxu0 0
      %580 = vmatmul.mubr.bf16.gmra.mrb[0].mxu0 %v542
      %v581 = vpop.f32.mrb[0].mxu0
      %v582 = vadd.f32 0.0, %v581
      %v583 = vpop.f32.mrb[0].mxu0
      %v584 = vpop.f32.mrb[0].mxu0
      %v585 = vpop.f32.mrb[0].mxu0
      %586 = vdwg.mxu0
      %588 = vrot.lane.b32.xlu0 %v358, 32
      %v589 = vpop.permute.xlu0 %588
      %592 = vrot.lane.b32.xlu0 %v470, 64
      %v593 = vpop.permute.xlu0 %592
      %596 = vrot.lane.b32.xlu0 %v582, 96
      %v597 = vpop.permute.xlu0 %596
      %v599 = vsel %vm137, %v241, %v589
      %vm600 = vcmask 523264
      %v601 = vsel %vm600, %v599, %v593
      %vm602 = vcmask 785408
      %v603 = vsel %vm602, %v601, %v597
      %v604 = vpack.c.bf16 %v603, %v603
      %605 = vst [vmem:[%s119] sm:$0xf] %v604
      %p606 = scmp.lt.s32.totalorder %s17, 1
      %s607 = scalar_select %p606, %s17, 1
      %s608 = smul.addr %s607, 4
      %s609 = scalar_lea.vmem %s2, %s608
      // Predicated region
      $region25: #{gpt2_textual_head_forward.12} parent=23 // pred_check
        %p610 = pneg %p61
      $region26: #{gpt2_textual_head_forward.12} parent=23 // pred_check_branch
        %612 = sbr.rel (%p610) target = $region28
      $region27: #{gpt2_textual_head_forward.12} parent=23 // pred_region
        _
      $region28: #{gpt2_textual_head_forward.12} parent=23 // pred_fallthru
        _
    $region24: #{gpt2_textual_head_forward.12} parent=5 // pred_fallthru
      _
    %p613 = scmp.le.s32.totalorder 2, %s12
    // Predicated region
    $region29: #{gpt2_textual_head_forward.12} parent=5 // pred_check
      %p614 = pneg %p613
    $region30: #{gpt2_textual_head_forward.12} parent=5 // pred_check_branch
      %616 = sbr.rel (%p614) target = $region32
    $region31: #{gpt2_textual_head_forward.12} parent=5 // pred_region
      %s617 = ssub.s32 %s12, 2
      // Predicated region
      $region33: #{gpt2_textual_head_forward.12} parent=31 // pred_check
        %p618 = pneg %p67
      $region34: #{gpt2_textual_head_forward.12} parent=31 // pred_check_branch
        %620 = sbr.rel (%p618) target = $region36
      $region35: #{gpt2_textual_head_forward.12} parent=31 // pred_region
        %p621 = scmp.lt.s32.totalorder %s18, 1
        %s622 = scalar_select %p621, %s18, 1
        %s623 = smul.addr %s622, 4
        %s624 = scalar_lea.vmem %s2, %s623
      $region36: #{gpt2_textual_head_forward.12} parent=31 // pred_fallthru
        _
    $region32: #{gpt2_textual_head_forward.12} parent=5 // pred_fallthru
      _
  $region6: #{gpt2_textual_head_forward.12} parent=0 // loop_footer
    %s16 = sadd.s32 1, %s12
  $region7: #{gpt2_textual_head_forward.12} parent=0 // loop_footer_branch
    %11 = sbr.rel target = $region3
  $region8: #{gpt2_textual_head_forward.12} parent=0 // loop_exit
    _

// kernel: gpt2_textual_head_forward.15
$region0: #{gpt2_textual_head_forward.15}
  #allocation0 [shape = 'u32[]', space=smem, size = 0x4, offset = 0x4, fixed_abs, tag = 'smem constant byte address 0x4 - core index']
  #allocation1 [shape = 'u32[144,128]{1,0:T(1,128)}', space=vmem, size = 0x12000, scoped, tag = 'internal scratch']
  %s0 = inlined_call_operand.vmem [shape: bf16[16,512], index: 0, kind: input, shape index: {}]
  %s1 = inlined_call_operand.hbm [shape: bf16[128,512], index: 1, kind: input, shape index: {}]
  %s2 = inlined_call_operand.hbm [shape: f32[1,128], index: 2, kind: input, shape index: {}]
  %s3 = inlined_call_operand.vmem [shape: f32[16,128], index: 3, kind: output, shape index: {}]
  %s4 = sld [smem:[#allocation0]]
  $region30: #{gpt2_textual_head_forward.15} parent=0
    _
  %s6 = ssub.s32 1, %s4
  %s7 = scalar_select 0, %s6, %s4
  $region1: #{gpt2_textual_head_forward.15} parent=0
    #allocation2 [shape = 'u8[131072]{0}', space=vmem, size = 0x20000, scoped, tag = 'input window, operand 1, single buffered']
    #allocation3 [shape = 's32[1]{0}', space=sflag, size = 0x4, scoped, tag = 'scoped memory for gpt2_textual_head_forward.15']
    #allocation4 [shape = 'u8[512]{0}', space=vmem, size = 0x400, scoped, tag = 'input window, operand 2, single buffered']
    #allocation5 [shape = 's32[1]{0}', space=sflag, size = 0x4, scoped, tag = 'scoped memory for gpt2_textual_head_forward.15']
    %8 = vsyncpa [#allocation3], 0
    %9 = vsyncpa [#allocation5], 0
    // Predicated region
    $region2: #{gpt2_textual_head_forward.15} parent=1 // pred_check
      _
    $region3: #{gpt2_textual_head_forward.15} parent=1 // pred_check_branch
      %11 = sbr.rel (0) target = $region5
    $region4: #{gpt2_textual_head_forward.15} parent=1 // pred_region
      _
    $region5: #{gpt2_textual_head_forward.15} parent=1 // pred_fallthru
      _
    // Predicated region
    $region6: #{gpt2_textual_head_forward.15} parent=1 // pred_check
      _
    $region7: #{gpt2_textual_head_forward.15} parent=1 // pred_check_branch
      %13 = sbr.rel (0) target = $region9
    $region8: #{gpt2_textual_head_forward.15} parent=1 // pred_region
      %s15 = ssub.s32 4096, 4096
      %16 = vsyncadd [#allocation3], %s15
      %s17 = sshll.u32 [#allocation2], 4
      %s18 = int_to_ptr.vmem [resolvable:$true] %s17
      %23 = dma.hbm_to_vmem [thread:$0]  %s1, 4096, %s18, [#allocation3], 256, 256, 16
    $region9: #{gpt2_textual_head_forward.15} parent=1 // pred_fallthru
      _
    // Predicated region
    $region10: #{gpt2_textual_head_forward.15} parent=1 // pred_check
      _
    $region11: #{gpt2_textual_head_forward.15} parent=1 // pred_check_branch
      %25 = sbr.rel (0) target = $region13
    $region12: #{gpt2_textual_head_forward.15} parent=1 // pred_region
      %s27 = ssub.s32 16, 16
      %28 = vsyncadd [#allocation5], %s27
      %s30 = sshll.u32 [#allocation4], 4
      %s31 = int_to_ptr.vmem [resolvable:$true] %s30
      %33 = dma.hbm_to_vmem [thread:$0]  %s2, 16, %s31, [#allocation5]
    $region13: #{gpt2_textual_head_forward.15} parent=1 // pred_fallthru
      _
    // Predicated region
    $region14: #{gpt2_textual_head_forward.15} parent=1 // pred_check
      _
    $region15: #{gpt2_textual_head_forward.15} parent=1 // pred_check_branch
      %35 = sbr.rel (0) target = $region17
    $region16: #{gpt2_textual_head_forward.15} parent=1 // pred_region
      %36 = dma.done [#allocation3], 4096
    $region17: #{gpt2_textual_head_forward.15} parent=1 // pred_fallthru
      _
    // Predicated region
    $region18: #{gpt2_textual_head_forward.15} parent=1 // pred_check
      _
    $region19: #{gpt2_textual_head_forward.15} parent=1 // pred_check_branch
      %38 = sbr.rel (0) target = $region21
    $region20: #{gpt2_textual_head_forward.15} parent=1 // pred_region
      %39 = dma.done [#allocation5], 16
    $region21: #{gpt2_textual_head_forward.15} parent=1 // pred_fallthru
      _
    %v41 = vld [vmem:[%s0] sm:$0xff]
    %v42 = vld [vmem:[%s0 + $0x8] sm:$0xff]
    %v43 = vld [vmem:[%s0 + $0x10] sm:$0xff]
    %v44 = vld [vmem:[%s0 + $0x18] sm:$0xff]
    %v45 = vld [vmem:[#allocation2] sm:$0xff]
    %v46 = vld [vmem:[#allocation2 + $0x8] sm:$0xff]
    %v47 = vld [vmem:[#allocation2 + $0x10] sm:$0xff]
    %v48 = vld [vmem:[#allocation2 + $0x18] sm:$0xff]
    %v49 = vld [vmem:[#allocation2 + $0x20] sm:$0xff]
    %v50 = vld [vmem:[#allocation2 + $0x28] sm:$0xff]
    %v51 = vld [vmem:[#allocation2 + $0x30] sm:$0xff]
    %v52 = vld [vmem:[#allocation2 + $0x38] sm:$0xff]
    %v53 = vld [vmem:[#allocation2 + $0x40] sm:$0xff]
    %v54 = vld [vmem:[#allocation2 + $0x48] sm:$0xff]
    %v55 = vld [vmem:[#allocation2 + $0x50] sm:$0xff]
    %v56 = vld [vmem:[#allocation2 + $0x58] sm:$0xff]
    %v57 = vld [vmem:[#allocation2 + $0x60] sm:$0xff]
    %v58 = vld [vmem:[#allocation2 + $0x68] sm:$0xff]
    %v59 = vld [vmem:[#allocation2 + $0x70] sm:$0xff]
    %v60 = vld [vmem:[#allocation2 + $0x78] sm:$0xff]
    %v61 = vld [vmem:[#allocation2 + $0x80] sm:$0xff]
    %v62 = vld [vmem:[#allocation2 + $0x88] sm:$0xff]
    %v63 = vld [vmem:[#allocation2 + $0x90] sm:$0xff]
    %v64 = vld [vmem:[#allocation2 + $0x98] sm:$0xff]
    %v65 = vld [vmem:[#allocation2 + $0xa0] sm:$0xff]
    %v66 = vld [vmem:[#allocation2 + $0xa8] sm:$0xff]
    %v67 = vld [vmem:[#allocation2 + $0xb0] sm:$0xff]
    %v68 = vld [vmem:[#allocation2 + $0xb8] sm:$0xff]
    %v69 = vld [vmem:[#allocation2 + $0xc0] sm:$0xff]
    %v70 = vld [vmem:[#allocation2 + $0xc8] sm:$0xff]
    %v71 = vld [vmem:[#allocation2 + $0xd0] sm:$0xff]
    %v72 = vld [vmem:[#allocation2 + $0xd8] sm:$0xff]
    %v73 = vld [vmem:[#allocation2 + $0xe0] sm:$0xff]
    %v74 = vld [vmem:[#allocation2 + $0xe8] sm:$0xff]
    %v75 = vld [vmem:[#allocation2 + $0xf0] sm:$0xff]
    %v76 = vld [vmem:[#allocation2 + $0xf8] sm:$0xff]
    %v77 = vld [vmem:[#allocation4] sm:$0x1]
    %v79 = vlaneseq
    %v80 = vshrl.u32 %v79, 7
    %v81 = vsub.s32 0, %v80
    %v82 = vrot.slane %v77, %v81
    %v88 = vunpack.c.l.b16 %v41
    %v89 = vunpack.c.h.b16 %v41
    %v90 = vunpack.c.l.b16 %v42
    %v91 = vunpack.c.h.b16 %v42
    %v92 = vunpack.c.l.b16 %v43
    %v93 = vunpack.c.h.b16 %v43
    %v94 = vunpack.c.l.b16 %v44
    %v95 = vunpack.c.h.b16 %v44
    %v96 = vpack.c.b16 %v92, %v88
    %v97 = vpack.c.b16 %v93, %v89
    %v98 = vpack.c.b16 %v94, %v90
    %v99 = vpack.c.b16 %v95, %v91
    %v136 = vunpack.c.l.b16 %v45
    %v137 = vunpack.c.h.b16 %v45
    %v138 = vunpack.c.l.b16 %v46
    %v139 = vunpack.c.h.b16 %v46
    %v140 = vunpack.c.l.b16 %v47
    %v141 = vunpack.c.h.b16 %v47
    %v142 = vunpack.c.l.b16 %v48
    %v143 = vunpack.c.h.b16 %v48
    %v144 = vunpack.c.l.b16 %v49
    %v145 = vunpack.c.h.b16 %v49
    %v146 = vunpack.c.l.b16 %v50
    %v147 = vunpack.c.h.b16 %v50
    %v148 = vunpack.c.l.b16 %v51
    %v149 = vunpack.c.h.b16 %v51
    %v150 = vunpack.c.l.b16 %v52
    %v151 = vunpack.c.h.b16 %v52
    %v152 = vunpack.c.l.b16 %v53
    %v153 = vunpack.c.h.b16 %v53
    %v154 = vunpack.c.l.b16 %v54
    %v155 = vunpack.c.h.b16 %v54
    %v156 = vunpack.c.l.b16 %v55
    %v157 = vunpack.c.h.b16 %v55
    %v158 = vunpack.c.l.b16 %v56
    %v159 = vunpack.c.h.b16 %v56
    %v160 = vunpack.c.l.b16 %v57
    %v161 = vunpack.c.h.b16 %v57
    %v162 = vunpack.c.l.b16 %v58
    %v163 = vunpack.c.h.b16 %v58
    %v164 = vunpack.c.l.b16 %v59
    %v165 = vunpack.c.h.b16 %v59
    %v166 = vunpack.c.l.b16 %v60
    %v167 = vunpack.c.h.b16 %v60
    %v168 = vunpack.c.l.b16 %v61
    %v169 = vunpack.c.h.b16 %v61
    %v170 = vunpack.c.l.b16 %v62
    %v171 = vunpack.c.h.b16 %v62
    %v172 = vunpack.c.l.b16 %v63
    %v173 = vunpack.c.h.b16 %v63
    %v174 = vunpack.c.l.b16 %v64
    %v175 = vunpack.c.h.b16 %v64
    %v176 = vunpack.c.l.b16 %v65
    %v177 = vunpack.c.h.b16 %v65
    %v178 = vunpack.c.l.b16 %v66
    %v179 = vunpack.c.h.b16 %v66
    %v180 = vunpack.c.l.b16 %v67
    %v181 = vunpack.c.h.b16 %v67
    %v182 = vunpack.c.l.b16 %v68
    %v183 = vunpack.c.h.b16 %v68
    %v184 = vunpack.c.l.b16 %v69
    %v185 = vunpack.c.h.b16 %v69
    %v186 = vunpack.c.l.b16 %v70
    %v187 = vunpack.c.h.b16 %v70
    %v188 = vunpack.c.l.b16 %v71
    %v189 = vunpack.c.h.b16 %v71
    %v190 = vunpack.c.l.b16 %v72
    %v191 = vunpack.c.h.b16 %v72
    %v192 = vunpack.c.l.b16 %v73
    %v193 = vunpack.c.h.b16 %v73
    %v194 = vunpack.c.l.b16 %v74
    %v195 = vunpack.c.h.b16 %v74
    %v196 = vunpack.c.l.b16 %v75
    %v197 = vunpack.c.h.b16 %v75
    %v198 = vunpack.c.l.b16 %v76
    %v199 = vunpack.c.h.b16 %v76
    %v200 = vpack.c.b16 %v140, %v136
    %v201 = vpack.c.b16 %v141, %v137
    %v202 = vpack.c.b16 %v142, %v138
    %v203 = vpack.c.b16 %v143, %v139
    %v204 = vpack.c.b16 %v148, %v144
    %v205 = vpack.c.b16 %v149, %v145
    %v206 = vpack.c.b16 %v150, %v146
    %v207 = vpack.c.b16 %v151, %v147
    %v208 = vpack.c.b16 %v156, %v152
    %v209 = vpack.c.b16 %v157, %v153
    %v210 = vpack.c.b16 %v158, %v154
    %v211 = vpack.c.b16 %v159, %v155
    %v212 = vpack.c.b16 %v164, %v160
    %v213 = vpack.c.b16 %v165, %v161
    %v214 = vpack.c.b16 %v166, %v162
    %v215 = vpack.c.b16 %v167, %v163
    %v216 = vpack.c.b16 %v172, %v168
    %v217 = vpack.c.b16 %v173, %v169
    %v218 = vpack.c.b16 %v174, %v170
    %v219 = vpack.c.b16 %v175, %v171
    %v220 = vpack.c.b16 %v180, %v176
    %v221 = vpack.c.b16 %v181, %v177
    %v222 = vpack.c.b16 %v182, %v178
    %v223 = vpack.c.b16 %v183, %v179
    %v224 = vpack.c.b16 %v188, %v184
    %v225 = vpack.c.b16 %v189, %v185
    %v226 = vpack.c.b16 %v190, %v186
    %v227 = vpack.c.b16 %v191, %v187
    %v228 = vpack.c.b16 %v196, %v192
    %v229 = vpack.c.b16 %v197, %v193
    %v230 = vpack.c.b16 %v198, %v194
    %v231 = vpack.c.b16 %v199, %v195
    %264 = vmatprep.subr.bf16.mxu0 %v201
    %265 = vmatpush1.bf16.xpose.msra.mxu0 %v200
    %266 = vmatprep.subr.bf16.mxu0 %v205
    %267 = vmatpush1.bf16.xpose.msra.mxu0 %v204
    %268 = vmatprep.subr.bf16.mxu0 %v209
    %269 = vmatpush1.bf16.xpose.msra.mxu0 %v208
    %270 = vmatprep.subr.bf16.mxu0 %v213
    %271 = vmatpush1.bf16.xpose.msra.mxu0 %v212
    %272 = vmatprep.subr.bf16.mxu0 %v217
    %273 = vmatpush1.bf16.xpose.msra.mxu0 %v216
    %274 = vmatprep.subr.bf16.mxu0 %v221
    %275 = vmatpush1.bf16.xpose.msra.mxu0 %v220
    %276 = vmatprep.subr.bf16.mxu0 %v225
    %277 = vmatpush1.bf16.xpose.msra.mxu0 %v224
    %278 = vmatprep.subr.bf16.mxu0 %v229
    %279 = vmatpush1.bf16.xpose.msra.mxu0 %v228
    %280 = vmatprep.subr.bf16.mxu0 0
    %281 = vmatpush1.bf16.xpose.msra.mxu0 0
    %282 = vmatprep.subr.bf16.mxu0 0
    %283 = vmatpush1.bf16.xpose.msra.mxu0 0
    %284 = vmatprep.subr.bf16.mxu0 0
    %285 = vmatpush1.bf16.xpose.msra.mxu0 0
    %286 = vmatprep.subr.bf16.mxu0 0
    %287 = vmatpush1.bf16.xpose.msra.mxu0 0
    %288 = vmatprep.subr.bf16.mxu0 0
    %289 = vmatpush1.bf16.xpose.msra.mxu0 0
    %290 = vmatprep.subr.bf16.mxu0 0
    %291 = vmatpush1.bf16.xpose.msra.mxu0 0
    %292 = vmatprep.subr.bf16.mxu0 0
    %293 = vmatpush1.bf16.xpose.msra.mxu0 0
    %294 = vmatprep.subr.bf16.mxu0 0
    %295 = vmatpush1.bf16.xpose.msra.mxu0 0
    %296 = vmatprep.mubr.bf16.mxu0 %v97
    %297 = vmatmul.mubr.bf16.gmra.mrb[0].mxu0 %v96
    %v298 = vpop.f32.mrb[0].mxu0
    %v299 = vadd.f32 %v82, %v298
    %v300 = vpop.f32.mrb[0].mxu0
    %v301 = vpop.f32.mrb[0].mxu0
    %v302 = vadd.f32 %v82, %v301
    %v303 = vpop.f32.mrb[0].mxu0
    %304 = vdwg.mxu0
    %305 = vmatprep.subr.bf16.mxu0 %v203
    %306 = vmatpush1.bf16.xpose.msra.mxu0 %v202
    %307 = vmatprep.subr.bf16.mxu0 %v207
    %308 = vmatpush1.bf16.xpose.msra.mxu0 %v206
    %309 = vmatprep.subr.bf16.mxu0 %v211
    %310 = vmatpush1.bf16.xpose.msra.mxu0 %v210
    %311 = vmatprep.subr.bf16.mxu0 %v215
    %312 = vmatpush1.bf16.xpose.msra.mxu0 %v214
    %313 = vmatprep.subr.bf16.mxu0 %v219
    %314 = vmatpush1.bf16.xpose.msra.mxu0 %v218
    %315 = vmatprep.subr.bf16.mxu0 %v223
    %316 = vmatpush1.bf16.xpose.msra.mxu0 %v222
    %317 = vmatprep.subr.bf16.mxu0 %v227
    %318 = vmatpush1.bf16.xpose.msra.mxu0 %v226
    %319 = vmatprep.subr.bf16.mxu0 %v231
    %320 = vmatpush1.bf16.xpose.msra.mxu0 %v230
    %321 = vmatprep.subr.bf16.mxu0 0
    %322 = vmatpush1.bf16.xpose.msra.mxu0 0
    %323 = vmatprep.subr.bf16.mxu0 0
    %324 = vmatpush1.bf16.xpose.msra.mxu0 0
    %325 = vmatprep.subr.bf16.mxu0 0
    %326 = vmatpush1.bf16.xpose.msra.mxu0 0
    %327 = vmatprep.subr.bf16.mxu0 0
    %328 = vmatpush1.bf16.xpose.msra.mxu0 0
    %329 = vmatprep.subr.bf16.mxu0 0
    %330 = vmatpush1.bf16.xpose.msra.mxu0 0
    %331 = vmatprep.subr.bf16.mxu0 0
    %332 = vmatpush1.bf16.xpose.msra.mxu0 0
    %333 = vmatprep.subr.bf16.mxu0 0
    %334 = vmatpush1.bf16.xpose.msra.mxu0 0
    %335 = vmatprep.subr.bf16.mxu0 0
    %336 = vmatpush1.bf16.xpose.msra.mxu0 0
    %337 = vmatprep.mubr.bf16.mxu0 %v99
    %338 = vmatmul.mubr.bf16.gmra.mrb[0].mxu0 %v98
    %v339 = vpop.f32.mrb[0].mxu0
    %v340 = vadd.f32 %v299, %v339
    %v341 = vpop.f32.mrb[0].mxu0
    %v342 = vpop.f32.mrb[0].mxu0
    %v343 = vadd.f32 %v302, %v342
    %v344 = vpop.f32.mrb[0].mxu0
    %345 = vdwg.mxu0
    %346 = vst [vmem:[%s3] sm:$0xff] %v340
    %347 = vst [vmem:[%s3 + $0x8] sm:$0xff] %v343
    // Predicated region
    $region22: #{gpt2_textual_head_forward.15} parent=1 // pred_check
      _
    $region23: #{gpt2_textual_head_forward.15} parent=1 // pred_check_branch
      %349 = sbr.rel (0) target = $region25
    $region24: #{gpt2_textual_head_forward.15} parent=1 // pred_region
      _
    $region25: #{gpt2_textual_head_forward.15} parent=1 // pred_fallthru
      _
    // Predicated region
    $region26: #{gpt2_textual_head_forward.15} parent=1 // pred_check
      _
    $region27: #{gpt2_textual_head_forward.15} parent=1 // pred_check_branch
      %351 = sbr.rel (0) target = $region29
    $region28: #{gpt2_textual_head_forward.15} parent=1 // pred_region
      _
    $region29: #{gpt2_textual_head_forward.15} parent=1 // pred_fallthru
      _
    %352 = vsyncpa [#allocation3], 1
    %353 = vsyncpa [#allocation5], 1

// kernel: gpt2_textual_head_forward.14
$region0: #{gpt2_textual_head_forward.14}
  #allocation0 [shape = 'u32[]', space=smem, size = 0x4, offset = 0x4, fixed_abs, tag = 'smem constant byte address 0x4 - core index']
  #allocation1 [shape = 'u32[144,128]{1,0:T(1,128)}', space=vmem, size = 0x12000, scoped, tag = 'internal scratch']
  %s0 = inlined_call_operand.vmem [shape: f32[16,128], index: 0, kind: input, shape index: {}]
  %s1 = inlined_call_operand.hbm [shape: bf16[512,128], index: 1, kind: input, shape index: {}]
  %s2 = inlined_call_operand.hbm [shape: f32[1,512], index: 2, kind: input, shape index: {}]
  %s3 = inlined_call_operand.hbm [shape: f32[1,128], index: 3, kind: input, shape index: {}]
  %s4 = inlined_call_operand.hbm [shape: f32[1,128], index: 4, kind: input, shape index: {}]
  %s5 = inlined_call_operand.vmem [shape: bf16[16,512], index: 5, kind: output, shape index: {}]
  %s6 = sld [smem:[#allocation0]]
  $region46: #{gpt2_textual_head_forward.14} parent=0
    _
  %s8 = ssub.s32 1, %s6
  %s9 = scalar_select 0, %s8, %s6
  $region1: #{gpt2_textual_head_forward.14} parent=0
    #allocation2 [shape = 'u8[131072]{0}', space=vmem, size = 0x20000, scoped, tag = 'input window, operand 1, single buffered']
    #allocation3 [shape = 's32[1]{0}', space=sflag, size = 0x4, scoped, tag = 'scoped memory for gpt2_textual_head_forward.14']
    #allocation4 [shape = 'u8[2048]{0}', space=vmem, size = 0x800, scoped, tag = 'input window, operand 2, single buffered']
    #allocation5 [shape = 's32[1]{0}', space=sflag, size = 0x4, scoped, tag = 'scoped memory for gpt2_textual_head_forward.14']
    #allocation6 [shape = 'u8[512]{0}', space=vmem, size = 0x400, scoped, tag = 'input window, operand 3, single buffered']
    #allocation7 [shape = 'u8[512]{0}', space=vmem, size = 0x400, scoped, tag = 'input window, operand 4, single buffered']
    #allocation8 [shape = 's32[1]{0}', space=sflag, size = 0x4, scoped, tag = 'scoped memory for gpt2_textual_head_forward.14']
    %10 = vsyncpa [#allocation3], 0
    %11 = vsyncpa [#allocation5], 0
    %12 = vsyncpa [#allocation8], 0
    // Predicated region
    $region2: #{gpt2_textual_head_forward.14} parent=1 // pred_check
      _
    $region3: #{gpt2_textual_head_forward.14} parent=1 // pred_check_branch
      %14 = sbr.rel (0) target = $region5
    $region4: #{gpt2_textual_head_forward.14} parent=1 // pred_region
      _
    $region5: #{gpt2_textual_head_forward.14} parent=1 // pred_fallthru
      _
    // Predicated region
    $region6: #{gpt2_textual_head_forward.14} parent=1 // pred_check
      _
    $region7: #{gpt2_textual_head_forward.14} parent=1 // pred_check_branch
      %16 = sbr.rel (0) target = $region9
    $region8: #{gpt2_textual_head_forward.14} parent=1 // pred_region
      %s18 = ssub.s32 4096, 4096
      %19 = vsyncadd [#allocation3], %s18
      %s20 = sshll.u32 [#allocation2], 4
      %s21 = int_to_ptr.vmem [resolvable:$true] %s20
      %26 = dma.hbm_to_vmem [thread:$0]  %s1, 4096, %s21, [#allocation3], 64, 64, 4
    $region9: #{gpt2_textual_head_forward.14} parent=1 // pred_fallthru
      _
    // Predicated region
    $region10: #{gpt2_textual_head_forward.14} parent=1 // pred_check
      _
    $region11: #{gpt2_textual_head_forward.14} parent=1 // pred_check_branch
      %28 = sbr.rel (0) target = $region13
    $region12: #{gpt2_textual_head_forward.14} parent=1 // pred_region
      %s30 = ssub.s32 64, 64
      %31 = vsyncadd [#allocation5], %s30
      %s33 = sshll.u32 [#allocation4], 4
      %s34 = int_to_ptr.vmem [resolvable:$true] %s33
      %36 = dma.hbm_to_vmem [thread:$0]  %s2, 64, %s34, [#allocation5]
    $region13: #{gpt2_textual_head_forward.14} parent=1 // pred_fallthru
      _
    // Predicated region
    $region14: #{gpt2_textual_head_forward.14} parent=1 // pred_check
      _
    $region15: #{gpt2_textual_head_forward.14} parent=1 // pred_check_branch
      %38 = sbr.rel (0) target = $region17
    $region16: #{gpt2_textual_head_forward.14} parent=1 // pred_region
      %s40 = ssub.s32 16, 16
      %41 = vsyncadd [#allocation5], %s40
      %s43 = sshll.u32 [#allocation6], 4
      %s44 = int_to_ptr.vmem [resolvable:$true] %s43
      %46 = dma.hbm_to_vmem [thread:$0]  %s3, 16, %s44, [#allocation5]
    $region17: #{gpt2_textual_head_forward.14} parent=1 // pred_fallthru
      _
    // Predicated region
    $region18: #{gpt2_textual_head_forward.14} parent=1 // pred_check
      _
    $region19: #{gpt2_textual_head_forward.14} parent=1 // pred_check_branch
      %48 = sbr.rel (0) target = $region21
    $region20: #{gpt2_textual_head_forward.14} parent=1 // pred_region
      %s50 = ssub.s32 16, 16
      %51 = vsyncadd [#allocation8], %s50
      %s53 = sshll.u32 [#allocation7], 4
      %s54 = int_to_ptr.vmem [resolvable:$true] %s53
      %56 = dma.hbm_to_vmem [thread:$0]  %s4, 16, %s54, [#allocation8]
    $region21: #{gpt2_textual_head_forward.14} parent=1 // pred_fallthru
      _
    // Predicated region
    $region22: #{gpt2_textual_head_forward.14} parent=1 // pred_check
      _
    $region23: #{gpt2_textual_head_forward.14} parent=1 // pred_check_branch
      %58 = sbr.rel (0) target = $region25
    $region24: #{gpt2_textual_head_forward.14} parent=1 // pred_region
      %59 = dma.done [#allocation3], 4096
    $region25: #{gpt2_textual_head_forward.14} parent=1 // pred_fallthru
      _
    // Predicated region
    $region26: #{gpt2_textual_head_forward.14} parent=1 // pred_check
      _
    $region27: #{gpt2_textual_head_forward.14} parent=1 // pred_check_branch
      %61 = sbr.rel (0) target = $region29
    $region28: #{gpt2_textual_head_forward.14} parent=1 // pred_region
      %62 = dma.done [#allocation5], 64
    $region29: #{gpt2_textual_head_forward.14} parent=1 // pred_fallthru
      _
    // Predicated region
    $region30: #{gpt2_textual_head_forward.14} parent=1 // pred_check
      _
    $region31: #{gpt2_textual_head_forward.14} parent=1 // pred_check_branch
      %64 = sbr.rel (0) target = $region33
    $region32: #{gpt2_textual_head_forward.14} parent=1 // pred_region
      %65 = dma.done [#allocation5], 16
    $region33: #{gpt2_textual_head_forward.14} parent=1 // pred_fallthru
      _
    // Predicated region
    $region34: #{gpt2_textual_head_forward.14} parent=1 // pred_check
      _
    $region35: #{gpt2_textual_head_forward.14} parent=1 // pred_check_branch
      %67 = sbr.rel (0) target = $region37
    $region36: #{gpt2_textual_head_forward.14} parent=1 // pred_region
      %68 = dma.done [#allocation8], 16
    $region37: #{gpt2_textual_head_forward.14} parent=1 // pred_fallthru
      _
    %v70 = vld [vmem:[%s0] sm:$0xff]
    %v71 = vld [vmem:[%s0 + $0x8] sm:$0xff]
    %72 = vadd.xlane.f32.xlu0 %v70
    %v73 = vpop.xlane.xlu0 %72
    %74 = vadd.xlane.f32.xlu0 %v71
    %v75 = vpop.xlane.xlu0 %74
    %v76 = vrcp.pop 128.0
    %v77 = vmul.f32 %v73, %v76
    %v78 = vmul.f32 %v75, %v76
    %v79 = vsub.f32 %v70, %v77
    %v80 = vsub.f32 %v71, %v78
    %v81 = vmul.f32 %v79, %v79
    %v82 = vmul.f32 %v80, %v80
    %83 = vadd.xlane.f32.xlu0 %v81
    %v84 = vpop.xlane.xlu0 %83
    %85 = vadd.xlane.f32.xlu0 %v82
    %v86 = vpop.xlane.xlu0 %85
    %v87 = vmul.f32 %v84, %v76
    %v88 = vmul.f32 %v86, %v76
    %v89 = vadd.f32 %v87, 1e-05
    %v90 = vadd.f32 %v88, 1e-05
    %v91 = vrsqrt.pop %v89
    %v92 = vrsqrt.pop %v90
    %v93 = vmul.f32 %v79, %v91
    %v94 = vmul.f32 %v80, %v92
    %v95 = vld [vmem:[#allocation6] sm:$0x1]
    %v97 = vlaneseq
    %v98 = vshrl.u32 %v97, 7
    %v99 = vsub.s32 0, %v98
    %v100 = vrot.slane %v95, %v99
    %v102 = vmul.f32 %v93, %v100
    %v103 = vmul.f32 %v94, %v100
    %v104 = vld [vmem:[#allocation7] sm:$0x1]
    %v106 = vlaneseq
    %v107 = vshrl.u32 %v106, 7
    %v108 = vsub.s32 0, %v107
    %v109 = vrot.slane %v104, %v108
    %v111 = vadd.f32 %v102, %v109
    %v112 = vadd.f32 %v103, %v109
    %v113 = vpack.c.bf16 %v112, %v111
    %v114 = vld [vmem:[#allocation2] sm:$0xf]
    %v115 = vld [vmem:[#allocation2 + $0x4] sm:$0xf]
    %v116 = vld [vmem:[#allocation2 + $0x8] sm:$0xf]
    %v117 = vld [vmem:[#allocation2 + $0xc] sm:$0xf]
    %v118 = vld [vmem:[#allocation2 + $0x10] sm:$0xf]
    %v119 = vld [vmem:[#allocation2 + $0x14] sm:$0xf]
    %v120 = vld [vmem:[#allocation2 + $0x18] sm:$0xf]
    %v121 = vld [vmem:[#allocation2 + $0x1c] sm:$0xf]
    %v122 = vld [vmem:[#allocation2 + $0x20] sm:$0xf]
    %v123 = vld [vmem:[#allocation2 + $0x24] sm:$0xf]
    %v124 = vld [vmem:[#allocation2 + $0x28] sm:$0xf]
    %v125 = vld [vmem:[#allocation2 + $0x2c] sm:$0xf]
    %v126 = vld [vmem:[#allocation2 + $0x30] sm:$0xf]
    %v127 = vld [vmem:[#allocation2 + $0x34] sm:$0xf]
    %v128 = vld [vmem:[#allocation2 + $0x38] sm:$0xf]
    %v129 = vld [vmem:[#allocation2 + $0x3c] sm:$0xf]
    %v130 = vld [vmem:[#allocation2 + $0x40] sm:$0xf]
    %v131 = vld [vmem:[#allocation2 + $0x44] sm:$0xf]
    %v132 = vld [vmem:[#allocation2 + $0x48] sm:$0xf]
    %v133 = vld [vmem:[#allocation2 + $0x4c] sm:$0xf]
    %v134 = vld [vmem:[#allocation2 + $0x50] sm:$0xf]
    %v135 = vld [vmem:[#allocation2 + $0x54] sm:$0xf]
    %v136 = vld [vmem:[#allocation2 + $0x58] sm:$0xf]
    %v137 = vld [vmem:[#allocation2 + $0x5c] sm:$0xf]
    %v138 = vld [vmem:[#allocation2 + $0x60] sm:$0xf]
    %v139 = vld [vmem:[#allocation2 + $0x64] sm:$0xf]
    %v140 = vld [vmem:[#allocation2 + $0x68] sm:$0xf]
    %v141 = vld [vmem:[#allocation2 + $0x6c] sm:$0xf]
    %v142 = vld [vmem:[#allocation2 + $0x70] sm:$0xf]
    %v143 = vld [vmem:[#allocation2 + $0x74] sm:$0xf]
    %v144 = vld [vmem:[#allocation2 + $0x78] sm:$0xf]
    %v145 = vld [vmem:[#allocation2 + $0x7c] sm:$0xf]
    %v146 = vld [vmem:[#allocation2 + $0x80] sm:$0xf]
    %v147 = vld [vmem:[#allocation2 + $0x84] sm:$0xf]
    %v148 = vld [vmem:[#allocation2 + $0x88] sm:$0xf]
    %v149 = vld [vmem:[#allocation2 + $0x8c] sm:$0xf]
    %v150 = vld [vmem:[#allocation2 + $0x90] sm:$0xf]
    %v151 = vld [vmem:[#allocation2 + $0x94] sm:$0xf]
    %v152 = vld [vmem:[#allocation2 + $0x98] sm:$0xf]
    %v153 = vld [vmem:[#allocation2 + $0x9c] sm:$0xf]
    %v154 = vld [vmem:[#allocation2 + $0xa0] sm:$0xf]
    %v155 = vld [vmem:[#allocation2 + $0xa4] sm:$0xf]
    %v156 = vld [vmem:[#allocation2 + $0xa8] sm:$0xf]
    %v157 = vld [vmem:[#allocation2 + $0xac] sm:$0xf]
    %v158 = vld [vmem:[#allocation2 + $0xb0] sm:$0xf]
    %v159 = vld [vmem:[#allocation2 + $0xb4] sm:$0xf]
    %v160 = vld [vmem:[#allocation2 + $0xb8] sm:$0xf]
    %v161 = vld [vmem:[#allocation2 + $0xbc] sm:$0xf]
    %v162 = vld [vmem:[#allocation2 + $0xc0] sm:$0xf]
    %v163 = vld [vmem:[#allocation2 + $0xc4] sm:$0xf]
    %v164 = vld [vmem:[#allocation2 + $0xc8] sm:$0xf]
    %v165 = vld [vmem:[#allocation2 + $0xcc] sm:$0xf]
    %v166 = vld [vmem:[#allocation2 + $0xd0] sm:$0xf]
    %v167 = vld [vmem:[#allocation2 + $0xd4] sm:$0xf]
    %v168 = vld [vmem:[#allocation2 + $0xd8] sm:$0xf]
    %v169 = vld [vmem:[#allocation2 + $0xdc] sm:$0xf]
    %v170 = vld [vmem:[#allocation2 + $0xe0] sm:$0xf]
    %v171 = vld [vmem:[#allocation2 + $0xe4] sm:$0xf]
    %v172 = vld [vmem:[#allocation2 + $0xe8] sm:$0xf]
    %v173 = vld [vmem:[#allocation2 + $0xec] sm:$0xf]
    %v174 = vld [vmem:[#allocation2 + $0xf0] sm:$0xf]
    %v175 = vld [vmem:[#allocation2 + $0xf4] sm:$0xf]
    %v176 = vld [vmem:[#allocation2 + $0xf8] sm:$0xf]
    %v177 = vld [vmem:[#allocation2 + $0xfc] sm:$0xf]
    %v178 = vld [vmem:[#allocation4] sm:$0xf]
    %v180 = vlaneseq
    %v181 = vshrl.u32 %v180, 7
    %v182 = vsub.s32 0, %v181
    %v183 = vrot.slane %v178, %v182
    %v184 = vlaneseq
    %v185 = vshrl.u32 %v184, 7
    %v186 = vsub.s32 1, %v185
    %v187 = vrot.slane %v178, %v186
    %v188 = vlaneseq
    %v189 = vshrl.u32 %v188, 7
    %v190 = vsub.s32 2, %v189
    %v191 = vrot.slane %v178, %v190
    %v192 = vlaneseq
    %v193 = vshrl.u32 %v192, 7
    %v194 = vsub.s32 3, %v193
    %v195 = vrot.slane %v178, %v194
    %v264 = vunpack.c.l.b16 %v114
    %v265 = vunpack.c.l.b16 %v115
    %v266 = vunpack.c.l.b16 %v116
    %v267 = vunpack.c.l.b16 %v117
    %v268 = vunpack.c.l.b16 %v118
    %v269 = vunpack.c.l.b16 %v119
    %v270 = vunpack.c.l.b16 %v120
    %v271 = vunpack.c.l.b16 %v121
    %v272 = vunpack.c.l.b16 %v122
    %v273 = vunpack.c.l.b16 %v123
    %v274 = vunpack.c.l.b16 %v124
    %v275 = vunpack.c.l.b16 %v125
    %v276 = vunpack.c.l.b16 %v126
    %v277 = vunpack.c.l.b16 %v127
    %v278 = vunpack.c.l.b16 %v128
    %v279 = vunpack.c.l.b16 %v129
    %v280 = vunpack.c.l.b16 %v130
    %v281 = vunpack.c.l.b16 %v131
    %v282 = vunpack.c.l.b16 %v132
    %v283 = vunpack.c.l.b16 %v133
    %v284 = vunpack.c.l.b16 %v134
    %v285 = vunpack.c.l.b16 %v135
    %v286 = vunpack.c.l.b16 %v136
    %v287 = vunpack.c.l.b16 %v137
    %v288 = vunpack.c.l.b16 %v138
    %v289 = vunpack.c.l.b16 %v139
    %v290 = vunpack.c.l.b16 %v140
    %v291 = vunpack.c.l.b16 %v141
    %v292 = vunpack.c.l.b16 %v142
    %v293 = vunpack.c.l.b16 %v143
    %v294 = vunpack.c.l.b16 %v144
    %v295 = vunpack.c.l.b16 %v145
    %v296 = vunpack.c.l.b16 %v146
    %v297 = vunpack.c.l.b16 %v147
    %v298 = vunpack.c.l.b16 %v148
    %v299 = vunpack.c.l.b16 %v149
    %v300 = vunpack.c.l.b16 %v150
    %v301 = vunpack.c.l.b16 %v151
    %v302 = vunpack.c.l.b16 %v152
    %v303 = vunpack.c.l.b16 %v153
    %v304 = vunpack.c.l.b16 %v154
    %v305 = vunpack.c.l.b16 %v155
    %v306 = vunpack.c.l.b16 %v156
    %v307 = vunpack.c.l.b16 %v157
    %v308 = vunpack.c.l.b16 %v158
    %v309 = vunpack.c.l.b16 %v159
    %v310 = vunpack.c.l.b16 %v160
    %v311 = vunpack.c.l.b16 %v161
    %v312 = vunpack.c.l.b16 %v162
    %v313 = vunpack.c.l.b16 %v163
    %v314 = vunpack.c.l.b16 %v164
    %v315 = vunpack.c.l.b16 %v165
    %v316 = vunpack.c.l.b16 %v166
    %v317 = vunpack.c.l.b16 %v167
    %v318 = vunpack.c.l.b16 %v168
    %v319 = vunpack.c.l.b16 %v169
    %v320 = vunpack.c.l.b16 %v170
    %v321 = vunpack.c.l.b16 %v171
    %v322 = vunpack.c.l.b16 %v172
    %v323 = vunpack.c.l.b16 %v173
    %v324 = vunpack.c.l.b16 %v174
    %v325 = vunpack.c.l.b16 %v175
    %v326 = vunpack.c.l.b16 %v176
    %v327 = vunpack.c.l.b16 %v177
    %v328 = vpack.c.b16 %v265, %v264
    %v329 = vpack.c.b16 %v267, %v266
    %v330 = vpack.c.b16 %v269, %v268
    %v331 = vpack.c.b16 %v271, %v270
    %v332 = vpack.c.b16 %v273, %v272
    %v333 = vpack.c.b16 %v275, %v274
    %v334 = vpack.c.b16 %v277, %v276
    %v335 = vpack.c.b16 %v279, %v278
    %v336 = vpack.c.b16 %v281, %v280
    %v337 = vpack.c.b16 %v283, %v282
    %v338 = vpack.c.b16 %v285, %v284
    %v339 = vpack.c.b16 %v287, %v286
    %v340 = vpack.c.b16 %v289, %v288
    %v341 = vpack.c.b16 %v291, %v290
    %v342 = vpack.c.b16 %v293, %v292
    %v343 = vpack.c.b16 %v295, %v294
    %v344 = vpack.c.b16 %v297, %v296
    %v345 = vpack.c.b16 %v299, %v298
    %v346 = vpack.c.b16 %v301, %v300
    %v347 = vpack.c.b16 %v303, %v302
    %v348 = vpack.c.b16 %v305, %v304
    %v349 = vpack.c.b16 %v307, %v306
    %v350 = vpack.c.b16 %v309, %v308
    %v351 = vpack.c.b16 %v311, %v310
    %v352 = vpack.c.b16 %v313, %v312
    %v353 = vpack.c.b16 %v315, %v314
    %v354 = vpack.c.b16 %v317, %v316
    %v355 = vpack.c.b16 %v319, %v318
    %v356 = vpack.c.b16 %v321, %v320
    %v357 = vpack.c.b16 %v323, %v322
    %v358 = vpack.c.b16 %v325, %v324
    %v359 = vpack.c.b16 %v327, %v326
    %392 = vmatprep.subr.bf16.mxu0 0
    %393 = vmatpush1.bf16.xpose.msra.mxu0 %v328
    %394 = vmatprep.subr.bf16.mxu0 0
    %395 = vmatpush1.bf16.xpose.msra.mxu0 %v329
    %396 = vmatprep.subr.bf16.mxu0 0
    %397 = vmatpush1.bf16.xpose.msra.mxu0 %v330
    %398 = vmatprep.subr.bf16.mxu0 0
    %399 = vmatpush1.bf16.xpose.msra.mxu0 %v331
    %400 = vmatprep.subr.bf16.mxu0 0
    %401 = vmatpush1.bf16.xpose.msra.mxu0 %v332
    %402 = vmatprep.subr.bf16.mxu0 0
    %403 = vmatpush1.bf16.xpose.msra.mxu0 %v333
    %404 = vmatprep.subr.bf16.mxu0 0
    %405 = vmatpush1.bf16.xpose.msra.mxu0 %v334
    %406 = vmatprep.subr.bf16.mxu0 0
    %407 = vmatpush1.bf16.xpose.msra.mxu0 %v335
    %408 = vmatprep.subr.bf16.mxu0 0
    %409 = vmatpush1.bf16.xpose.msra.mxu0 %v336
    %410 = vmatprep.subr.bf16.mxu0 0
    %411 = vmatpush1.bf16.xpose.msra.mxu0 %v337
    %412 = vmatprep.subr.bf16.mxu0 0
    %413 = vmatpush1.bf16.xpose.msra.mxu0 %v338
    %414 = vmatprep.subr.bf16.mxu0 0
    %415 = vmatpush1.bf16.xpose.msra.mxu0 %v339
    %416 = vmatprep.subr.bf16.mxu0 0
    %417 = vmatpush1.bf16.xpose.msra.mxu0 %v340
    %418 = vmatprep.subr.bf16.mxu0 0
    %419 = vmatpush1.bf16.xpose.msra.mxu0 %v341
    %420 = vmatprep.subr.bf16.mxu0 0
    %421 = vmatpush1.bf16.xpose.msra.mxu0 %v342
    %422 = vmatprep.subr.bf16.mxu0 0
    %423 = vmatpush1.bf16.xpose.msra.mxu0 %v343
    %424 = vmatprep.mubr.bf16.mxu0 0
    %425 = vmatmul.mubr.bf16.gmra.mrb[0].mxu0 %v113
    %v426 = vpop.f32.mrb[0].mxu0
    %v427 = vadd.f32 %v183, %v426
    %v428 = vpop.f32.mrb[0].mxu0
    %v429 = vadd.f32 %v187, %v428
    %v430 = vpop.f32.mrb[0].mxu0
    %v431 = vadd.f32 %v183, %v430
    %v432 = vpop.f32.mrb[0].mxu0
    %v433 = vadd.f32 %v187, %v432
    %434 = vdwg.mxu0
    %435 = vmatprep.subr.bf16.mxu0 0
    %436 = vmatpush1.bf16.xpose.msra.mxu0 %v344
    %437 = vmatprep.subr.bf16.mxu0 0
    %438 = vmatpush1.bf16.xpose.msra.mxu0 %v345
    %439 = vmatprep.subr.bf16.mxu0 0
    %440 = vmatpush1.bf16.xpose.msra.mxu0 %v346
    %441 = vmatprep.subr.bf16.mxu0 0
    %442 = vmatpush1.bf16.xpose.msra.mxu0 %v347
    %443 = vmatprep.subr.bf16.mxu0 0
    %444 = vmatpush1.bf16.xpose.msra.mxu0 %v348
    %445 = vmatprep.subr.bf16.mxu0 0
    %446 = vmatpush1.bf16.xpose.msra.mxu0 %v349
    %447 = vmatprep.subr.bf16.mxu0 0
    %448 = vmatpush1.bf16.xpose.msra.mxu0 %v350
    %449 = vmatprep.subr.bf16.mxu0 0
    %450 = vmatpush1.bf16.xpose.msra.mxu0 %v351
    %451 = vmatprep.subr.bf16.mxu0 0
    %452 = vmatpush1.bf16.xpose.msra.mxu0 %v352
    %453 = vmatprep.subr.bf16.mxu0 0
    %454 = vmatpush1.bf16.xpose.msra.mxu0 %v353
    %455 = vmatprep.subr.bf16.mxu0 0
    %456 = vmatpush1.bf16.xpose.msra.mxu0 %v354
    %457 = vmatprep.subr.bf16.mxu0 0
    %458 = vmatpush1.bf16.xpose.msra.mxu0 %v355
    %459 = vmatprep.subr.bf16.mxu0 0
    %460 = vmatpush1.bf16.xpose.msra.mxu0 %v356
    %461 = vmatprep.subr.bf16.mxu0 0
    %462 = vmatpush1.bf16.xpose.msra.mxu0 %v357
    %463 = vmatprep.subr.bf16.mxu0 0
    %464 = vmatpush1.bf16.xpose.msra.mxu0 %v358
    %465 = vmatprep.subr.bf16.mxu0 0
    %466 = vmatpush1.bf16.xpose.msra.mxu0 %v359
    %467 = vmatprep.mubr.bf16.mxu0 0
    %468 = vmatmul.mubr.bf16.gmra.mrb[0].mxu0 %v113
    %v469 = vpop.f32.mrb[0].mxu0
    %v470 = vadd.f32 %v191, %v469
    %v471 = vpop.f32.mrb[0].mxu0
    %v472 = vadd.f32 %v195, %v471
    %v473 = vpop.f32.mrb[0].mxu0
    %v474 = vadd.f32 %v191, %v473
    %v475 = vpop.f32.mrb[0].mxu0
    %v476 = vadd.f32 %v195, %v475
    %477 = vdwg.mxu0
    %v478 = vmul.f32 %v427, %v427
    %v479 = vmul.f32 %v429, %v429
    %v480 = vmul.f32 %v470, %v470
    %v481 = vmul.f32 %v472, %v472
    %v482 = vmul.f32 %v431, %v431
    %v483 = vmul.f32 %v433, %v433
    %v484 = vmul.f32 %v474, %v474
    %v485 = vmul.f32 %v476, %v476
    %v486 = vmul.f32 %v427, %v478
    %v487 = vmul.f32 %v429, %v479
    %v488 = vmul.f32 %v470, %v480
    %v489 = vmul.f32 %v472, %v481
    %v490 = vmul.f32 %v431, %v482
    %v491 = vmul.f32 %v433, %v483
    %v492 = vmul.f32 %v474, %v484
    %v493 = vmul.f32 %v476, %v485
    %v494 = vmul.f32 %v486, 0.044715
    %v495 = vmul.f32 %v487, 0.044715
    %v496 = vmul.f32 %v488, 0.044715
    %v497 = vmul.f32 %v489, 0.044715
    %v498 = vmul.f32 %v490, 0.044715
    %v499 = vmul.f32 %v491, 0.044715
    %v500 = vmul.f32 %v492, 0.044715
    %v501 = vmul.f32 %v493, 0.044715
    %v502 = vadd.f32 %v427, %v494
    %v503 = vadd.f32 %v429, %v495
    %v504 = vadd.f32 %v470, %v496
    %v505 = vadd.f32 %v472, %v497
    %v506 = vadd.f32 %v431, %v498
    %v507 = vadd.f32 %v433, %v499
    %v508 = vadd.f32 %v474, %v500
    %v509 = vadd.f32 %v476, %v501
    %v510 = vmul.f32 %v502, 0.7978846
    %v511 = vmul.f32 %v503, 0.7978846
    %v512 = vmul.f32 %v504, 0.7978846
    %v513 = vmul.f32 %v505, 0.7978846
    %v514 = vmul.f32 %v506, 0.7978846
    %v515 = vmul.f32 %v507, 0.7978846
    %v516 = vmul.f32 %v508, 0.7978846
    %v517 = vmul.f32 %v509, 0.7978846
    %v518 = vtanh.pop %v510
    %v519 = vtanh.pop %v511
    %v520 = vtanh.pop %v512
    %v521 = vtanh.pop %v513
    %v522 = vtanh.pop %v514
    %v523 = vtanh.pop %v515
    %v524 = vtanh.pop %v516
    %v525 = vtanh.pop %v517
    %v526 = vadd.f32 %v518, 1.0
    %v527 = vadd.f32 %v519, 1.0
    %v528 = vadd.f32 %v520, 1.0
    %v529 = vadd.f32 %v521, 1.0
    %v530 = vadd.f32 %v522, 1.0
    %v531 = vadd.f32 %v523, 1.0
    %v532 = vadd.f32 %v524, 1.0
    %v533 = vadd.f32 %v525, 1.0
    %v534 = vmul.f32 %v526, 0.5
    %v535 = vmul.f32 %v527, 0.5
    %v536 = vmul.f32 %v528, 0.5
    %v537 = vmul.f32 %v529, 0.5
    %v538 = vmul.f32 %v530, 0.5
    %v539 = vmul.f32 %v531, 0.5
    %v540 = vmul.f32 %v532, 0.5
    %v541 = vmul.f32 %v533, 0.5
    %v542 = vmul.f32 %v427, %v534
    %v543 = vmul.f32 %v429, %v535
    %v544 = vmul.f32 %v470, %v536
    %v545 = vmul.f32 %v472, %v537
    %v546 = vmul.f32 %v431, %v538
    %v547 = vmul.f32 %v433, %v539
    %v548 = vmul.f32 %v474, %v540
    %v549 = vmul.f32 %v476, %v541
    %v550 = vpack.c.bf16 %v546, %v542
    %v551 = vpack.c.bf16 %v547, %v543
    %v552 = vpack.c.bf16 %v548, %v544
    %v553 = vpack.c.bf16 %v549, %v545
    %v558 = vunpack.c.l.b16 %v550
    %v559 = vunpack.c.l.b16 %v551
    %v560 = vunpack.c.l.b16 %v552
    %v561 = vunpack.c.l.b16 %v553
    %v562 = vunpack.c.h.b16 %v550
    %v563 = vunpack.c.h.b16 %v551
    %v564 = vunpack.c.h.b16 %v552
    %v565 = vunpack.c.h.b16 %v553
    %v566 = vpack.c.b16 %v559, %v558
    %v567 = vpack.c.b16 %v561, %v560
    %v568 = vpack.c.b16 %v563, %v562
    %v569 = vpack.c.b16 %v565, %v564
    %574 = vst [vmem:[%s5] sm:$0xff] %v566
    %575 = vst [vmem:[%s5 + $0x8] sm:$0xff] %v567
    %576 = vst [vmem:[%s5 + $0x10] sm:$0xff] %v568
    %577 = vst [vmem:[%s5 + $0x18] sm:$0xff] %v569
    // Predicated region
    $region38: #{gpt2_textual_head_forward.14} parent=1 // pred_check
      _
    $region39: #{gpt2_textual_head_forward.14} parent=1 // pred_check_branch
      %579 = sbr.rel (0) target = $region41
    $region40: #{gpt2_textual_head_forward.14} parent=1 // pred_region
      _
    $region41: #{gpt2_textual_head_forward.14} parent=1 // pred_fallthru
      _
    // Predicated region
    $region42: #{gpt2_textual_head_forward.14} parent=1 // pred_check
      _
    $region43: #{gpt2_textual_head_forward.14} parent=1 // pred_check_branch
      %581 = sbr.rel (0) target = $region45
    $region44: #{gpt2_textual_head_forward.14} parent=1 // pred_region
      _
    $region45: #{gpt2_textual_head_forward.14} parent=1 // pred_fallthru
      _
    %582 = vsyncpa [#allocation3], 1
    %583 = vsyncpa [#allocation5], 1
    %584 = vsyncpa [#allocation8], 1

// kernel: gpt2_textual_head_forward.21
$region0: #{gpt2_textual_head_forward.21}
  #allocation0 [shape = 'u32[]', space=smem, size = 0x4, offset = 0x4, fixed_abs, tag = 'smem constant byte address 0x4 - core index']
  #allocation1 [shape = 'u32[144,128]{1,0:T(1,128)}', space=vmem, size = 0x12000, scoped, tag = 'internal scratch']
  %s0 = inlined_call_operand.vmem [shape: f32[16,128], index: 0, kind: input, shape index: {}]
  %s1 = inlined_call_operand.hbm [shape: bf16[51200,128], index: 1, kind: input, shape index: {}]
  %s2 = inlined_call_operand.hbm [shape: f32[1,128], index: 2, kind: input, shape index: {}]
  %s3 = inlined_call_operand.hbm [shape: f32[1,128], index: 3, kind: input, shape index: {}]
  %s4 = inlined_call_operand.vmem [shape: f32[16,51200], index: 4, kind: output, shape index: {}]
  %s5 = sld [smem:[#allocation0]]
  $region80: #{gpt2_textual_head_forward.21} parent=0
    _
  %s7 = ssub.s32 1, %s5
  %s8 = scalar_select 0, %s7, %s5
  $region1: #{gpt2_textual_head_forward.21} parent=0
    #allocation2 [shape = 'u8[1048576]{0}', space=vmem, size = 0x100000, scoped, tag = 'input window, operand 1']
    #allocation3 [shape = 's32[2]{0}', space=sflag, size = 0x8, scoped, tag = 'scoped memory for gpt2_textual_head_forward.21']
    #allocation4 [shape = 'u8[512]{0}', space=vmem, size = 0x400, scoped, tag = 'input window, operand 2, single buffered']
    #allocation5 [shape = 's32[1]{0}', space=sflag, size = 0x4, scoped, tag = 'scoped memory for gpt2_textual_head_forward.21']
    #allocation6 [shape = 'u8[512]{0}', space=vmem, size = 0x400, scoped, tag = 'input window, operand 3, single buffered']
    #allocation7 [shape = 'u8[262144]{0}', space=vmem, size = 0x40000, scoped, tag = 'output window, operand 0']
    %9 = vsyncpa [#allocation3], 0
    %s10 = scalar_lea.sflag [#allocation3], 1
    %11 = vsyncpa %s10, 0
    %12 = vsyncpa [#allocation5], 0
    loop: start=0, step=1, limit=27
    $region2: #{gpt2_textual_head_forward.21} parent=1 // loop_pre_header
      _
    $region3: #{gpt2_textual_head_forward.21} parent=1 // loop_header
      %s14 = sphi 0, %s18
      %p15 = scmp.ge.s32.totalorder %s14, 27
      %s21 = sphi 0, %s33
      %s22 = sphi 0, %s29
      %s23 = sphi 0, %s21
      %s24 = sphi 0, %s22
      %s25 = sphi 0, %s23
      %s26 = sphi 0, %s24
      %s36 = sphi 0, %s38
      %s39 = sphi 0, %s36
      %s40 = sphi 0, %s39
      %s56 = sphi 0, %s40
      %s62 = sphi 0, %s64
      %s65 = sphi 0, %s62
      %s66 = sphi 0, %s65
      %s82 = sphi 0, %s66
      %s86 = sphi 0, %s86
      %s88 = sphi 0, %s86
      %s89 = sphi 0, %s88
      %s103 = sphi 0, %s89
      %s107 = sphi 0, %s107
      %s109 = sphi 0, %s107
      %s110 = sphi 0, %s109
      %s124 = sphi 0, %s110
      %s132 = sphi 0, %s134
      %s135 = sphi 0, %s132
      %s136 = sphi 0, %s135
      %s152 = sphi 0, %s136
    $region4: #{gpt2_textual_head_forward.21} parent=1 // loop_header_branch
      %17 = sbr.rel (%p15) target = $region8
    $region5: #{gpt2_textual_head_forward.21} parent=1 // loop_body
      %s19 = ssub.s32 %s14, 1
      %s20 = ssub.s32 %s14, 2
      %s27 = sadd.s32 1, %s22
      %p28 = scmp.ge.s32.totalorder %s27, 1
      %s29 = scalar_select %p28, 0, %s27
      %s30 = sadd.s32 1, %s21
      %s31 = scalar_select %p28, %s30, %s21
      %p32 = scmp.ge.s32.totalorder %s31, 25
      %s33 = scalar_select %p32, 0, %s31
      %s34 = ssub.s32 %s22, %s29
      %p35 = scmp.eq.s32.totalorder %s34, 0
      %s37 = sadd.s32 %s36, 1
      %s38 = scalar_select %p35, %s36, %s37
      %p41 = pneg %p35
      %p42 = scmp.eq.s32.totalorder %s14, 24
      %p43 = por %p41, %p42
      %p44 = scmp.ne.s32.totalorder %s36, %s39
      %p45 = scmp.eq.s32.totalorder %s14, 0
      %p46 = por %p44, %p45
      %p47 = scmp.ne.s32.totalorder %s36, %s39
      %p48 = scmp.eq.s32.totalorder %s19, 24
      %p49 = por %p47, %p48
      %p50 = scmp.ne.s32.totalorder %s39, %s40
      %p51 = scmp.eq.s32.totalorder %s19, 0
      %p52 = por %p50, %p51
      %p53 = scmp.ne.s32.totalorder %s39, %s40
      %p54 = scmp.eq.s32.totalorder %s20, 24
      %p55 = por %p53, %p54
      %p57 = scmp.ne.s32.totalorder %s40, %s56
      %p58 = scmp.eq.s32.totalorder %s20, 0
      %p59 = por %p57, %p58
      %s60 = ssub.s32 %s21, %s33
      %p61 = scmp.eq.s32.totalorder %s60, 0
      %s63 = sadd.s32 %s62, 1
      %s64 = scalar_select %p61, %s62, %s63
      %p67 = pneg %p61
      %p68 = scmp.eq.s32.totalorder %s14, 24
      %p69 = por %p67, %p68
      %p70 = scmp.ne.s32.totalorder %s62, %s65
      %p71 = scmp.eq.s32.totalorder %s14, 0
      %p72 = por %p70, %p71
      %p73 = scmp.ne.s32.totalorder %s62, %s65
      %p74 = scmp.eq.s32.totalorder %s19, 24
      %p75 = por %p73, %p74
      %p76 = scmp.ne.s32.totalorder %s65, %s66
      %p77 = scmp.eq.s32.totalorder %s19, 0
      %p78 = por %p76, %p77
      %p79 = scmp.ne.s32.totalorder %s65, %s66
      %p80 = scmp.eq.s32.totalorder %s20, 24
      %p81 = por %p79, %p80
      %p83 = scmp.ne.s32.totalorder %s66, %s82
      %p84 = scmp.eq.s32.totalorder %s20, 0
      %p85 = por %p83, %p84
      %s87 = sadd.s32 %s86, 1
      %p90 = scmp.eq.s32.totalorder %s14, 24
      %p91 = scmp.ne.s32.totalorder %s86, %s88
      %p92 = scmp.eq.s32.totalorder %s14, 0
      %p93 = por %p91, %p92
      %p94 = scmp.ne.s32.totalorder %s86, %s88
      %p95 = scmp.eq.s32.totalorder %s19, 24
      %p96 = por %p94, %p95
      %p97 = scmp.ne.s32.totalorder %s88, %s89
      %p98 = scmp.eq.s32.totalorder %s19, 0
      %p99 = por %p97, %p98
      %p100 = scmp.ne.s32.totalorder %s88, %s89
      %p101 = scmp.eq.s32.totalorder %s20, 24
      %p102 = por %p100, %p101
      %p104 = scmp.ne.s32.totalorder %s89, %s103
      %p105 = scmp.eq.s32.totalorder %s20, 0
      %p106 = por %p104, %p105
      %s108 = sadd.s32 %s107, 1
      %p111 = scmp.eq.s32.totalorder %s14, 24
      %p112 = scmp.ne.s32.totalorder %s107, %s109
      %p113 = scmp.eq.s32.totalorder %s14, 0
      %p114 = por %p112, %p113
      %p115 = scmp.ne.s32.totalorder %s107, %s109
      %p116 = scmp.eq.s32.totalorder %s19, 24
      %p117 = por %p115, %p116
      %p118 = scmp.ne.s32.totalorder %s109, %s110
      %p119 = scmp.eq.s32.totalorder %s19, 0
      %p120 = por %p118, %p119
      %p121 = scmp.ne.s32.totalorder %s109, %s110
      %p122 = scmp.eq.s32.totalorder %s20, 24
      %p123 = por %p121, %p122
      %p125 = scmp.ne.s32.totalorder %s110, %s124
      %p126 = scmp.eq.s32.totalorder %s20, 0
      %p127 = por %p125, %p126
      %s128 = ssub.s32 %s22, %s29
      %s129 = ssub.s32 %s21, %s33
      %s130 = sor.u32 %s128, %s129
      %p131 = scmp.eq.s32.totalorder %s130, 0
      %s133 = sadd.s32 %s132, 1
      %s134 = scalar_select %p131, %s132, %s133
      %p137 = pneg %p131
      %p138 = scmp.eq.s32.totalorder %s14, 24
      %p139 = por %p137, %p138
      %p140 = scmp.ne.s32.totalorder %s132, %s135
      %p141 = scmp.eq.s32.totalorder %s14, 0
      %p142 = por %p140, %p141
      %p143 = scmp.ne.s32.totalorder %s132, %s135
      %p144 = scmp.eq.s32.totalorder %s19, 24
      %p145 = por %p143, %p144
      %p146 = scmp.ne.s32.totalorder %s135, %s136
      %p147 = scmp.eq.s32.totalorder %s19, 0
      %p148 = por %p146, %p147
      %p149 = scmp.ne.s32.totalorder %s135, %s136
      %p150 = scmp.eq.s32.totalorder %s20, 24
      %p151 = por %p149, %p150
      %p153 = scmp.ne.s32.totalorder %s136, %s152
      %p154 = scmp.eq.s32.totalorder %s20, 0
      %p155 = por %p153, %p154
      %p156 = scmp.le.s32.totalorder 1, %s14
      %p157 = scmp.lt.s32.totalorder %s14, 26
      %p158 = pnand %p156, %p157
      %p159 = pneg %p158
      // Predicated region
      $region9: #{gpt2_textual_head_forward.21} parent=5 // pred_check
        _
      $region10: #{gpt2_textual_head_forward.21} parent=5 // pred_check_branch
        %161 = sbr.rel (%p158) target = $region12
      $region11: #{gpt2_textual_head_forward.21} parent=5 // pred_region
        %s162 = ssub.s32 %s14, 1
        // Predicated region
        $region13: #{gpt2_textual_head_forward.21} parent=11 // pred_check
          %p163 = pneg %p52
        $region14: #{gpt2_textual_head_forward.21} parent=11 // pred_check_branch
          %165 = sbr.rel (%p163) target = $region16
        $region15: #{gpt2_textual_head_forward.21} parent=11 // pred_region
          %s166 = smul.u32 2, %s24
          %p167 = scmp.lt.s32.totalorder %s166, 1
          %s168 = scalar_select %p167, %s166, 1
          %s169 = smul.addr %s168, 8
          %s170 = scalar_lea.vmem %s0, %s169
          %s171 = smul.u32 2, %s24
        $region16: #{gpt2_textual_head_forward.21} parent=11 // pred_fallthru
          _
        // Predicated region
        $region17: #{gpt2_textual_head_forward.21} parent=11 // pred_check
          %p172 = pneg %p99
        $region18: #{gpt2_textual_head_forward.21} parent=11 // pred_check_branch
          %174 = sbr.rel (%p172) target = $region20
        $region19: #{gpt2_textual_head_forward.21} parent=11 // pred_region
          %s176 = ssub.s32 16, 16
          %177 = vsyncadd [#allocation5], %s176
          %s179 = sshll.u32 [#allocation4], 4
          %s180 = int_to_ptr.vmem [resolvable:$true] %s179
          %182 = dma.hbm_to_vmem [thread:$0]  %s2, 16, %s180, [#allocation5]
        $region20: #{gpt2_textual_head_forward.21} parent=11 // pred_fallthru
          _
        // Predicated region
        $region21: #{gpt2_textual_head_forward.21} parent=11 // pred_check
          %p183 = pneg %p120
        $region22: #{gpt2_textual_head_forward.21} parent=11 // pred_check_branch
          %185 = sbr.rel (%p183) target = $region24
        $region23: #{gpt2_textual_head_forward.21} parent=11 // pred_region
          %s187 = ssub.s32 16, 16
          %188 = vsyncadd [#allocation5], %s187
          %s190 = sshll.u32 [#allocation6], 4
          %s191 = int_to_ptr.vmem [resolvable:$true] %s190
          %193 = dma.hbm_to_vmem [thread:$0]  %s3, 16, %s191, [#allocation5]
        $region24: #{gpt2_textual_head_forward.21} parent=11 // pred_fallthru
          _
      $region12: #{gpt2_textual_head_forward.21} parent=5 // pred_fallthru
        _
      %p194 = scmp.lt.s32.totalorder %s14, 25
      // Predicated region
      $region25: #{gpt2_textual_head_forward.21} parent=5 // pred_check
        %p195 = pneg %p194
      $region26: #{gpt2_textual_head_forward.21} parent=5 // pred_check_branch
        %197 = sbr.rel (%p195) target = $region28
      $region27: #{gpt2_textual_head_forward.21} parent=5 // pred_region
        // Predicated region
        $region29: #{gpt2_textual_head_forward.21} parent=27 // pred_check
          %p198 = pneg %p72
        $region30: #{gpt2_textual_head_forward.21} parent=27 // pred_check_branch
          %200 = sbr.rel (%p198) target = $region32
        $region31: #{gpt2_textual_head_forward.21} parent=27 // pred_region
          %s201 = sand.u32 %s62, 1
          %s202 = scalar_lea.sflag [#allocation3], %s201
          %s203 = sand.u32 %s62, 1
          %s204 = smul.addr %s203, 1024
          %s205 = scalar_lea.vmem [#allocation2], %s204
          %s206 = smul.u32 256, %s21
          %s208 = ssub.s32 16384, 16384
          %209 = vsyncadd %s202, %s208
          %s210 = smul.addr %s206, 64
          %s211 = scalar_lea.hbm %s1, %s210
          %s212 = sshll.u32 %s205, 4
          %s213 = int_to_ptr.vmem [resolvable:$true] %s212
          %218 = dma.hbm_to_vmem [thread:$0]  %s211, 16384, %s213, %s202, 64, 64, 4
        $region32: #{gpt2_textual_head_forward.21} parent=27 // pred_fallthru
          _
      $region28: #{gpt2_textual_head_forward.21} parent=5 // pred_fallthru
        _
      %p219 = scmp.le.s32.totalorder 1, %s14
      %p220 = scmp.lt.s32.totalorder %s14, 26
      %p221 = pnand %p219, %p220
      %p222 = pneg %p221
      // Predicated region
      $region33: #{gpt2_textual_head_forward.21} parent=5 // pred_check
        _
      $region34: #{gpt2_textual_head_forward.21} parent=5 // pred_check_branch
        %224 = sbr.rel (%p221) target = $region36
      $region35: #{gpt2_textual_head_forward.21} parent=5 // pred_region
        %s225 = ssub.s32 %s14, 1
        %s226 = sand.u32 %s65, 1
        %s227 = scalar_lea.sflag [#allocation3], %s226
        %s228 = sand.u32 %s65, 1
        %s229 = smul.addr %s228, 1024
        %s230 = scalar_lea.vmem [#allocation2], %s229
        // Predicated region
        $region37: #{gpt2_textual_head_forward.21} parent=35 // pred_check
          %p231 = pneg %p78
        $region38: #{gpt2_textual_head_forward.21} parent=35 // pred_check_branch
          %233 = sbr.rel (%p231) target = $region40
        $region39: #{gpt2_textual_head_forward.21} parent=35 // pred_region
          %234 = dma.done %s227, 16384
        $region40: #{gpt2_textual_head_forward.21} parent=35 // pred_fallthru
          _
        // Predicated region
        $region41: #{gpt2_textual_head_forward.21} parent=35 // pred_check
          %p235 = pneg %p99
        $region42: #{gpt2_textual_head_forward.21} parent=35 // pred_check_branch
          %237 = sbr.rel (%p235) target = $region44
        $region43: #{gpt2_textual_head_forward.21} parent=35 // pred_region
          %238 = dma.done [#allocation5], 16
        $region44: #{gpt2_textual_head_forward.21} parent=35 // pred_fallthru
          _
        // Predicated region
        $region45: #{gpt2_textual_head_forward.21} parent=35 // pred_check
          %p239 = pneg %p120
        $region46: #{gpt2_textual_head_forward.21} parent=35 // pred_check_branch
          %241 = sbr.rel (%p239) target = $region48
        $region47: #{gpt2_textual_head_forward.21} parent=35 // pred_region
          %242 = dma.done [#allocation5], 16
        $region48: #{gpt2_textual_head_forward.21} parent=35 // pred_fallthru
          _
        %s243 = smul.u32 2, %s24
        %p244 = scmp.lt.s32.totalorder %s243, 1
        %s245 = scalar_select %p244, %s243, 1
        %s246 = smul.addr %s245, 8
        %s247 = scalar_lea.vmem %s0, %s246
        %p248 = pneg %p52
        %p249 = pneg %p49
        %s250 = sand.u32 %s65, 1
        %s251 = scalar_lea.sflag [#allocation3], %s250
        %s252 = sand.u32 %s65, 1
        %s253 = smul.addr %s252, 1024
        %s254 = scalar_lea.vmem [#allocation2], %s253
        %p255 = pneg %p78
        %p256 = pneg %p75
        %p257 = pneg %p99
        %p258 = pneg %p96
        %p259 = pneg %p120
        %p260 = pneg %p117
        %p261 = pneg %p148
        %p262 = pneg %p145
        %s263 = sand.u32 %s135, 1
        %s264 = sand.u32 %s135, 1
        %s265 = smul.addr %s264, 256
        %s266 = scalar_lea.vmem [#allocation7], %s265
        %s267 = smul.u32 2, %s24
        %p268 = scmp.lt.s32.totalorder %s267, 1
        %s269 = scalar_select %p268, %s267, 1
        %s270 = smul.addr %s269, 8
        %s271 = scalar_lea.vmem %s0, %s270
        %s272 = smul.u32 2, %s24
        %s273 = smul.u32 256, %s23
        %s274 = smul.u32 2, %s24
        %s275 = smul.u32 16, %s23
        %v277 = vld [vmem:[%s271] sm:$0xff]
        %v278 = vld [vmem:[%s271 + $0x8] sm:$0xff]
        %279 = vadd.xlane.f32.xlu0 %v277
        %v280 = vpop.xlane.xlu0 %279
        %281 = vadd.xlane.f32.xlu0 %v278
        %v282 = vpop.xlane.xlu0 %281
        %v283 = vrcp.pop 128.0
        %v284 = vmul.f32 %v280, %v283
        %v285 = vmul.f32 %v282, %v283
        %v286 = vsub.f32 %v277, %v284
        %v287 = vsub.f32 %v278, %v285
        %v288 = vmul.f32 %v286, %v286
        %v289 = vmul.f32 %v287, %v287
        %290 = vadd.xlane.f32.xlu0 %v288
        %v291 = vpop.xlane.xlu0 %290
        %292 = vadd.xlane.f32.xlu0 %v289
        %v293 = vpop.xlane.xlu0 %292
        %v294 = vmul.f32 %v291, %v283
        %v295 = vmul.f32 %v293, %v283
        %v296 = vadd.f32 %v294, 1e-05
        %v297 = vadd.f32 %v295, 1e-05
        %v298 = vrsqrt.pop %v296
        %v299 = vrsqrt.pop %v297
        %v300 = vmul.f32 %v286, %v298
        %v301 = vmul.f32 %v287, %v299
        %v302 = vld [vmem:[#allocation4] sm:$0x1]
        %v304 = vlaneseq
        %v305 = vshrl.u32 %v304, 7
        %v306 = vsub.s32 0, %v305
        %v307 = vrot.slane %v302, %v306
        %v309 = vmul.f32 %v300, %v307
        %v310 = vmul.f32 %v301, %v307
        %v311 = vld [vmem:[#allocation6] sm:$0x1]
        %v313 = vlaneseq
        %v314 = vshrl.u32 %v313, 7
        %v315 = vsub.s32 0, %v314
        %v316 = vrot.slane %v311, %v315
        %v318 = vadd.f32 %v309, %v316
        %v319 = vadd.f32 %v310, %v316
        %v320 = vpack.c.bf16 %v319, %v318
        %v321 = vld [vmem:[%s230] sm:$0xf]
        %v322 = vld [vmem:[%s230 + $0x4] sm:$0xf]
        %v323 = vld [vmem:[%s230 + $0x8] sm:$0xf]
        %v324 = vld [vmem:[%s230 + $0xc] sm:$0xf]
        %v325 = vld [vmem:[%s230 + $0x10] sm:$0xf]
        %v326 = vld [vmem:[%s230 + $0x14] sm:$0xf]
        %v327 = vld [vmem:[%s230 + $0x18] sm:$0xf]
        %v328 = vld [vmem:[%s230 + $0x1c] sm:$0xf]
        %v329 = vld [vmem:[%s230 + $0x20] sm:$0xf]
        %v330 = vld [vmem:[%s230 + $0x24] sm:$0xf]
        %v331 = vld [vmem:[%s230 + $0x28] sm:$0xf]
        %v332 = vld [vmem:[%s230 + $0x2c] sm:$0xf]
        %v333 = vld [vmem:[%s230 + $0x30] sm:$0xf]
        %v334 = vld [vmem:[%s230 + $0x34] sm:$0xf]
        %v335 = vld [vmem:[%s230 + $0x38] sm:$0xf]
        %v336 = vld [vmem:[%s230 + $0x3c] sm:$0xf]
        %v337 = vld [vmem:[%s230 + $0x40] sm:$0xf]
        %v338 = vld [vmem:[%s230 + $0x44] sm:$0xf]
        %v339 = vld [vmem:[%s230 + $0x48] sm:$0xf]
        %v340 = vld [vmem:[%s230 + $0x4c] sm:$0xf]
        %v341 = vld [vmem:[%s230 + $0x50] sm:$0xf]
        %v342 = vld [vmem:[%s230 + $0x54] sm:$0xf]
        %v343 = vld [vmem:[%s230 + $0x58] sm:$0xf]
        %v344 = vld [vmem:[%s230 + $0x5c] sm:$0xf]
        %v345 = vld [vmem:[%s230 + $0x60] sm:$0xf]
        %v346 = vld [vmem:[%s230 + $0x64] sm:$0xf]
        %v347 = vld [vmem:[%s230 + $0x68] sm:$0xf]
        %v348 = vld [vmem:[%s230 + $0x6c] sm:$0xf]
        %v349 = vld [vmem:[%s230 + $0x70] sm:$0xf]
        %v350 = vld [vmem:[%s230 + $0x74] sm:$0xf]
        %v351 = vld [vmem:[%s230 + $0x78] sm:$0xf]
        %v352 = vld [vmem:[%s230 + $0x7c] sm:$0xf]
        %v353 = vld [vmem:[%s230 + $0x80] sm:$0xf]
        %v354 = vld [vmem:[%s230 + $0x84] sm:$0xf]
        %v355 = vld [vmem:[%s230 + $0x88] sm:$0xf]
        %v356 = vld [vmem:[%s230 + $0x8c] sm:$0xf]
        %v357 = vld [vmem:[%s230 + $0x90] sm:$0xf]
        %v358 = vld [vmem:[%s230 + $0x94] sm:$0xf]
        %v359 = vld [vmem:[%s230 + $0x98] sm:$0xf]
        %v360 = vld [vmem:[%s230 + $0x9c] sm:$0xf]
        %v361 = vld [vmem:[%s230 + $0xa0] sm:$0xf]
        %v362 = vld [vmem:[%s230 + $0xa4] sm:$0xf]
        %v363 = vld [vmem:[%s230 + $0xa8] sm:$0xf]
        %v364 = vld [vmem:[%s230 + $0xac] sm:$0xf]
        %v365 = vld [vmem:[%s230 + $0xb0] sm:$0xf]
        %v366 = vld [vmem:[%s230 + $0xb4] sm:$0xf]
        %v367 = vld [vmem:[%s230 + $0xb8] sm:$0xf]
        %v368 = vld [vmem:[%s230 + $0xbc] sm:$0xf]
        %v369 = vld [vmem:[%s230 + $0xc0] sm:$0xf]
        %v370 = vld [vmem:[%s230 + $0xc4] sm:$0xf]
        %v371 = vld [vmem:[%s230 + $0xc8] sm:$0xf]
        %v372 = vld [vmem:[%s230 + $0xcc] sm:$0xf]
        %v373 = vld [vmem:[%s230 + $0xd0] sm:$0xf]
        %v374 = vld [vmem:[%s230 + $0xd4] sm:$0xf]
        %v375 = vld [vmem:[%s230 + $0xd8] sm:$0xf]
        %v376 = vld [vmem:[%s230 + $0xdc] sm:$0xf]
        %v377 = vld [vmem:[%s230 + $0xe0] sm:$0xf]
        %v378 = vld [vmem:[%s230 + $0xe4] sm:$0xf]
        %v379 = vld [vmem:[%s230 + $0xe8] sm:$0xf]
        %v380 = vld [vmem:[%s230 + $0xec] sm:$0xf]
        %v381 = vld [vmem:[%s230 + $0xf0] sm:$0xf]
        %v382 = vld [vmem:[%s230 + $0xf4] sm:$0xf]
        %v383 = vld [vmem:[%s230 + $0xf8] sm:$0xf]
        %v384 = vld [vmem:[%s230 + $0xfc] sm:$0xf]
        %v385 = vld [vmem:[%s230 + $0x100] sm:$0xf]
        %v386 = vld [vmem:[%s230 + $0x104] sm:$0xf]
        %v387 = vld [vmem:[%s230 + $0x108] sm:$0xf]
        %v388 = vld [vmem:[%s230 + $0x10c] sm:$0xf]
        %v389 = vld [vmem:[%s230 + $0x110] sm:$0xf]
        %v390 = vld [vmem:[%s230 + $0x114] sm:$0xf]
        %v391 = vld [vmem:[%s230 + $0x118] sm:$0xf]
        %v392 = vld [vmem:[%s230 + $0x11c] sm:$0xf]
        %v393 = vld [vmem:[%s230 + $0x120] sm:$0xf]
        %v394 = vld [vmem:[%s230 + $0x124] sm:$0xf]
        %v395 = vld [vmem:[%s230 + $0x128] sm:$0xf]
        %v396 = vld [vmem:[%s230 + $0x12c] sm:$0xf]
        %v397 = vld [vmem:[%s230 + $0x130] sm:$0xf]
        %v398 = vld [vmem:[%s230 + $0x134] sm:$0xf]
        %v399 = vld [vmem:[%s230 + $0x138] sm:$0xf]
        %v400 = vld [vmem:[%s230 + $0x13c] sm:$0xf]
        %v401 = vld [vmem:[%s230 + $0x140] sm:$0xf]
        %v402 = vld [vmem:[%s230 + $0x144] sm:$0xf]
        %v403 = vld [vmem:[%s230 + $0x148] sm:$0xf]
        %v404 = vld [vmem:[%s230 + $0x14c] sm:$0xf]
        %v405 = vld [vmem:[%s230 + $0x150] sm:$0xf]
        %v406 = vld [vmem:[%s230 + $0x154] sm:$0xf]
        %v407 = vld [vmem:[%s230 + $0x158] sm:$0xf]
        %v408 = vld [vmem:[%s230 + $0x15c] sm:$0xf]
        %v409 = vld [vmem:[%s230 + $0x160] sm:$0xf]
        %v410 = vld [vmem:[%s230 + $0x164] sm:$0xf]
        %v411 = vld [vmem:[%s230 + $0x168] sm:$0xf]
        %v412 = vld [vmem:[%s230 + $0x16c] sm:$0xf]
        %v413 = vld [vmem:[%s230 + $0x170] sm:$0xf]
        %v414 = vld [vmem:[%s230 + $0x174] sm:$0xf]
        %v415 = vld [vmem:[%s230 + $0x178] sm:$0xf]
        %v416 = vld [vmem:[%s230 + $0x17c] sm:$0xf]
        %v417 = vld [vmem:[%s230 + $0x180] sm:$0xf]
        %v418 = vld [vmem:[%s230 + $0x184] sm:$0xf]
        %v419 = vld [vmem:[%s230 + $0x188] sm:$0xf]
        %v420 = vld [vmem:[%s230 + $0x18c] sm:$0xf]
        %v421 = vld [vmem:[%s230 + $0x190] sm:$0xf]
        %v422 = vld [vmem:[%s230 + $0x194] sm:$0xf]
        %v423 = vld [vmem:[%s230 + $0x198] sm:$0xf]
        %v424 = vld [vmem:[%s230 + $0x19c] sm:$0xf]
        %v425 = vld [vmem:[%s230 + $0x1a0] sm:$0xf]
        %v426 = vld [vmem:[%s230 + $0x1a4] sm:$0xf]
        %v427 = vld [vmem:[%s230 + $0x1a8] sm:$0xf]
        %v428 = vld [vmem:[%s230 + $0x1ac] sm:$0xf]
        %v429 = vld [vmem:[%s230 + $0x1b0] sm:$0xf]
        %v430 = vld [vmem:[%s230 + $0x1b4] sm:$0xf]
        %v431 = vld [vmem:[%s230 + $0x1b8] sm:$0xf]
        %v432 = vld [vmem:[%s230 + $0x1bc] sm:$0xf]
        %v433 = vld [vmem:[%s230 + $0x1c0] sm:$0xf]
        %v434 = vld [vmem:[%s230 + $0x1c4] sm:$0xf]
        %v435 = vld [vmem:[%s230 + $0x1c8] sm:$0xf]
        %v436 = vld [vmem:[%s230 + $0x1cc] sm:$0xf]
        %v437 = vld [vmem:[%s230 + $0x1d0] sm:$0xf]
        %v438 = vld [vmem:[%s230 + $0x1d4] sm:$0xf]
        %v439 = vld [vmem:[%s230 + $0x1d8] sm:$0xf]
        %v440 = vld [vmem:[%s230 + $0x1dc] sm:$0xf]
        %v441 = vld [vmem:[%s230 + $0x1e0] sm:$0xf]
        %v442 = vld [vmem:[%s230 + $0x1e4] sm:$0xf]
        %v443 = vld [vmem:[%s230 + $0x1e8] sm:$0xf]
        %v444 = vld [vmem:[%s230 + $0x1ec] sm:$0xf]
        %v445 = vld [vmem:[%s230 + $0x1f0] sm:$0xf]
        %v446 = vld [vmem:[%s230 + $0x1f4] sm:$0xf]
        %v447 = vld [vmem:[%s230 + $0x1f8] sm:$0xf]
        %v448 = vld [vmem:[%s230 + $0x1fc] sm:$0xf]
        %v449 = vld [vmem:[%s230 + $0x200] sm:$0xf]
        %v450 = vld [vmem:[%s230 + $0x204] sm:$0xf]
        %v451 = vld [vmem:[%s230 + $0x208] sm:$0xf]
        %v452 = vld [vmem:[%s230 + $0x20c] sm:$0xf]
        %v453 = vld [vmem:[%s230 + $0x210] sm:$0xf]
        %v454 = vld [vmem:[%s230 + $0x214] sm:$0xf]
        %v455 = vld [vmem:[%s230 + $0x218] sm:$0xf]
        %v456 = vld [vmem:[%s230 + $0x21c] sm:$0xf]
        %v457 = vld [vmem:[%s230 + $0x220] sm:$0xf]
        %v458 = vld [vmem:[%s230 + $0x224] sm:$0xf]
        %v459 = vld [vmem:[%s230 + $0x228] sm:$0xf]
        %v460 = vld [vmem:[%s230 + $0x22c] sm:$0xf]
        %v461 = vld [vmem:[%s230 + $0x230] sm:$0xf]
        %v462 = vld [vmem:[%s230 + $0x234] sm:$0xf]
        %v463 = vld [vmem:[%s230 + $0x238] sm:$0xf]
        %v464 = vld [vmem:[%s230 + $0x23c] sm:$0xf]
        %v465 = vld [vmem:[%s230 + $0x240] sm:$0xf]
        %v466 = vld [vmem:[%s230 + $0x244] sm:$0xf]
        %v467 = vld [vmem:[%s230 + $0x248] sm:$0xf]
        %v468 = vld [vmem:[%s230 + $0x24c] sm:$0xf]
        %v469 = vld [vmem:[%s230 + $0x250] sm:$0xf]
        %v470 = vld [vmem:[%s230 + $0x254] sm:$0xf]
        %v471 = vld [vmem:[%s230 + $0x258] sm:$0xf]
        %v472 = vld [vmem:[%s230 + $0x25c] sm:$0xf]
        %v473 = vld [vmem:[%s230 + $0x260] sm:$0xf]
        %v474 = vld [vmem:[%s230 + $0x264] sm:$0xf]
        %v475 = vld [vmem:[%s230 + $0x268] sm:$0xf]
        %v476 = vld [vmem:[%s230 + $0x26c] sm:$0xf]
        %v477 = vld [vmem:[%s230 + $0x270] sm:$0xf]
        %v478 = vld [vmem:[%s230 + $0x274] sm:$0xf]
        %v479 = vld [vmem:[%s230 + $0x278] sm:$0xf]
        %v480 = vld [vmem:[%s230 + $0x27c] sm:$0xf]
        %v481 = vld [vmem:[%s230 + $0x280] sm:$0xf]
        %v482 = vld [vmem:[%s230 + $0x284] sm:$0xf]
        %v483 = vld [vmem:[%s230 + $0x288] sm:$0xf]
        %v484 = vld [vmem:[%s230 + $0x28c] sm:$0xf]
        %v485 = vld [vmem:[%s230 + $0x290] sm:$0xf]
        %v486 = vld [vmem:[%s230 + $0x294] sm:$0xf]
        %v487 = vld [vmem:[%s230 + $0x298] sm:$0xf]
        %v488 = vld [vmem:[%s230 + $0x29c] sm:$0xf]
        %v489 = vld [vmem:[%s230 + $0x2a0] sm:$0xf]
        %v490 = vld [vmem:[%s230 + $0x2a4] sm:$0xf]
        %v491 = vld [vmem:[%s230 + $0x2a8] sm:$0xf]
        %v492 = vld [vmem:[%s230 + $0x2ac] sm:$0xf]
        %v493 = vld [vmem:[%s230 + $0x2b0] sm:$0xf]
        %v494 = vld [vmem:[%s230 + $0x2b4] sm:$0xf]
        %v495 = vld [vmem:[%s230 + $0x2b8] sm:$0xf]
        %v496 = vld [vmem:[%s230 + $0x2bc] sm:$0xf]
        %v497 = vld [vmem:[%s230 + $0x2c0] sm:$0xf]
        %v498 = vld [vmem:[%s230 + $0x2c4] sm:$0xf]
        %v499 = vld [vmem:[%s230 + $0x2c8] sm:$0xf]
        %v500 = vld [vmem:[%s230 + $0x2cc] sm:$0xf]
        %v501 = vld [vmem:[%s230 + $0x2d0] sm:$0xf]
        %v502 = vld [vmem:[%s230 + $0x2d4] sm:$0xf]
        %v503 = vld [vmem:[%s230 + $0x2d8] sm:$0xf]
        %v504 = vld [vmem:[%s230 + $0x2dc] sm:$0xf]
        %v505 = vld [vmem:[%s230 + $0x2e0] sm:$0xf]
        %v506 = vld [vmem:[%s230 + $0x2e4] sm:$0xf]
        %v507 = vld [vmem:[%s230 + $0x2e8] sm:$0xf]
        %v508 = vld [vmem:[%s230 + $0x2ec] sm:$0xf]
        %v509 = vld [vmem:[%s230 + $0x2f0] sm:$0xf]
        %v510 = vld [vmem:[%s230 + $0x2f4] sm:$0xf]
        %v511 = vld [vmem:[%s230 + $0x2f8] sm:$0xf]
        %v512 = vld [vmem:[%s230 + $0x2fc] sm:$0xf]
        %v513 = vld [vmem:[%s230 + $0x300] sm:$0xf]
        %v514 = vld [vmem:[%s230 + $0x304] sm:$0xf]
        %v515 = vld [vmem:[%s230 + $0x308] sm:$0xf]
        %v516 = vld [vmem:[%s230 + $0x30c] sm:$0xf]
        %v517 = vld [vmem:[%s230 + $0x310] sm:$0xf]
        %v518 = vld [vmem:[%s230 + $0x314] sm:$0xf]
        %v519 = vld [vmem:[%s230 + $0x318] sm:$0xf]
        %v520 = vld [vmem:[%s230 + $0x31c] sm:$0xf]
        %v521 = vld [vmem:[%s230 + $0x320] sm:$0xf]
        %v522 = vld [vmem:[%s230 + $0x324] sm:$0xf]
        %v523 = vld [vmem:[%s230 + $0x328] sm:$0xf]
        %v524 = vld [vmem:[%s230 + $0x32c] sm:$0xf]
        %v525 = vld [vmem:[%s230 + $0x330] sm:$0xf]
        %v526 = vld [vmem:[%s230 + $0x334] sm:$0xf]
        %v527 = vld [vmem:[%s230 + $0x338] sm:$0xf]
        %v528 = vld [vmem:[%s230 + $0x33c] sm:$0xf]
        %v529 = vld [vmem:[%s230 + $0x340] sm:$0xf]
        %v530 = vld [vmem:[%s230 + $0x344] sm:$0xf]
        %v531 = vld [vmem:[%s230 + $0x348] sm:$0xf]
        %v532 = vld [vmem:[%s230 + $0x34c] sm:$0xf]
        %v533 = vld [vmem:[%s230 + $0x350] sm:$0xf]
        %v534 = vld [vmem:[%s230 + $0x354] sm:$0xf]
        %v535 = vld [vmem:[%s230 + $0x358] sm:$0xf]
        %v536 = vld [vmem:[%s230 + $0x35c] sm:$0xf]
        %v537 = vld [vmem:[%s230 + $0x360] sm:$0xf]
        %v538 = vld [vmem:[%s230 + $0x364] sm:$0xf]
        %v539 = vld [vmem:[%s230 + $0x368] sm:$0xf]
        %v540 = vld [vmem:[%s230 + $0x36c] sm:$0xf]
        %v541 = vld [vmem:[%s230 + $0x370] sm:$0xf]
        %v542 = vld [vmem:[%s230 + $0x374] sm:$0xf]
        %v543 = vld [vmem:[%s230 + $0x378] sm:$0xf]
        %v544 = vld [vmem:[%s230 + $0x37c] sm:$0xf]
        %v545 = vld [vmem:[%s230 + $0x380] sm:$0xf]
        %v546 = vld [vmem:[%s230 + $0x384] sm:$0xf]
        %v547 = vld [vmem:[%s230 + $0x388] sm:$0xf]
        %v548 = vld [vmem:[%s230 + $0x38c] sm:$0xf]
        %v549 = vld [vmem:[%s230 + $0x390] sm:$0xf]
        %v550 = vld [vmem:[%s230 + $0x394] sm:$0xf]
        %v551 = vld [vmem:[%s230 + $0x398] sm:$0xf]
        %v552 = vld [vmem:[%s230 + $0x39c] sm:$0xf]
        %v553 = vld [vmem:[%s230 + $0x3a0] sm:$0xf]
        %v554 = vld [vmem:[%s230 + $0x3a4] sm:$0xf]
        %v555 = vld [vmem:[%s230 + $0x3a8] sm:$0xf]
        %v556 = vld [vmem:[%s230 + $0x3ac] sm:$0xf]
        %v557 = vld [vmem:[%s230 + $0x3b0] sm:$0xf]
        %v558 = vld [vmem:[%s230 + $0x3b4] sm:$0xf]
        %v559 = vld [vmem:[%s230 + $0x3b8] sm:$0xf]
        %v560 = vld [vmem:[%s230 + $0x3bc] sm:$0xf]
        %v561 = vld [vmem:[%s230 + $0x3c0] sm:$0xf]
        %v562 = vld [vmem:[%s230 + $0x3c4] sm:$0xf]
        %v563 = vld [vmem:[%s230 + $0x3c8] sm:$0xf]
        %v564 = vld [vmem:[%s230 + $0x3cc] sm:$0xf]
        %v565 = vld [vmem:[%s230 + $0x3d0] sm:$0xf]
        %v566 = vld [vmem:[%s230 + $0x3d4] sm:$0xf]
        %v567 = vld [vmem:[%s230 + $0x3d8] sm:$0xf]
        %v568 = vld [vmem:[%s230 + $0x3dc] sm:$0xf]
        %v569 = vld [vmem:[%s230 + $0x3e0] sm:$0xf]
        %v570 = vld [vmem:[%s230 + $0x3e4] sm:$0xf]
        %v571 = vld [vmem:[%s230 + $0x3e8] sm:$0xf]
        %v572 = vld [vmem:[%s230 + $0x3ec] sm:$0xf]
        %v573 = vld [vmem:[%s230 + $0x3f0] sm:$0xf]
        %v574 = vld [vmem:[%s230 + $0x3f4] sm:$0xf]
        %v575 = vld [vmem:[%s230 + $0x3f8] sm:$0xf]
        %v576 = vld [vmem:[%s230 + $0x3fc] sm:$0xf]
        %v833 = vunpack.c.l.b16 %v321
        %v834 = vunpack.c.l.b16 %v322
        %v835 = vunpack.c.l.b16 %v323
        %v836 = vunpack.c.l.b16 %v324
        %v837 = vunpack.c.l.b16 %v325
        %v838 = vunpack.c.l.b16 %v326
        %v839 = vunpack.c.l.b16 %v327
        %v840 = vunpack.c.l.b16 %v328
        %v841 = vunpack.c.l.b16 %v329
        %v842 = vunpack.c.l.b16 %v330
        %v843 = vunpack.c.l.b16 %v331
        %v844 = vunpack.c.l.b16 %v332
        %v845 = vunpack.c.l.b16 %v333
        %v846 = vunpack.c.l.b16 %v334
        %v847 = vunpack.c.l.b16 %v335
        %v848 = vunpack.c.l.b16 %v336
        %v849 = vunpack.c.l.b16 %v337
        %v850 = vunpack.c.l.b16 %v338
        %v851 = vunpack.c.l.b16 %v339
        %v852 = vunpack.c.l.b16 %v340
        %v853 = vunpack.c.l.b16 %v341
        %v854 = vunpack.c.l.b16 %v342
        %v855 = vunpack.c.l.b16 %v343
        %v856 = vunpack.c.l.b16 %v344
        %v857 = vunpack.c.l.b16 %v345
        %v858 = vunpack.c.l.b16 %v346
        %v859 = vunpack.c.l.b16 %v347
        %v860 = vunpack.c.l.b16 %v348
        %v861 = vunpack.c.l.b16 %v349
        %v862 = vunpack.c.l.b16 %v350
        %v863 = vunpack.c.l.b16 %v351
        %v864 = vunpack.c.l.b16 %v352
        %v865 = vunpack.c.l.b16 %v353
        %v866 = vunpack.c.l.b16 %v354
        %v867 = vunpack.c.l.b16 %v355
        %v868 = vunpack.c.l.b16 %v356
        %v869 = vunpack.c.l.b16 %v357
        %v870 = vunpack.c.l.b16 %v358
        %v871 = vunpack.c.l.b16 %v359
        %v872 = vunpack.c.l.b16 %v360
        %v873 = vunpack.c.l.b16 %v361
        %v874 = vunpack.c.l.b16 %v362
        %v875 = vunpack.c.l.b16 %v363
        %v876 = vunpack.c.l.b16 %v364
        %v877 = vunpack.c.l.b16 %v365
        %v878 = vunpack.c.l.b16 %v366
        %v879 = vunpack.c.l.b16 %v367
        %v880 = vunpack.c.l.b16 %v368
        %v881 = vunpack.c.l.b16 %v369
        %v882 = vunpack.c.l.b16 %v370
        %v883 = vunpack.c.l.b16 %v371
        %v884 = vunpack.c.l.b16 %v372
        %v885 = vunpack.c.l.b16 %v373
        %v886 = vunpack.c.l.b16 %v374
        %v887 = vunpack.c.l.b16 %v375
        %v888 = vunpack.c.l.b16 %v376
        %v889 = vunpack.c.l.b16 %v377
        %v890 = vunpack.c.l.b16 %v378
        %v891 = vunpack.c.l.b16 %v379
        %v892 = vunpack.c.l.b16 %v380
        %v893 = vunpack.c.l.b16 %v381
        %v894 = vunpack.c.l.b16 %v382
        %v895 = vunpack.c.l.b16 %v383
        %v896 = vunpack.c.l.b16 %v384
        %v897 = vunpack.c.l.b16 %v385
        %v898 = vunpack.c.l.b16 %v386
        %v899 = vunpack.c.l.b16 %v387
        %v900 = vunpack.c.l.b16 %v388
        %v901 = vunpack.c.l.b16 %v389
        %v902 = vunpack.c.l.b16 %v390
        %v903 = vunpack.c.l.b16 %v391
        %v904 = vunpack.c.l.b16 %v392
        %v905 = vunpack.c.l.b16 %v393
        %v906 = vunpack.c.l.b16 %v394
        %v907 = vunpack.c.l.b16 %v395
        %v908 = vunpack.c.l.b16 %v396
        %v909 = vunpack.c.l.b16 %v397
        %v910 = vunpack.c.l.b16 %v398
        %v911 = vunpack.c.l.b16 %v399
        %v912 = vunpack.c.l.b16 %v400
        %v913 = vunpack.c.l.b16 %v401
        %v914 = vunpack.c.l.b16 %v402
        %v915 = vunpack.c.l.b16 %v403
        %v916 = vunpack.c.l.b16 %v404
        %v917 = vunpack.c.l.b16 %v405
        %v918 = vunpack.c.l.b16 %v406
        %v919 = vunpack.c.l.b16 %v407
        %v920 = vunpack.c.l.b16 %v408
        %v921 = vunpack.c.l.b16 %v409
        %v922 = vunpack.c.l.b16 %v410
        %v923 = vunpack.c.l.b16 %v411
        %v924 = vunpack.c.l.b16 %v412
        %v925 = vunpack.c.l.b16 %v413
        %v926 = vunpack.c.l.b16 %v414
        %v927 = vunpack.c.l.b16 %v415
        %v928 = vunpack.c.l.b16 %v416
        %v929 = vunpack.c.l.b16 %v417
        %v930 = vunpack.c.l.b16 %v418
        %v931 = vunpack.c.l.b16 %v419
        %v932 = vunpack.c.l.b16 %v420
        %v933 = vunpack.c.l.b16 %v421
        %v934 = vunpack.c.l.b16 %v422
        %v935 = vunpack.c.l.b16 %v423
        %v936 = vunpack.c.l.b16 %v424
        %v937 = vunpack.c.l.b16 %v425
        %v938 = vunpack.c.l.b16 %v426
        %v939 = vunpack.c.l.b16 %v427
        %v940 = vunpack.c.l.b16 %v428
        %v941 = vunpack.c.l.b16 %v429
        %v942 = vunpack.c.l.b16 %v430
        %v943 = vunpack.c.l.b16 %v431
        %v944 = vunpack.c.l.b16 %v432
        %v945 = vunpack.c.l.b16 %v433
        %v946 = vunpack.c.l.b16 %v434
        %v947 = vunpack.c.l.b16 %v435
        %v948 = vunpack.c.l.b16 %v436
        %v949 = vunpack.c.l.b16 %v437
        %v950 = vunpack.c.l.b16 %v438
        %v951 = vunpack.c.l.b16 %v439
        %v952 = vunpack.c.l.b16 %v440
        %v953 = vunpack.c.l.b16 %v441
        %v954 = vunpack.c.l.b16 %v442
        %v955 = vunpack.c.l.b16 %v443
        %v956 = vunpack.c.l.b16 %v444
        %v957 = vunpack.c.l.b16 %v445
        %v958 = vunpack.c.l.b16 %v446
        %v959 = vunpack.c.l.b16 %v447
        %v960 = vunpack.c.l.b16 %v448
        %v961 = vunpack.c.l.b16 %v449
        %v962 = vunpack.c.l.b16 %v450
        %v963 = vunpack.c.l.b16 %v451
        %v964 = vunpack.c.l.b16 %v452
        %v965 = vunpack.c.l.b16 %v453
        %v966 = vunpack.c.l.b16 %v454
        %v967 = vunpack.c.l.b16 %v455
        %v968 = vunpack.c.l.b16 %v456
        %v969 = vunpack.c.l.b16 %v457
        %v970 = vunpack.c.l.b16 %v458
        %v971 = vunpack.c.l.b16 %v459
        %v972 = vunpack.c.l.b16 %v460
        %v973 = vunpack.c.l.b16 %v461
        %v974 = vunpack.c.l.b16 %v462
        %v975 = vunpack.c.l.b16 %v463
        %v976 = vunpack.c.l.b16 %v464
        %v977 = vunpack.c.l.b16 %v465
        %v978 = vunpack.c.l.b16 %v466
        %v979 = vunpack.c.l.b16 %v467
        %v980 = vunpack.c.l.b16 %v468
        %v981 = vunpack.c.l.b16 %v469
        %v982 = vunpack.c.l.b16 %v470
        %v983 = vunpack.c.l.b16 %v471
        %v984 = vunpack.c.l.b16 %v472
        %v985 = vunpack.c.l.b16 %v473
        %v986 = vunpack.c.l.b16 %v474
        %v987 = vunpack.c.l.b16 %v475
        %v988 = vunpack.c.l.b16 %v476
        %v989 = vunpack.c.l.b16 %v477
        %v990 = vunpack.c.l.b16 %v478
        %v991 = vunpack.c.l.b16 %v479
        %v992 = vunpack.c.l.b16 %v480
        %v993 = vunpack.c.l.b16 %v481
        %v994 = vunpack.c.l.b16 %v482
        %v995 = vunpack.c.l.b16 %v483
        %v996 = vunpack.c.l.b16 %v484
        %v997 = vunpack.c.l.b16 %v485
        %v998 = vunpack.c.l.b16 %v486
        %v999 = vunpack.c.l.b16 %v487
        %v1000 = vunpack.c.l.b16 %v488
        %v1001 = vunpack.c.l.b16 %v489
        %v1002 = vunpack.c.l.b16 %v490
        %v1003 = vunpack.c.l.b16 %v491
        %v1004 = vunpack.c.l.b16 %v492
        %v1005 = vunpack.c.l.b16 %v493
        %v1006 = vunpack.c.l.b16 %v494
        %v1007 = vunpack.c.l.b16 %v495
        %v1008 = vunpack.c.l.b16 %v496
        %v1009 = vunpack.c.l.b16 %v497
        %v1010 = vunpack.c.l.b16 %v498
        %v1011 = vunpack.c.l.b16 %v499
        %v1012 = vunpack.c.l.b16 %v500
        %v1013 = vunpack.c.l.b16 %v501
        %v1014 = vunpack.c.l.b16 %v502
        %v1015 = vunpack.c.l.b16 %v503
        %v1016 = vunpack.c.l.b16 %v504
        %v1017 = vunpack.c.l.b16 %v505
        %v1018 = vunpack.c.l.b16 %v506
        %v1019 = vunpack.c.l.b16 %v507
        %v1020 = vunpack.c.l.b16 %v508
        %v1021 = vunpack.c.l.b16 %v509
        %v1022 = vunpack.c.l.b16 %v510
        %v1023 = vunpack.c.l.b16 %v511
        %v1024 = vunpack.c.l.b16 %v512
        %v1025 = vunpack.c.l.b16 %v513
        %v1026 = vunpack.c.l.b16 %v514
        %v1027 = vunpack.c.l.b16 %v515
        %v1028 = vunpack.c.l.b16 %v516
        %v1029 = vunpack.c.l.b16 %v517
        %v1030 = vunpack.c.l.b16 %v518
        %v1031 = vunpack.c.l.b16 %v519
        %v1032 = vunpack.c.l.b16 %v520
        %v1033 = vunpack.c.l.b16 %v521
        %v1034 = vunpack.c.l.b16 %v522
        %v1035 = vunpack.c.l.b16 %v523
        %v1036 = vunpack.c.l.b16 %v524
        %v1037 = vunpack.c.l.b16 %v525
        %v1038 = vunpack.c.l.b16 %v526
        %v1039 = vunpack.c.l.b16 %v527
        %v1040 = vunpack.c.l.b16 %v528
        %v1041 = vunpack.c.l.b16 %v529
        %v1042 = vunpack.c.l.b16 %v530
        %v1043 = vunpack.c.l.b16 %v531
        %v1044 = vunpack.c.l.b16 %v532
        %v1045 = vunpack.c.l.b16 %v533
        %v1046 = vunpack.c.l.b16 %v534
        %v1047 = vunpack.c.l.b16 %v535
        %v1048 = vunpack.c.l.b16 %v536
        %v1049 = vunpack.c.l.b16 %v537
        %v1050 = vunpack.c.l.b16 %v538
        %v1051 = vunpack.c.l.b16 %v539
        %v1052 = vunpack.c.l.b16 %v540
        %v1053 = vunpack.c.l.b16 %v541
        %v1054 = vunpack.c.l.b16 %v542
        %v1055 = vunpack.c.l.b16 %v543
        %v1056 = vunpack.c.l.b16 %v544
        %v1057 = vunpack.c.l.b16 %v545
        %v1058 = vunpack.c.l.b16 %v546
        %v1059 = vunpack.c.l.b16 %v547
        %v1060 = vunpack.c.l.b16 %v548
        %v1061 = vunpack.c.l.b16 %v549
        %v1062 = vunpack.c.l.b16 %v550
        %v1063 = vunpack.c.l.b16 %v551
        %v1064 = vunpack.c.l.b16 %v552
        %v1065 = vunpack.c.l.b16 %v553
        %v1066 = vunpack.c.l.b16 %v554
        %v1067 = vunpack.c.l.b16 %v555
        %v1068 = vunpack.c.l.b16 %v556
        %v1069 = vunpack.c.l.b16 %v557
        %v1070 = vunpack.c.l.b16 %v558
        %v1071 = vunpack.c.l.b16 %v559
        %v1072 = vunpack.c.l.b16 %v560
        %v1073 = vunpack.c.l.b16 %v561
        %v1074 = vunpack.c.l.b16 %v562
        %v1075 = vunpack.c.l.b16 %v563
        %v1076 = vunpack.c.l.b16 %v564
        %v1077 = vunpack.c.l.b16 %v565
        %v1078 = vunpack.c.l.b16 %v566
        %v1079 = vunpack.c.l.b16 %v567
        %v1080 = vunpack.c.l.b16 %v568
        %v1081 = vunpack.c.l.b16 %v569
        %v1082 = vunpack.c.l.b16 %v570
        %v1083 = vunpack.c.l.b16 %v571
        %v1084 = vunpack.c.l.b16 %v572
        %v1085 = vunpack.c.l.b16 %v573
        %v1086 = vunpack.c.l.b16 %v574
        %v1087 = vunpack.c.l.b16 %v575
        %v1088 = vunpack.c.l.b16 %v576
        %v1089 = vpack.c.b16 %v834, %v833
        %v1090 = vpack.c.b16 %v836, %v835
        %v1091 = vpack.c.b16 %v838, %v837
        %v1092 = vpack.c.b16 %v840, %v839
        %v1093 = vpack.c.b16 %v842, %v841
        %v1094 = vpack.c.b16 %v844, %v843
        %v1095 = vpack.c.b16 %v846, %v845
        %v1096 = vpack.c.b16 %v848, %v847
        %v1097 = vpack.c.b16 %v850, %v849
        %v1098 = vpack.c.b16 %v852, %v851
        %v1099 = vpack.c.b16 %v854, %v853
        %v1100 = vpack.c.b16 %v856, %v855
        %v1101 = vpack.c.b16 %v858, %v857
        %v1102 = vpack.c.b16 %v860, %v859
        %v1103 = vpack.c.b16 %v862, %v861
        %v1104 = vpack.c.b16 %v864, %v863
        %v1105 = vpack.c.b16 %v866, %v865
        %v1106 = vpack.c.b16 %v868, %v867
        %v1107 = vpack.c.b16 %v870, %v869
        %v1108 = vpack.c.b16 %v872, %v871
        %v1109 = vpack.c.b16 %v874, %v873
        %v1110 = vpack.c.b16 %v876, %v875
        %v1111 = vpack.c.b16 %v878, %v877
        %v1112 = vpack.c.b16 %v880, %v879
        %v1113 = vpack.c.b16 %v882, %v881
        %v1114 = vpack.c.b16 %v884, %v883
        %v1115 = vpack.c.b16 %v886, %v885
        %v1116 = vpack.c.b16 %v888, %v887
        %v1117 = vpack.c.b16 %v890, %v889
        %v1118 = vpack.c.b16 %v892, %v891
        %v1119 = vpack.c.b16 %v894, %v893
        %v1120 = vpack.c.b16 %v896, %v895
        %v1121 = vpack.c.b16 %v898, %v897
        %v1122 = vpack.c.b16 %v900, %v899
        %v1123 = vpack.c.b16 %v902, %v901
        %v1124 = vpack.c.b16 %v904, %v903
        %v1125 = vpack.c.b16 %v906, %v905
        %v1126 = vpack.c.b16 %v908, %v907
        %v1127 = vpack.c.b16 %v910, %v909
        %v1128 = vpack.c.b16 %v912, %v911
        %v1129 = vpack.c.b16 %v914, %v913
        %v1130 = vpack.c.b16 %v916, %v915
        %v1131 = vpack.c.b16 %v918, %v917
        %v1132 = vpack.c.b16 %v920, %v919
        %v1133 = vpack.c.b16 %v922, %v921
        %v1134 = vpack.c.b16 %v924, %v923
        %v1135 = vpack.c.b16 %v926, %v925
        %v1136 = vpack.c.b16 %v928, %v927
        %v1137 = vpack.c.b16 %v930, %v929
        %v1138 = vpack.c.b16 %v932, %v931
        %v1139 = vpack.c.b16 %v934, %v933
        %v1140 = vpack.c.b16 %v936, %v935
        %v1141 = vpack.c.b16 %v938, %v937
        %v1142 = vpack.c.b16 %v940, %v939
        %v1143 = vpack.c.b16 %v942, %v941
        %v1144 = vpack.c.b16 %v944, %v943
        %v1145 = vpack.c.b16 %v946, %v945
        %v1146 = vpack.c.b16 %v948, %v947
        %v1147 = vpack.c.b16 %v950, %v949
        %v1148 = vpack.c.b16 %v952, %v951
        %v1149 = vpack.c.b16 %v954, %v953
        %v1150 = vpack.c.b16 %v956, %v955
        %v1151 = vpack.c.b16 %v958, %v957
        %v1152 = vpack.c.b16 %v960, %v959
        %v1153 = vpack.c.b16 %v962, %v961
        %v1154 = vpack.c.b16 %v964, %v963
        %v1155 = vpack.c.b16 %v966, %v965
        %v1156 = vpack.c.b16 %v968, %v967
        %v1157 = vpack.c.b16 %v970, %v969
        %v1158 = vpack.c.b16 %v972, %v971
        %v1159 = vpack.c.b16 %v974, %v973
        %v1160 = vpack.c.b16 %v976, %v975
        %v1161 = vpack.c.b16 %v978, %v977
        %v1162 = vpack.c.b16 %v980, %v979
        %v1163 = vpack.c.b16 %v982, %v981
        %v1164 = vpack.c.b16 %v984, %v983
        %v1165 = vpack.c.b16 %v986, %v985
        %v1166 = vpack.c.b16 %v988, %v987
        %v1167 = vpack.c.b16 %v990, %v989
        %v1168 = vpack.c.b16 %v992, %v991
        %v1169 = vpack.c.b16 %v994, %v993
        %v1170 = vpack.c.b16 %v996, %v995
        %v1171 = vpack.c.b16 %v998, %v997
        %v1172 = vpack.c.b16 %v1000, %v999
        %v1173 = vpack.c.b16 %v1002, %v1001
        %v1174 = vpack.c.b16 %v1004, %v1003
        %v1175 = vpack.c.b16 %v1006, %v1005
        %v1176 = vpack.c.b16 %v1008, %v1007
        %v1177 = vpack.c.b16 %v1010, %v1009
        %v1178 = vpack.c.b16 %v1012, %v1011
        %v1179 = vpack.c.b16 %v1014, %v1013
        %v1180 = vpack.c.b16 %v1016, %v1015
        %v1181 = vpack.c.b16 %v1018, %v1017
        %v1182 = vpack.c.b16 %v1020, %v1019
        %v1183 = vpack.c.b16 %v1022, %v1021
        %v1184 = vpack.c.b16 %v1024, %v1023
        %v1185 = vpack.c.b16 %v1026, %v1025
        %v1186 = vpack.c.b16 %v1028, %v1027
        %v1187 = vpack.c.b16 %v1030, %v1029
        %v1188 = vpack.c.b16 %v1032, %v1031
        %v1189 = vpack.c.b16 %v1034, %v1033
        %v1190 = vpack.c.b16 %v1036, %v1035
        %v1191 = vpack.c.b16 %v1038, %v1037
        %v1192 = vpack.c.b16 %v1040, %v1039
        %v1193 = vpack.c.b16 %v1042, %v1041
        %v1194 = vpack.c.b16 %v1044, %v1043
        %v1195 = vpack.c.b16 %v1046, %v1045
        %v1196 = vpack.c.b16 %v1048, %v1047
        %v1197 = vpack.c.b16 %v1050, %v1049
        %v1198 = vpack.c.b16 %v1052, %v1051
        %v1199 = vpack.c.b16 %v1054, %v1053
        %v1200 = vpack.c.b16 %v1056, %v1055
        %v1201 = vpack.c.b16 %v1058, %v1057
        %v1202 = vpack.c.b16 %v1060, %v1059
        %v1203 = vpack.c.b16 %v1062, %v1061
        %v1204 = vpack.c.b16 %v1064, %v1063
        %v1205 = vpack.c.b16 %v1066, %v1065
        %v1206 = vpack.c.b16 %v1068, %v1067
        %v1207 = vpack.c.b16 %v1070, %v1069
        %v1208 = vpack.c.b16 %v1072, %v1071
        %v1209 = vpack.c.b16 %v1074, %v1073
        %v1210 = vpack.c.b16 %v1076, %v1075
        %v1211 = vpack.c.b16 %v1078, %v1077
        %v1212 = vpack.c.b16 %v1080, %v1079
        %v1213 = vpack.c.b16 %v1082, %v1081
        %v1214 = vpack.c.b16 %v1084, %v1083
        %v1215 = vpack.c.b16 %v1086, %v1085
        %v1216 = vpack.c.b16 %v1088, %v1087
        %1345 = vmatprep.subr.bf16.mxu0 0
        %1346 = vmatpush1.bf16.xpose.msra.mxu0 %v1089
        %1347 = vmatprep.subr.bf16.mxu0 0
        %1348 = vmatpush1.bf16.xpose.msra.mxu0 %v1090
        %1349 = vmatprep.subr.bf16.mxu0 0
        %1350 = vmatpush1.bf16.xpose.msra.mxu0 %v1091
        %1351 = vmatprep.subr.bf16.mxu0 0
        %1352 = vmatpush1.bf16.xpose.msra.mxu0 %v1092
        %1353 = vmatprep.subr.bf16.mxu0 0
        %1354 = vmatpush1.bf16.xpose.msra.mxu0 %v1093
        %1355 = vmatprep.subr.bf16.mxu0 0
        %1356 = vmatpush1.bf16.xpose.msra.mxu0 %v1094
        %1357 = vmatprep.subr.bf16.mxu0 0
        %1358 = vmatpush1.bf16.xpose.msra.mxu0 %v1095
        %1359 = vmatprep.subr.bf16.mxu0 0
        %1360 = vmatpush1.bf16.xpose.msra.mxu0 %v1096
        %1361 = vmatprep.subr.bf16.mxu0 0
        %1362 = vmatpush1.bf16.xpose.msra.mxu0 %v1097
        %1363 = vmatprep.subr.bf16.mxu0 0
        %1364 = vmatpush1.bf16.xpose.msra.mxu0 %v1098
        %1365 = vmatprep.subr.bf16.mxu0 0
        %1366 = vmatpush1.bf16.xpose.msra.mxu0 %v1099
        %1367 = vmatprep.subr.bf16.mxu0 0
        %1368 = vmatpush1.bf16.xpose.msra.mxu0 %v1100
        %1369 = vmatprep.subr.bf16.mxu0 0
        %1370 = vmatpush1.bf16.xpose.msra.mxu0 %v1101
        %1371 = vmatprep.subr.bf16.mxu0 0
        %1372 = vmatpush1.bf16.xpose.msra.mxu0 %v1102
        %1373 = vmatprep.subr.bf16.mxu0 0
        %1374 = vmatpush1.bf16.xpose.msra.mxu0 %v1103
        %1375 = vmatprep.subr.bf16.mxu0 0
        %1376 = vmatpush1.bf16.xpose.msra.mxu0 %v1104
        %1377 = vmatprep.mubr.bf16.mxu0 0
        %1378 = vmatmul.mubr.bf16.gmra.mrb[0].mxu0 %v320
        %v1379 = vpop.f32.mrb[0].mxu0
        %v1380 = vadd.f32 0.0, %v1379
        %v1381 = vpop.f32.mrb[0].mxu0
        %v1382 = vadd.f32 0.0, %v1381
        %v1383 = vpop.f32.mrb[0].mxu0
        %v1384 = vadd.f32 0.0, %v1383
        %v1385 = vpop.f32.mrb[0].mxu0
        %v1386 = vadd.f32 0.0, %v1385
        %1387 = vdwg.mxu0
        %1388 = vmatprep.subr.bf16.mxu0 0
        %1389 = vmatpush1.bf16.xpose.msra.mxu0 %v1105
        %1390 = vmatprep.subr.bf16.mxu0 0
        %1391 = vmatpush1.bf16.xpose.msra.mxu0 %v1106
        %1392 = vmatprep.subr.bf16.mxu0 0
        %1393 = vmatpush1.bf16.xpose.msra.mxu0 %v1107
        %1394 = vmatprep.subr.bf16.mxu0 0
        %1395 = vmatpush1.bf16.xpose.msra.mxu0 %v1108
        %1396 = vmatprep.subr.bf16.mxu0 0
        %1397 = vmatpush1.bf16.xpose.msra.mxu0 %v1109
        %1398 = vmatprep.subr.bf16.mxu0 0
        %1399 = vmatpush1.bf16.xpose.msra.mxu0 %v1110
        %1400 = vmatprep.subr.bf16.mxu0 0
        %1401 = vmatpush1.bf16.xpose.msra.mxu0 %v1111
        %1402 = vmatprep.subr.bf16.mxu0 0
        %1403 = vmatpush1.bf16.xpose.msra.mxu0 %v1112
        %1404 = vmatprep.subr.bf16.mxu0 0
        %1405 = vmatpush1.bf16.xpose.msra.mxu0 %v1113
        %1406 = vmatprep.subr.bf16.mxu0 0
        %1407 = vmatpush1.bf16.xpose.msra.mxu0 %v1114
        %1408 = vmatprep.subr.bf16.mxu0 0
        %1409 = vmatpush1.bf16.xpose.msra.mxu0 %v1115
        %1410 = vmatprep.subr.bf16.mxu0 0
        %1411 = vmatpush1.bf16.xpose.msra.mxu0 %v1116
        %1412 = vmatprep.subr.bf16.mxu0 0
        %1413 = vmatpush1.bf16.xpose.msra.mxu0 %v1117
        %1414 = vmatprep.subr.bf16.mxu0 0
        %1415 = vmatpush1.bf16.xpose.msra.mxu0 %v1118
        %1416 = vmatprep.subr.bf16.mxu0 0
        %1417 = vmatpush1.bf16.xpose.msra.mxu0 %v1119
        %1418 = vmatprep.subr.bf16.mxu0 0
        %1419 = vmatpush1.bf16.xpose.msra.mxu0 %v1120
        %1420 = vmatprep.mubr.bf16.mxu0 0
        %1421 = vmatmul.mubr.bf16.gmra.mrb[0].mxu0 %v320
        %v1422 = vpop.f32.mrb[0].mxu0
        %v1423 = vadd.f32 0.0, %v1422
        %v1424 = vpop.f32.mrb[0].mxu0
        %v1425 = vadd.f32 0.0, %v1424
        %v1426 = vpop.f32.mrb[0].mxu0
        %v1427 = vadd.f32 0.0, %v1426
        %v1428 = vpop.f32.mrb[0].mxu0
        %v1429 = vadd.f32 0.0, %v1428
        %1430 = vdwg.mxu0
        %1431 = vmatprep.subr.bf16.mxu0 0
        %1432 = vmatpush1.bf16.xpose.msra.mxu0 %v1121
        %1433 = vmatprep.subr.bf16.mxu0 0
        %1434 = vmatpush1.bf16.xpose.msra.mxu0 %v1122
        %1435 = vmatprep.subr.bf16.mxu0 0
        %1436 = vmatpush1.bf16.xpose.msra.mxu0 %v1123
        %1437 = vmatprep.subr.bf16.mxu0 0
        %1438 = vmatpush1.bf16.xpose.msra.mxu0 %v1124
        %1439 = vmatprep.subr.bf16.mxu0 0
        %1440 = vmatpush1.bf16.xpose.msra.mxu0 %v1125
        %1441 = vmatprep.subr.bf16.mxu0 0
        %1442 = vmatpush1.bf16.xpose.msra.mxu0 %v1126
        %1443 = vmatprep.subr.bf16.mxu0 0
        %1444 = vmatpush1.bf16.xpose.msra.mxu0 %v1127
        %1445 = vmatprep.subr.bf16.mxu0 0
        %1446 = vmatpush1.bf16.xpose.msra.mxu0 %v1128
        %1447 = vmatprep.subr.bf16.mxu0 0
        %1448 = vmatpush1.bf16.xpose.msra.mxu0 %v1129
        %1449 = vmatprep.subr.bf16.mxu0 0
        %1450 = vmatpush1.bf16.xpose.msra.mxu0 %v1130
        %1451 = vmatprep.subr.bf16.mxu0 0
        %1452 = vmatpush1.bf16.xpose.msra.mxu0 %v1131
        %1453 = vmatprep.subr.bf16.mxu0 0
        %1454 = vmatpush1.bf16.xpose.msra.mxu0 %v1132
        %1455 = vmatprep.subr.bf16.mxu0 0
        %1456 = vmatpush1.bf16.xpose.msra.mxu0 %v1133
        %1457 = vmatprep.subr.bf16.mxu0 0
        %1458 = vmatpush1.bf16.xpose.msra.mxu0 %v1134
        %1459 = vmatprep.subr.bf16.mxu0 0
        %1460 = vmatpush1.bf16.xpose.msra.mxu0 %v1135
        %1461 = vmatprep.subr.bf16.mxu0 0
        %1462 = vmatpush1.bf16.xpose.msra.mxu0 %v1136
        %1463 = vmatprep.mubr.bf16.mxu0 0
        %1464 = vmatmul.mubr.bf16.gmra.mrb[0].mxu0 %v320
        %v1465 = vpop.f32.mrb[0].mxu0
        %v1466 = vadd.f32 0.0, %v1465
        %v1467 = vpop.f32.mrb[0].mxu0
        %v1468 = vadd.f32 0.0, %v1467
        %v1469 = vpop.f32.mrb[0].mxu0
        %v1470 = vadd.f32 0.0, %v1469
        %v1471 = vpop.f32.mrb[0].mxu0
        %v1472 = vadd.f32 0.0, %v1471
        %1473 = vdwg.mxu0
        %1474 = vmatprep.subr.bf16.mxu0 0
        %1475 = vmatpush1.bf16.xpose.msra.mxu0 %v1137
        %1476 = vmatprep.subr.bf16.mxu0 0
        %1477 = vmatpush1.bf16.xpose.msra.mxu0 %v1138
        %1478 = vmatprep.subr.bf16.mxu0 0
        %1479 = vmatpush1.bf16.xpose.msra.mxu0 %v1139
        %1480 = vmatprep.subr.bf16.mxu0 0
        %1481 = vmatpush1.bf16.xpose.msra.mxu0 %v1140
        %1482 = vmatprep.subr.bf16.mxu0 0
        %1483 = vmatpush1.bf16.xpose.msra.mxu0 %v1141
        %1484 = vmatprep.subr.bf16.mxu0 0
        %1485 = vmatpush1.bf16.xpose.msra.mxu0 %v1142
        %1486 = vmatprep.subr.bf16.mxu0 0
        %1487 = vmatpush1.bf16.xpose.msra.mxu0 %v1143
        %1488 = vmatprep.subr.bf16.mxu0 0
        %1489 = vmatpush1.bf16.xpose.msra.mxu0 %v1144
        %1490 = vmatprep.subr.bf16.mxu0 0
        %1491 = vmatpush1.bf16.xpose.msra.mxu0 %v1145
        %1492 = vmatprep.subr.bf16.mxu0 0
        %1493 = vmatpush1.bf16.xpose.msra.mxu0 %v1146
        %1494 = vmatprep.subr.bf16.mxu0 0
        %1495 = vmatpush1.bf16.xpose.msra.mxu0 %v1147
        %1496 = vmatprep.subr.bf16.mxu0 0
        %1497 = vmatpush1.bf16.xpose.msra.mxu0 %v1148
        %1498 = vmatprep.subr.bf16.mxu0 0
        %1499 = vmatpush1.bf16.xpose.msra.mxu0 %v1149
        %1500 = vmatprep.subr.bf16.mxu0 0
        %1501 = vmatpush1.bf16.xpose.msra.mxu0 %v1150
        %1502 = vmatprep.subr.bf16.mxu0 0
        %1503 = vmatpush1.bf16.xpose.msra.mxu0 %v1151
        %1504 = vmatprep.subr.bf16.mxu0 0
        %1505 = vmatpush1.bf16.xpose.msra.mxu0 %v1152
        %1506 = vmatprep.mubr.bf16.mxu0 0
        %1507 = vmatmul.mubr.bf16.gmra.mrb[0].mxu0 %v320
        %v1508 = vpop.f32.mrb[0].mxu0
        %v1509 = vadd.f32 0.0, %v1508
        %v1510 = vpop.f32.mrb[0].mxu0
        %v1511 = vadd.f32 0.0, %v1510
        %v1512 = vpop.f32.mrb[0].mxu0
        %v1513 = vadd.f32 0.0, %v1512
        %v1514 = vpop.f32.mrb[0].mxu0
        %v1515 = vadd.f32 0.0, %v1514
        %1516 = vdwg.mxu0
        %1517 = vmatprep.subr.bf16.mxu0 0
        %1518 = vmatpush1.bf16.xpose.msra.mxu0 %v1153
        %1519 = vmatprep.subr.bf16.mxu0 0
        %1520 = vmatpush1.bf16.xpose.msra.mxu0 %v1154
        %1521 = vmatprep.subr.bf16.mxu0 0
        %1522 = vmatpush1.bf16.xpose.msra.mxu0 %v1155
        %1523 = vmatprep.subr.bf16.mxu0 0
        %1524 = vmatpush1.bf16.xpose.msra.mxu0 %v1156
        %1525 = vmatprep.subr.bf16.mxu0 0
        %1526 = vmatpush1.bf16.xpose.msra.mxu0 %v1157
        %1527 = vmatprep.subr.bf16.mxu0 0
        %1528 = vmatpush1.bf16.xpose.msra.mxu0 %v1158
        %1529 = vmatprep.subr.bf16.mxu0 0
        %1530 = vmatpush1.bf16.xpose.msra.mxu0 %v1159
        %1531 = vmatprep.subr.bf16.mxu0 0
        %1532 = vmatpush1.bf16.xpose.msra.mxu0 %v1160
        %1533 = vmatprep.subr.bf16.mxu0 0
        %1534 = vmatpush1.bf16.xpose.msra.mxu0 %v1161
        %1535 = vmatprep.subr.bf16.mxu0 0
        %1536 = vmatpush1.bf16.xpose.msra.mxu0 %v1162
        %1537 = vmatprep.subr.bf16.mxu0 0
        %1538 = vmatpush1.bf16.xpose.msra.mxu0 %v1163
        %1539 = vmatprep.subr.bf16.mxu0 0
        %1540 = vmatpush1.bf16.xpose.msra.mxu0 %v1164
        %1541 = vmatprep.subr.bf16.mxu0 0
        %1542 = vmatpush1.bf16.xpose.msra.mxu0 %v1165
        %1543 = vmatprep.subr.bf16.mxu0 0
        %1544 = vmatpush1.bf16.xpose.msra.mxu0 %v1166
        %1545 = vmatprep.subr.bf16.mxu0 0
        %1546 = vmatpush1.bf16.xpose.msra.mxu0 %v1167
        %1547 = vmatprep.subr.bf16.mxu0 0
        %1548 = vmatpush1.bf16.xpose.msra.mxu0 %v1168
        %1549 = vmatprep.mubr.bf16.mxu0 0
        %1550 = vmatmul.mubr.bf16.gmra.mrb[0].mxu0 %v320
        %v1551 = vpop.f32.mrb[0].mxu0
        %v1552 = vadd.f32 0.0, %v1551
        %v1553 = vpop.f32.mrb[0].mxu0
        %v1554 = vadd.f32 0.0, %v1553
        %v1555 = vpop.f32.mrb[0].mxu0
        %v1556 = vadd.f32 0.0, %v1555
        %v1557 = vpop.f32.mrb[0].mxu0
        %v1558 = vadd.f32 0.0, %v1557
        %1559 = vdwg.mxu0
        %1560 = vmatprep.subr.bf16.mxu0 0
        %1561 = vmatpush1.bf16.xpose.msra.mxu0 %v1169
        %1562 = vmatprep.subr.bf16.mxu0 0
        %1563 = vmatpush1.bf16.xpose.msra.mxu0 %v1170
        %1564 = vmatprep.subr.bf16.mxu0 0
        %1565 = vmatpush1.bf16.xpose.msra.mxu0 %v1171
        %1566 = vmatprep.subr.bf16.mxu0 0
        %1567 = vmatpush1.bf16.xpose.msra.mxu0 %v1172
        %1568 = vmatprep.subr.bf16.mxu0 0
        %1569 = vmatpush1.bf16.xpose.msra.mxu0 %v1173
        %1570 = vmatprep.subr.bf16.mxu0 0
        %1571 = vmatpush1.bf16.xpose.msra.mxu0 %v1174
        %1572 = vmatprep.subr.bf16.mxu0 0
        %1573 = vmatpush1.bf16.xpose.msra.mxu0 %v1175
        %1574 = vmatprep.subr.bf16.mxu0 0
        %1575 = vmatpush1.bf16.xpose.msra.mxu0 %v1176
        %1576 = vmatprep.subr.bf16.mxu0 0
        %1577 = vmatpush1.bf16.xpose.msra.mxu0 %v1177
        %1578 = vmatprep.subr.bf16.mxu0 0
        %1579 = vmatpush1.bf16.xpose.msra.mxu0 %v1178
        %1580 = vmatprep.subr.bf16.mxu0 0
        %1581 = vmatpush1.bf16.xpose.msra.mxu0 %v1179
        %1582 = vmatprep.subr.bf16.mxu0 0
        %1583 = vmatpush1.bf16.xpose.msra.mxu0 %v1180
        %1584 = vmatprep.subr.bf16.mxu0 0
        %1585 = vmatpush1.bf16.xpose.msra.mxu0 %v1181
        %1586 = vmatprep.subr.bf16.mxu0 0
        %1587 = vmatpush1.bf16.xpose.msra.mxu0 %v1182
        %1588 = vmatprep.subr.bf16.mxu0 0
        %1589 = vmatpush1.bf16.xpose.msra.mxu0 %v1183
        %1590 = vmatprep.subr.bf16.mxu0 0
        %1591 = vmatpush1.bf16.xpose.msra.mxu0 %v1184
        %1592 = vmatprep.mubr.bf16.mxu0 0
        %1593 = vmatmul.mubr.bf16.gmra.mrb[0].mxu0 %v320
        %v1594 = vpop.f32.mrb[0].mxu0
        %v1595 = vadd.f32 0.0, %v1594
        %v1596 = vpop.f32.mrb[0].mxu0
        %v1597 = vadd.f32 0.0, %v1596
        %v1598 = vpop.f32.mrb[0].mxu0
        %v1599 = vadd.f32 0.0, %v1598
        %v1600 = vpop.f32.mrb[0].mxu0
        %v1601 = vadd.f32 0.0, %v1600
        %1602 = vdwg.mxu0
        %1603 = vmatprep.subr.bf16.mxu0 0
        %1604 = vmatpush1.bf16.xpose.msra.mxu0 %v1185
        %1605 = vmatprep.subr.bf16.mxu0 0
        %1606 = vmatpush1.bf16.xpose.msra.mxu0 %v1186
        %1607 = vmatprep.subr.bf16.mxu0 0
        %1608 = vmatpush1.bf16.xpose.msra.mxu0 %v1187
        %1609 = vmatprep.subr.bf16.mxu0 0
        %1610 = vmatpush1.bf16.xpose.msra.mxu0 %v1188
        %1611 = vmatprep.subr.bf16.mxu0 0
        %1612 = vmatpush1.bf16.xpose.msra.mxu0 %v1189
        %1613 = vmatprep.subr.bf16.mxu0 0
        %1614 = vmatpush1.bf16.xpose.msra.mxu0 %v1190
        %1615 = vmatprep.subr.bf16.mxu0 0
        %1616 = vmatpush1.bf16.xpose.msra.mxu0 %v1191
        %1617 = vmatprep.subr.bf16.mxu0 0
        %1618 = vmatpush1.bf16.xpose.msra.mxu0 %v1192
        %1619 = vmatprep.subr.bf16.mxu0 0
        %1620 = vmatpush1.bf16.xpose.msra.mxu0 %v1193
        %1621 = vmatprep.subr.bf16.mxu0 0
        %1622 = vmatpush1.bf16.xpose.msra.mxu0 %v1194
        %1623 = vmatprep.subr.bf16.mxu0 0
        %1624 = vmatpush1.bf16.xpose.msra.mxu0 %v1195
        %1625 = vmatprep.subr.bf16.mxu0 0
        %1626 = vmatpush1.bf16.xpose.msra.mxu0 %v1196
        %1627 = vmatprep.subr.bf16.mxu0 0
        %1628 = vmatpush1.bf16.xpose.msra.mxu0 %v1197
        %1629 = vmatprep.subr.bf16.mxu0 0
        %1630 = vmatpush1.bf16.xpose.msra.mxu0 %v1198
        %1631 = vmatprep.subr.bf16.mxu0 0
        %1632 = vmatpush1.bf16.xpose.msra.mxu0 %v1199
        %1633 = vmatprep.subr.bf16.mxu0 0
        %1634 = vmatpush1.bf16.xpose.msra.mxu0 %v1200
        %1635 = vmatprep.mubr.bf16.mxu0 0
        %1636 = vmatmul.mubr.bf16.gmra.mrb[0].mxu0 %v320
        %v1637 = vpop.f32.mrb[0].mxu0
        %v1638 = vadd.f32 0.0, %v1637
        %v1639 = vpop.f32.mrb[0].mxu0
        %v1640 = vadd.f32 0.0, %v1639
        %v1641 = vpop.f32.mrb[0].mxu0
        %v1642 = vadd.f32 0.0, %v1641
        %v1643 = vpop.f32.mrb[0].mxu0
        %v1644 = vadd.f32 0.0, %v1643
        %1645 = vdwg.mxu0
        %1646 = vmatprep.subr.bf16.mxu0 0
        %1647 = vmatpush1.bf16.xpose.msra.mxu0 %v1201
        %1648 = vmatprep.subr.bf16.mxu0 0
        %1649 = vmatpush1.bf16.xpose.msra.mxu0 %v1202
        %1650 = vmatprep.subr.bf16.mxu0 0
        %1651 = vmatpush1.bf16.xpose.msra.mxu0 %v1203
        %1652 = vmatprep.subr.bf16.mxu0 0
        %1653 = vmatpush1.bf16.xpose.msra.mxu0 %v1204
        %1654 = vmatprep.subr.bf16.mxu0 0
        %1655 = vmatpush1.bf16.xpose.msra.mxu0 %v1205
        %1656 = vmatprep.subr.bf16.mxu0 0
        %1657 = vmatpush1.bf16.xpose.msra.mxu0 %v1206
        %1658 = vmatprep.subr.bf16.mxu0 0
        %1659 = vmatpush1.bf16.xpose.msra.mxu0 %v1207
        %1660 = vmatprep.subr.bf16.mxu0 0
        %1661 = vmatpush1.bf16.xpose.msra.mxu0 %v1208
        %1662 = vmatprep.subr.bf16.mxu0 0
        %1663 = vmatpush1.bf16.xpose.msra.mxu0 %v1209
        %1664 = vmatprep.subr.bf16.mxu0 0
        %1665 = vmatpush1.bf16.xpose.msra.mxu0 %v1210
        %1666 = vmatprep.subr.bf16.mxu0 0
        %1667 = vmatpush1.bf16.xpose.msra.mxu0 %v1211
        %1668 = vmatprep.subr.bf16.mxu0 0
        %1669 = vmatpush1.bf16.xpose.msra.mxu0 %v1212
        %1670 = vmatprep.subr.bf16.mxu0 0
        %1671 = vmatpush1.bf16.xpose.msra.mxu0 %v1213
        %1672 = vmatprep.subr.bf16.mxu0 0
        %1673 = vmatpush1.bf16.xpose.msra.mxu0 %v1214
        %1674 = vmatprep.subr.bf16.mxu0 0
        %1675 = vmatpush1.bf16.xpose.msra.mxu0 %v1215
        %1676 = vmatprep.subr.bf16.mxu0 0
        %1677 = vmatpush1.bf16.xpose.msra.mxu0 %v1216
        %1678 = vmatprep.mubr.bf16.mxu0 0
        %1679 = vmatmul.mubr.bf16.gmra.mrb[0].mxu0 %v320
        %v1680 = vpop.f32.mrb[0].mxu0
        %v1681 = vadd.f32 0.0, %v1680
        %v1682 = vpop.f32.mrb[0].mxu0
        %v1683 = vadd.f32 0.0, %v1682
        %v1684 = vpop.f32.mrb[0].mxu0
        %v1685 = vadd.f32 0.0, %v1684
        %v1686 = vpop.f32.mrb[0].mxu0
        %v1687 = vadd.f32 0.0, %v1686
        %1688 = vdwg.mxu0
        %1689 = vst [vmem:[%s266] sm:$0xff] %v1380
        %1690 = vst [vmem:[%s266 + $0x8] sm:$0xff] %v1382
        %1691 = vst [vmem:[%s266 + $0x10] sm:$0xff] %v1423
        %1692 = vst [vmem:[%s266 + $0x18] sm:$0xff] %v1425
        %1693 = vst [vmem:[%s266 + $0x20] sm:$0xff] %v1466
        %1694 = vst [vmem:[%s266 + $0x28] sm:$0xff] %v1468
        %1695 = vst [vmem:[%s266 + $0x30] sm:$0xff] %v1509
        %1696 = vst [vmem:[%s266 + $0x38] sm:$0xff] %v1511
        %1697 = vst [vmem:[%s266 + $0x40] sm:$0xff] %v1552
        %1698 = vst [vmem:[%s266 + $0x48] sm:$0xff] %v1554
        %1699 = vst [vmem:[%s266 + $0x50] sm:$0xff] %v1595
        %1700 = vst [vmem:[%s266 + $0x58] sm:$0xff] %v1597
        %1701 = vst [vmem:[%s266 + $0x60] sm:$0xff] %v1638
        %1702 = vst [vmem:[%s266 + $0x68] sm:$0xff] %v1640
        %1703 = vst [vmem:[%s266 + $0x70] sm:$0xff] %v1681
        %1704 = vst [vmem:[%s266 + $0x78] sm:$0xff] %v1683
        %1705 = vst [vmem:[%s266 + $0x80] sm:$0xff] %v1384
        %1706 = vst [vmem:[%s266 + $0x88] sm:$0xff] %v1386
        %1707 = vst [vmem:[%s266 + $0x90] sm:$0xff] %v1427
        %1708 = vst [vmem:[%s266 + $0x98] sm:$0xff] %v1429
        %1709 = vst [vmem:[%s266 + $0xa0] sm:$0xff] %v1470
        %1710 = vst [vmem:[%s266 + $0xa8] sm:$0xff] %v1472
        %1711 = vst [vmem:[%s266 + $0xb0] sm:$0xff] %v1513
        %1712 = vst [vmem:[%s266 + $0xb8] sm:$0xff] %v1515
        %1713 = vst [vmem:[%s266 + $0xc0] sm:$0xff] %v1556
        %1714 = vst [vmem:[%s266 + $0xc8] sm:$0xff] %v1558
        %1715 = vst [vmem:[%s266 + $0xd0] sm:$0xff] %v1599
        %1716 = vst [vmem:[%s266 + $0xd8] sm:$0xff] %v1601
        %1717 = vst [vmem:[%s266 + $0xe0] sm:$0xff] %v1642
        %1718 = vst [vmem:[%s266 + $0xe8] sm:$0xff] %v1644
        %1719 = vst [vmem:[%s266 + $0xf0] sm:$0xff] %v1685
        %1720 = vst [vmem:[%s266 + $0xf8] sm:$0xff] %v1687
        %s1721 = sand.u32 %s135, 1
        %s1722 = sand.u32 %s135, 1
        %s1723 = smul.addr %s1722, 256
        %s1724 = scalar_lea.vmem [#allocation7], %s1723
        // Predicated region
        $region49: #{gpt2_textual_head_forward.21} parent=35 // pred_check
          %p1725 = pneg %p145
        $region50: #{gpt2_textual_head_forward.21} parent=35 // pred_check_branch
          %1727 = sbr.rel (%p1725) target = $region52
        $region51: #{gpt2_textual_head_forward.21} parent=35 // pred_region
          %s1728 = smul.u32 2, %s24
          %s1729 = smul.u32 16, %s23
          %s1730 = smul.addr %s1728, 400
          %s1731 = sadd.s32 %s1729, %s1730
          %s1732 = smul.addr %s1731, 8
          %s1733 = scalar_lea.vmem %s4, %s1732
          // Predicated region
          $region53: #{gpt2_textual_head_forward.21} parent=51 // pred_check
            _
          $region54: #{gpt2_textual_head_forward.21} parent=51 // pred_check_branch
            %1735 = sbr.rel (0) target = $region56
          $region55: #{gpt2_textual_head_forward.21} parent=51 // pred_region
            // Predicated region
            $region57: #{gpt2_textual_head_forward.21} parent=55 // pred_check
              _
            $region58: #{gpt2_textual_head_forward.21} parent=55 // pred_check_branch
              %1737 = sbr.rel (0) target = $region60
            $region59: #{gpt2_textual_head_forward.21} parent=55 // pred_region
              loop: start=0, step=1, limit=1
              $region61: #{gpt2_textual_head_forward.21} parent=59 // loop_pre_header
                _
              $region62: #{gpt2_textual_head_forward.21} parent=59 // loop_header
                %s1739 = sphi 0, %s1743
                %p1740 = scmp.ge.s32.totalorder %s1739, 1
                %s1744 = sphi %s1724, %s1724
                %s1745 = sphi %s1733, %s1733
              $region63: #{gpt2_textual_head_forward.21} parent=59 // loop_header_branch
                %1742 = sbr.rel (%p1740) target = $region67
              $region64: #{gpt2_textual_head_forward.21} parent=59 // loop_body
                %v1746 = vld [vmem:[%s1744] sm:$0xff]
                %1747 = vst [vmem:[%s1745] sm:$0xff] %v1746
                %v1748 = vld [vmem:[%s1744 + $0x8] sm:$0xff]
                %1749 = vst [vmem:[%s1745 + $0x8] sm:$0xff] %v1748
                %v1750 = vld [vmem:[%s1744 + $0x10] sm:$0xff]
                %1751 = vst [vmem:[%s1745 + $0x10] sm:$0xff] %v1750
                %v1752 = vld [vmem:[%s1744 + $0x18] sm:$0xff]
                %1753 = vst [vmem:[%s1745 + $0x18] sm:$0xff] %v1752
                %v1754 = vld [vmem:[%s1744 + $0x20] sm:$0xff]
                %1755 = vst [vmem:[%s1745 + $0x20] sm:$0xff] %v1754
                %v1756 = vld [vmem:[%s1744 + $0x28] sm:$0xff]
                %1757 = vst [vmem:[%s1745 + $0x28] sm:$0xff] %v1756
                %v1758 = vld [vmem:[%s1744 + $0x30] sm:$0xff]
                %1759 = vst [vmem:[%s1745 + $0x30] sm:$0xff] %v1758
                %v1760 = vld [vmem:[%s1744 + $0x38] sm:$0xff]
                %1761 = vst [vmem:[%s1745 + $0x38] sm:$0xff] %v1760
                %v1762 = vld [vmem:[%s1744 + $0x40] sm:$0xff]
                %1763 = vst [vmem:[%s1745 + $0x40] sm:$0xff] %v1762
                %v1764 = vld [vmem:[%s1744 + $0x48] sm:$0xff]
                %1765 = vst [vmem:[%s1745 + $0x48] sm:$0xff] %v1764
                %v1766 = vld [vmem:[%s1744 + $0x50] sm:$0xff]
                %1767 = vst [vmem:[%s1745 + $0x50] sm:$0xff] %v1766
                %v1768 = vld [vmem:[%s1744 + $0x58] sm:$0xff]
                %1769 = vst [vmem:[%s1745 + $0x58] sm:$0xff] %v1768
                %v1770 = vld [vmem:[%s1744 + $0x60] sm:$0xff]
                %1771 = vst [vmem:[%s1745 + $0x60] sm:$0xff] %v1770
                %v1772 = vld [vmem:[%s1744 + $0x68] sm:$0xff]
                %1773 = vst [vmem:[%s1745 + $0x68] sm:$0xff] %v1772
                %v1774 = vld [vmem:[%s1744 + $0x70] sm:$0xff]
                %1775 = vst [vmem:[%s1745 + $0x70] sm:$0xff] %v1774
                %v1776 = vld [vmem:[%s1744 + $0x78] sm:$0xff]
                %1777 = vst [vmem:[%s1745 + $0x78] sm:$0xff] %v1776
                %v1778 = vld [vmem:[%s1744 + $0x80] sm:$0xff]
                %1779 = vst [vmem:[%s1745 + $0xc80] sm:$0xff] %v1778
                %v1780 = vld [vmem:[%s1744 + $0x88] sm:$0xff]
                %1781 = vst [vmem:[%s1745 + $0xc88] sm:$0xff] %v1780
                %v1782 = vld [vmem:[%s1744 + $0x90] sm:$0xff]
                %1783 = vst [vmem:[%s1745 + $0xc90] sm:$0xff] %v1782
                %v1784 = vld [vmem:[%s1744 + $0x98] sm:$0xff]
                %1785 = vst [vmem:[%s1745 + $0xc98] sm:$0xff] %v1784
                %v1786 = vld [vmem:[%s1744 + $0xa0] sm:$0xff]
                %1787 = vst [vmem:[%s1745 + $0xca0] sm:$0xff] %v1786
                %v1788 = vld [vmem:[%s1744 + $0xa8] sm:$0xff]
                %1789 = vst [vmem:[%s1745 + $0xca8] sm:$0xff] %v1788
                %v1790 = vld [vmem:[%s1744 + $0xb0] sm:$0xff]
                %1791 = vst [vmem:[%s1745 + $0xcb0] sm:$0xff] %v1790
                %v1792 = vld [vmem:[%s1744 + $0xb8] sm:$0xff]
                %1793 = vst [vmem:[%s1745 + $0xcb8] sm:$0xff] %v1792
                %v1794 = vld [vmem:[%s1744 + $0xc0] sm:$0xff]
                %1795 = vst [vmem:[%s1745 + $0xcc0] sm:$0xff] %v1794
                %v1796 = vld [vmem:[%s1744 + $0xc8] sm:$0xff]
                %1797 = vst [vmem:[%s1745 + $0xcc8] sm:$0xff] %v1796
                %v1798 = vld [vmem:[%s1744 + $0xd0] sm:$0xff]
                %1799 = vst [vmem:[%s1745 + $0xcd0] sm:$0xff] %v1798
                %v1800 = vld [vmem:[%s1744 + $0xd8] sm:$0xff]
                %1801 = vst [vmem:[%s1745 + $0xcd8] sm:$0xff] %v1800
                %v1802 = vld [vmem:[%s1744 + $0xe0] sm:$0xff]
                %1803 = vst [vmem:[%s1745 + $0xce0] sm:$0xff] %v1802
                %v1804 = vld [vmem:[%s1744 + $0xe8] sm:$0xff]
                %1805 = vst [vmem:[%s1745 + $0xce8] sm:$0xff] %v1804
                %v1806 = vld [vmem:[%s1744 + $0xf0] sm:$0xff]
                %1807 = vst [vmem:[%s1745 + $0xcf0] sm:$0xff] %v1806
                %v1808 = vld [vmem:[%s1744 + $0xf8] sm:$0xff]
                %1809 = vst [vmem:[%s1745 + $0xcf8] sm:$0xff] %v1808
              $region65: #{gpt2_textual_head_forward.21} parent=59 // loop_footer
                %s1743 = sadd.s32 1, %s1739
              $region66: #{gpt2_textual_head_forward.21} parent=59 // loop_footer_branch
                %1738 = sbr.rel target = $region62
              $region67: #{gpt2_textual_head_forward.21} parent=59 // loop_exit
                _
            $region60: #{gpt2_textual_head_forward.21} parent=55 // pred_fallthru
              _
            // Predicated region
            $region68: #{gpt2_textual_head_forward.21} parent=55 // pred_check
              _
            $region69: #{gpt2_textual_head_forward.21} parent=55 // pred_check_branch
              %1811 = sbr.rel target = $region71
            $region70: #{gpt2_textual_head_forward.21} parent=55 // pred_region
              _
            $region71: #{gpt2_textual_head_forward.21} parent=55 // pred_fallthru
              _
          $region56: #{gpt2_textual_head_forward.21} parent=51 // pred_fallthru
            _
          %1812 = vnop
        $region52: #{gpt2_textual_head_forward.21} parent=35 // pred_fallthru
          _
      $region36: #{gpt2_textual_head_forward.21} parent=5 // pred_fallthru
        _
      %p1813 = scmp.le.s32.totalorder 2, %s14
      // Predicated region
      $region72: #{gpt2_textual_head_forward.21} parent=5 // pred_check
        %p1814 = pneg %p1813
      $region73: #{gpt2_textual_head_forward.21} parent=5 // pred_check_branch
        %1816 = sbr.rel (%p1814) target = $region75
      $region74: #{gpt2_textual_head_forward.21} parent=5 // pred_region
        %s1817 = ssub.s32 %s14, 2
        // Predicated region
        $region76: #{gpt2_textual_head_forward.21} parent=74 // pred_check
          %p1818 = pneg %p151
        $region77: #{gpt2_textual_head_forward.21} parent=74 // pred_check_branch
          %1820 = sbr.rel (%p1818) target = $region79
        $region78: #{gpt2_textual_head_forward.21} parent=74 // pred_region
          %s1821 = sand.u32 %s136, 1
          %s1822 = sand.u32 %s136, 1
          %s1823 = smul.addr %s1822, 256
          %s1824 = scalar_lea.vmem [#allocation7], %s1823
        $region79: #{gpt2_textual_head_forward.21} parent=74 // pred_fallthru
          _
      $region75: #{gpt2_textual_head_forward.21} parent=5 // pred_fallthru
        _
    $region6: #{gpt2_textual_head_forward.21} parent=1 // loop_footer
      %s18 = sadd.s32 1, %s14
    $region7: #{gpt2_textual_head_forward.21} parent=1 // loop_footer_branch
      %13 = sbr.rel target = $region3
    $region8: #{gpt2_textual_head_forward.21} parent=1 // loop_exit
      _
    %1825 = vsyncpa [#allocation3], 1
    %s1826 = scalar_lea.sflag [#allocation3], 1
    %1827 = vsyncpa %s1826, 1
    %1828 = vsyncpa [#allocation5], 1

</llo_original>
